<compile_context>
chip_gen: v5e
topology: v5e:2x2
jax: 0.10.0
libtpu: 0.0.40
codegen_flags: <defaults>
</compile_context>

<pallas_src>
import functools

import jax
import jax.numpy as jnp
from jax import lax
from jax.experimental import pallas as pl
from jax.experimental.pallas import tpu as pltpu

KSIZE = 7          # SpatialAttention kernel_size=7
PAD = 3            # -> padding=3
SA_IN_CH = 2       # [avg_out, max_out]


def _cbam_kernel(w_sa_ref, w1t_ref, w2_ref, x_ref, o_ref, *, H, W, Bt):
    # w_sa_ref : (2*7*7,) f32 SMEM   -- SpatialAttention conv weights, flat (c, ki, kj)
    # w1t_ref  : (C, Cr)  f32 VMEM   -- ChannelAttention conv1 weight, transposed
    # w2_ref   : (C, Cr)  f32 VMEM   -- ChannelAttention conv2 weight
    # x_ref    : (Bt, C, H*W) block  -- lane-dense activations (caller dtype)
    # o_ref    : (Bt, C, H*W) block
    HW = H * W

    # ---------------- Channel attention (per batch element; tiny 2-D VPU work) ------
    ca_list = []
    avg_rows = []
    max_rows = []
    for b in range(Bt):
        xb = x_ref[b].astype(jnp.float32)                               # (C, HW)
        avg_c = jnp.mean(xb, axis=1, keepdims=True)                     # (C, 1)
        max_c = jnp.max(xb, axis=1, keepdims=True)                      # (C, 1)
        # shared MLP  W2 @ relu(W1 @ v), v in {avg, max}, as broadcast-mul + reduce
        # (exact f32, VPU/XLU only -- a 1-pixel matmul would leave the MXU ~1/256 used).
        h_avg = jnp.sum(w1t_ref[...] * avg_c, axis=0, keepdims=True)    # (1, Cr)
        h_max = jnp.sum(w1t_ref[...] * max_c, axis=0, keepdims=True)    # (1, Cr)
        g = jnp.maximum(h_avg, 0.0) + jnp.maximum(h_max, 0.0)           # (1, Cr)
        ca = jax.nn.sigmoid(jnp.sum(w2_ref[...] * g, axis=1, keepdims=True))   # (C, 1)
        ca_list.append(ca)

        x1 = xb * ca                                                    # (C, HW)
        avg_rows.append(jnp.mean(x1, axis=0, keepdims=True))            # (1, HW)
        max_rows.append(jnp.max(x1, axis=0, keepdims=True))             # (1, HW)

    # Stack all SA planes on the sublane axis: rows [0:Bt] are the avg planes (conv
    # input channel 0), rows [Bt:2*Bt] the max planes (channel 1).
    planes = jnp.concatenate(avg_rows + max_rows, axis=0)               # (2*Bt, HW)

    # ---------------- Spatial attention: 7x7 conv via in-register lane rolls --------
    lane = lax.broadcasted_iota(jnp.int32, (1, HW), 1)
    wcoord = lane % W
    # h + dy in [0, H)  <=>  lane in [-dy*W, (H - dy)*W)   (no per-lane division)
    row_ok = [jnp.logical_and(lane >= -(ki - PAD) * W, lane < (H - (ki - PAD)) * W)
              for ki in range(KSIZE)]
    col_ok = [jnp.logical_and(wcoord >= -(kj - PAD), wcoord < W - (kj - PAD))
              for kj in range(KSIZE)]
    is_max_row = lax.broadcasted_iota(jnp.int32, (2 * Bt, 1), 0) >= Bt  # (2*Bt, 1)

    logits2 = None
    for kj in range(KSIZE):
        dx = kj - PAD
        acc = None
        for ki in range(KSIZE):
            dy = ki - PAD
            shift = (-(dy * W + dx)) % HW
            rolled = planes if shift == 0 else pltpu.roll(planes, shift=shift, axis=1)
            w_avg = w_sa_ref[ki * KSIZE + kj]                    # channel-0 tap weight
            w_max = w_sa_ref[KSIZE * KSIZE + ki * KSIZE + kj]    # channel-1 tap weight
            wcol = jnp.where(is_max_row, w_max, w_avg)           # per-sublane weight
            contrib = jnp.where(row_ok[ki], wcol * rolled, 0.0)  # rows out of range -> 0
            acc = contrib if acc is None else acc + contrib
        masked = jnp.where(col_ok[kj], acc, 0.0)                 # cols out of range -> 0
        logits2 = masked if logits2 is None else logits2 + masked

    # Fold the two conv input channels (avg / max sublane halves) together.
    logits = logits2[0:Bt] + logits2[Bt:2 * Bt]                  # (Bt, HW)
    sa = jax.nn.sigmoid(logits)

    # ---------------- Apply both attentions; lane-dense stores ----------------------
    for b in range(Bt):
        xb = x_ref[b].astype(jnp.float32)
        o_ref[b] = (xb * ca_list[b] * sa[b:b + 1, :]).astype(o_ref.dtype)


def _pick_bt(B, C, HW, itemsize):
    """Largest divisor of B (<= 8) whose in+out, double-buffered block fits a
    conservative VMEM budget (well under v7x's 64 MiB physical VMEM)."""
    budget = 8 * 1024 * 1024
    best = 1
    for cand in range(1, min(B, 8) + 1):
        if B % cand == 0 and 4 * cand * C * HW * itemsize <= budget:
            best = cand
    return best


def cbam_forward(x, w1, w2, w_sa):
    """CBAM forward pass.

    x    : (B, C, H, W)  f32 or bf16 (bf16 halves HBM traffic; math is f32 inside)
    w1   : (Cr, C)       -- ChannelAttention Conv2d(C, Cr, 1, bias=False) weight
    w2   : (C, Cr)       -- ChannelAttention Conv2d(Cr, C, 1, bias=False) weight
    w_sa : (1, 2, 7, 7)  -- SpatialAttention Conv2d(2, 1, 7, pad=3, bias=False) weight
    returns (B, C, H, W) in x.dtype
    """
    B, C, H, W = x.shape
    Cr = w1.shape[0]
    HW = H * W
    if HW % 128 != 0:
        # TODO(synk): pad H*W up to a multiple of 128 (with masked reductions) so odd
        # spatial sizes (14x14, 7x7, ...) keep lane-dense, unmasked stores.
        raise NotImplementedError("H*W must be a multiple of 128 for this kernel")

    x_flat = x.reshape(B, C, HW)                                 # keep caller dtype in HBM
    w1t = jnp.transpose(w1).astype(jnp.float32)                  # (C, Cr)
    w2f = w2.astype(jnp.float32)                                 # (C, Cr)
    w_sa_flat = w_sa.reshape(-1).astype(jnp.float32)             # (98,)

    Bt = _pick_bt(B, C, HW, x.dtype.itemsize)
    grid = (B // Bt,)

    # TODO(synk): for very large C*H*W (e.g. C>=512 at 56x56) additionally tile C as an
    # "arbitrary" grid axis with running channel sum/max scratch, re-budgeted for v7x.
    kernel = functools.partial(_cbam_kernel, H=H, W=W, Bt=Bt)

    out_flat = pl.pallas_call(
        kernel,
        out_shape=jax.ShapeDtypeStruct((B, C, HW), x.dtype),
        grid=grid,
        in_specs=[
            pl.BlockSpec(memory_space=pltpu.MemorySpace.SMEM),   # 7x7 conv weights (scalars)
            pl.BlockSpec((C, Cr), lambda i: (0, 0)),             # w1^T
            pl.BlockSpec((C, Cr), lambda i: (0, 0)),             # w2
            pl.BlockSpec((Bt, C, HW), lambda i: (i, 0, 0)),      # x, Bt batch elems / step
        ],
        out_specs=pl.BlockSpec((Bt, C, HW), lambda i: (i, 0, 0)),
        compiler_params=pltpu.CompilerParams(
            dimension_semantics=("parallel",)),
    )(w_sa_flat, w1t, w2f, x_flat)

    return out_flat.reshape(B, C, H, W)


def _reference(x, w1, w2, w_sa):
    """Pure-JAX CBAM reference (mirrors the PyTorch module)."""
    P = jax.lax.Precision.HIGHEST
    # Channel attention
    avg = jnp.mean(x, axis=(2, 3))                                   # (B, C)
    mx = jnp.max(x, axis=(2, 3))                                     # (B, C)

    def mlp(v):
        h = jnp.maximum(jnp.einsum('bc,rc->br', v, w1, precision=P), 0.0)
        return jnp.einsum('br,cr->bc', h, w2, precision=P)

    ca = jax.nn.sigmoid(mlp(avg) + mlp(mx))                          # (B, C)
    x1 = x * ca[:, :, None, None]

    # Spatial attention
    avg_s = jnp.mean(x1, axis=1, keepdims=True)
    max_s = jnp.max(x1, axis=1, keepdims=True)
    feat = jnp.concatenate([avg_s, max_s], axis=1)                   # (B, 2, H, W)
    y = lax.conv_general_dilated(
        feat, w_sa, window_strides=(1, 1),
        padding=((PAD, PAD), (PAD, PAD)),
        dimension_numbers=("NCHW", "OIHW", "NCHW"),
        precision=P)
    sa = jax.nn.sigmoid(y)                                           # (B, 1, H, W)
    return x1 * sa


if __name__ == "__main__":
    key = jax.random.PRNGKey(0)
    kx, k1, k2, k3 = jax.random.split(key, 4)

    # planes=32, ratio=16 (module default) -> hidden Cr=2
    B, C, H, W = 2, 32, 16, 16
    RATIO = 16
    Cr = C // RATIO

    x = jax.random.normal(kx, (B, C, H, W), dtype=jnp.float32)

    def _uniform(k, shape, fan_in):
        bound = 1.0 / jnp.sqrt(jnp.float32(fan_in))
        return jax.random.uniform(k, shape, jnp.float32, -bound, bound)

    w1 = _uniform(k1, (Cr, C), C)                                    # Conv2d(C, Cr, 1)
    w2 = _uniform(k2, (C, Cr), Cr)                                   # Conv2d(Cr, C, 1)
    w_sa = _uniform(k3, (1, SA_IN_CH, KSIZE, KSIZE), SA_IN_CH * KSIZE * KSIZE)

    # f32 path: must match the reference tightly.
    out = jax.block_until_ready(cbam_forward(x, w1, w2, w_sa))
    ref = jax.block_until_ready(_reference(x, w1, w2, w_sa))
    assert out.shape == (B, C, H, W) and out.dtype == x.dtype
    max_err = float(jnp.max(jnp.abs(out - ref)))
    assert jnp.allclose(out, ref, atol=1e-3, rtol=1e-3), f"f32 mismatch, max_err={max_err}"

    # bf16-through-HBM path (perf feedback): activations bf16 in HBM, f32 math inside.
    x_bf = x.astype(jnp.bfloat16)
    out_bf = jax.block_until_ready(cbam_forward(x_bf, w1, w2, w_sa))
    ref_bf = jax.block_until_ready(_reference(x_bf.astype(jnp.float32), w1, w2, w_sa))
    assert out_bf.dtype == jnp.bfloat16
    bf_err = float(jnp.max(jnp.abs(out_bf.astype(jnp.float32) - ref_bf)))
    assert bf_err < 5e-2, f"bf16 mismatch, max_err={bf_err}"

    print("KERNEL_OK")
</pallas_src>

<mosaic_0001>
module attributes {stable_mosaic.version = 11 : i64} {
  func.func @_cbam_kernel(%arg0: i32, %arg1: memref<98xf32, #tpu.memory_space<smem>>, %arg2: memref<32x2xf32, #tpu.memory_space<vmem>>, %arg3: memref<32x2xf32, #tpu.memory_space<vmem>>, %arg4: memref<2x32x256xf32, #tpu.memory_space<vmem>>, %arg5: memref<2x32x256xf32, #tpu.memory_space<vmem>>) attributes {dimension_semantics = [#tpu.dimension_semantics<parallel>], iteration_bounds = array<i64: 1>, scalar_prefetch = 0 : i64, scratch_operands = 0 : i64, tpu.core_type = #tpu.core_type<tc>, window_params = [{transform_indices = @transform_0, window_bounds = array<i64: 98>}, {pipeline_mode = #tpu.pipeline_mode<synchronous>, transform_indices = @transform_1, window_bounds = array<i64: 32, 2>}, {pipeline_mode = #tpu.pipeline_mode<synchronous>, transform_indices = @transform_2, window_bounds = array<i64: 32, 2>}, {transform_indices = @transform_3, window_bounds = array<i64: 2, 32, 256>}, {transform_indices = @transform_4, window_bounds = array<i64: 2, 32, 256>}]} {
    %c0 = arith.constant 0 : index
    %c0_0 = arith.constant 0 : index
    %c0_1 = arith.constant 0 : index
    %0 = vector.load %arg4[%c0, %c0_0, %c0_1] : memref<2x32x256xf32, #tpu.memory_space<vmem>>, vector<1x32x256xf32>
    %1 = vector.shape_cast %0 : vector<1x32x256xf32> to vector<32x256xf32>
    %cst = arith.constant dense<0.000000e+00> : vector<32xf32>
    %2 = vector.multi_reduction <add>, %1, %cst [1] : vector<32x256xf32> to vector<32xf32>
    %3 = vector.shape_cast %2 : vector<32xf32> to vector<32x1xf32>
    %cst_2 = arith.constant 2.560000e+02 : f32
    %4 = vector.broadcast %cst_2 : f32 to vector<32x1xf32>
    %5 = arith.divf %3, %4 : vector<32x1xf32>
    %cst_3 = arith.constant dense<0xFF800000> : vector<32xf32>
    %6 = vector.multi_reduction <maximumf>, %1, %cst_3 [1] : vector<32x256xf32> to vector<32xf32>
    %7 = vector.shape_cast %6 : vector<32xf32> to vector<32x1xf32>
    %c0_4 = arith.constant 0 : index
    %c0_5 = arith.constant 0 : index
    %8 = vector.load %arg2[%c0_4, %c0_5] : memref<32x2xf32, #tpu.memory_space<vmem>>, vector<32x2xf32>
    %9 = vector.broadcast %5 : vector<32x1xf32> to vector<32x2xf32>
    %10 = arith.mulf %8, %9 : vector<32x2xf32>
    %cst_6 = arith.constant dense<0.000000e+00> : vector<2xf32>
    %11 = vector.multi_reduction <add>, %10, %cst_6 [0] : vector<32x2xf32> to vector<2xf32>
    %12 = vector.shape_cast %11 : vector<2xf32> to vector<1x2xf32>
    %c0_7 = arith.constant 0 : index
    %c0_8 = arith.constant 0 : index
    %13 = vector.load %arg2[%c0_7, %c0_8] : memref<32x2xf32, #tpu.memory_space<vmem>>, vector<32x2xf32>
    %14 = vector.broadcast %7 : vector<32x1xf32> to vector<32x2xf32>
    %15 = arith.mulf %13, %14 : vector<32x2xf32>
    %cst_9 = arith.constant dense<0.000000e+00> : vector<2xf32>
    %16 = vector.multi_reduction <add>, %15, %cst_9 [0] : vector<32x2xf32> to vector<2xf32>
    %17 = vector.shape_cast %16 : vector<2xf32> to vector<1x2xf32>
    %cst_10 = arith.constant 0.000000e+00 : f32
    %18 = vector.broadcast %cst_10 : f32 to vector<1x2xf32>
    %19 = arith.maximumf %12, %18 : vector<1x2xf32>
    %cst_11 = arith.constant 0.000000e+00 : f32
    %20 = vector.broadcast %cst_11 : f32 to vector<1x2xf32>
    %21 = arith.maximumf %17, %20 : vector<1x2xf32>
    %22 = arith.addf %19, %21 : vector<1x2xf32>
    %c0_12 = arith.constant 0 : index
    %c0_13 = arith.constant 0 : index
    %23 = vector.load %arg3[%c0_12, %c0_13] : memref<32x2xf32, #tpu.memory_space<vmem>>, vector<32x2xf32>
    %24 = vector.broadcast %22 : vector<1x2xf32> to vector<32x2xf32>
    %25 = arith.mulf %23, %24 : vector<32x2xf32>
    %cst_14 = arith.constant dense<0.000000e+00> : vector<32xf32>
    %26 = vector.multi_reduction <add>, %25, %cst_14 [1] : vector<32x2xf32> to vector<32xf32>
    %27 = vector.shape_cast %26 : vector<32xf32> to vector<32x1xf32>
    %28 = arith.negf %27 : vector<32x1xf32>
    %29 = math.exp %28 : vector<32x1xf32>
    %cst_15 = arith.constant 1.000000e+00 : f32
    %30 = vector.broadcast %cst_15 : f32 to vector<32x1xf32>
    %31 = arith.addf %30, %29 : vector<32x1xf32>
    %32 = arith.divf %30, %31 : vector<32x1xf32>
    %33 = vector.broadcast %32 : vector<32x1xf32> to vector<32x256xf32>
    %34 = arith.mulf %1, %33 : vector<32x256xf32>
    %cst_16 = arith.constant dense<0.000000e+00> : vector<256xf32>
    %35 = vector.multi_reduction <add>, %34, %cst_16 [0] : vector<32x256xf32> to vector<256xf32>
    %36 = vector.shape_cast %35 : vector<256xf32> to vector<1x256xf32>
    %cst_17 = arith.constant 3.200000e+01 : f32
    %37 = vector.broadcast %cst_17 : f32 to vector<1x256xf32>
    %38 = arith.divf %36, %37 : vector<1x256xf32>
    %cst_18 = arith.constant dense<0xFF800000> : vector<256xf32>
    %39 = vector.multi_reduction <maximumf>, %34, %cst_18 [0] : vector<32x256xf32> to vector<256xf32>
    %40 = vector.shape_cast %39 : vector<256xf32> to vector<1x256xf32>
    %c1 = arith.constant 1 : index
    %c0_19 = arith.constant 0 : index
    %c0_20 = arith.constant 0 : index
    %41 = vector.load %arg4[%c1, %c0_19, %c0_20] : memref<2x32x256xf32, #tpu.memory_space<vmem>>, vector<1x32x256xf32>
    %42 = vector.shape_cast %41 : vector<1x32x256xf32> to vector<32x256xf32>
    %cst_21 = arith.constant dense<0.000000e+00> : vector<32xf32>
    %43 = vector.multi_reduction <add>, %42, %cst_21 [1] : vector<32x256xf32> to vector<32xf32>
    %44 = vector.shape_cast %43 : vector<32xf32> to vector<32x1xf32>
    %cst_22 = arith.constant 2.560000e+02 : f32
    %45 = vector.broadcast %cst_22 : f32 to vector<32x1xf32>
    %46 = arith.divf %44, %45 : vector<32x1xf32>
    %cst_23 = arith.constant dense<0xFF800000> : vector<32xf32>
    %47 = vector.multi_reduction <maximumf>, %42, %cst_23 [1] : vector<32x256xf32> to vector<32xf32>
    %48 = vector.shape_cast %47 : vector<32xf32> to vector<32x1xf32>
    %c0_24 = arith.constant 0 : index
    %c0_25 = arith.constant 0 : index
    %49 = vector.load %arg2[%c0_24, %c0_25] : memref<32x2xf32, #tpu.memory_space<vmem>>, vector<32x2xf32>
    %50 = vector.broadcast %46 : vector<32x1xf32> to vector<32x2xf32>
    %51 = arith.mulf %49, %50 : vector<32x2xf32>
    %cst_26 = arith.constant dense<0.000000e+00> : vector<2xf32>
    %52 = vector.multi_reduction <add>, %51, %cst_26 [0] : vector<32x2xf32> to vector<2xf32>
    %53 = vector.shape_cast %52 : vector<2xf32> to vector<1x2xf32>
    %c0_27 = arith.constant 0 : index
    %c0_28 = arith.constant 0 : index
    %54 = vector.load %arg2[%c0_27, %c0_28] : memref<32x2xf32, #tpu.memory_space<vmem>>, vector<32x2xf32>
    %55 = vector.broadcast %48 : vector<32x1xf32> to vector<32x2xf32>
    %56 = arith.mulf %54, %55 : vector<32x2xf32>
    %cst_29 = arith.constant dense<0.000000e+00> : vector<2xf32>
    %57 = vector.multi_reduction <add>, %56, %cst_29 [0] : vector<32x2xf32> to vector<2xf32>
    %58 = vector.shape_cast %57 : vector<2xf32> to vector<1x2xf32>
    %cst_30 = arith.constant 0.000000e+00 : f32
    %59 = vector.broadcast %cst_30 : f32 to vector<1x2xf32>
    %60 = arith.maximumf %53, %59 : vector<1x2xf32>
    %cst_31 = arith.constant 0.000000e+00 : f32
    %61 = vector.broadcast %cst_31 : f32 to vector<1x2xf32>
    %62 = arith.maximumf %58, %61 : vector<1x2xf32>
    %63 = arith.addf %60, %62 : vector<1x2xf32>
    %c0_32 = arith.constant 0 : index
    %c0_33 = arith.constant 0 : index
    %64 = vector.load %arg3[%c0_32, %c0_33] : memref<32x2xf32, #tpu.memory_space<vmem>>, vector<32x2xf32>
    %65 = vector.broadcast %63 : vector<1x2xf32> to vector<32x2xf32>
    %66 = arith.mulf %64, %65 : vector<32x2xf32>
    %cst_34 = arith.constant dense<0.000000e+00> : vector<32xf32>
    %67 = vector.multi_reduction <add>, %66, %cst_34 [1] : vector<32x2xf32> to vector<32xf32>
    %68 = vector.shape_cast %67 : vector<32xf32> to vector<32x1xf32>
    %69 = arith.negf %68 : vector<32x1xf32>
    %70 = math.exp %69 : vector<32x1xf32>
    %cst_35 = arith.constant 1.000000e+00 : f32
    %71 = vector.broadcast %cst_35 : f32 to vector<32x1xf32>
    %72 = arith.addf %71, %70 : vector<32x1xf32>
    %73 = arith.divf %71, %72 : vector<32x1xf32>
    %74 = vector.broadcast %73 : vector<32x1xf32> to vector<32x256xf32>
    %75 = arith.mulf %42, %74 : vector<32x256xf32>
    %cst_36 = arith.constant dense<0.000000e+00> : vector<256xf32>
    %76 = vector.multi_reduction <add>, %75, %cst_36 [0] : vector<32x256xf32> to vector<256xf32>
    %77 = vector.shape_cast %76 : vector<256xf32> to vector<1x256xf32>
    %cst_37 = arith.constant 3.200000e+01 : f32
    %78 = vector.broadcast %cst_37 : f32 to vector<1x256xf32>
    %79 = arith.divf %77, %78 : vector<1x256xf32>
    %cst_38 = arith.constant dense<0xFF800000> : vector<256xf32>
    %80 = vector.multi_reduction <maximumf>, %75, %cst_38 [0] : vector<32x256xf32> to vector<256xf32>
    %81 = vector.shape_cast %80 : vector<256xf32> to vector<1x256xf32>
    %82 = tpu.concatenate %38, %79, %40, %81 in 0 : vector<1x256xf32>, vector<1x256xf32>, vector<1x256xf32>, vector<1x256xf32> -> vector<4x256xf32>
    %83 = tpu.iota {dimensions = array<i32: 1>} : vector<1x256xi32>
    %c16_i32 = arith.constant 16 : i32
    %c0_i32 = arith.constant 0 : i32
    %84 = arith.cmpi eq, %c16_i32, %c0_i32 : i32
    %c1_i32 = arith.constant 1 : i32
    %85 = arith.select %84, %c1_i32, %c16_i32 : i32
    %86 = vector.broadcast %85 : i32 to vector<1x256xi32>
    %87 = arith.remsi %83, %86 : vector<1x256xi32>
    %c0_i32_39 = arith.constant 0 : i32
    %88 = vector.broadcast %c0_i32_39 : i32 to vector<1x256xi32>
    %89 = arith.cmpi ne, %87, %88 : vector<1x256xi32>
    %c0_i32_40 = arith.constant 0 : i32
    %90 = vector.broadcast %c0_i32_40 : i32 to vector<1x256xi32>
    %91 = arith.cmpi slt, %87, %90 : vector<1x256xi32>
    %c0_i32_41 = arith.constant 0 : i32
    %92 = arith.cmpi slt, %85, %c0_i32_41 : i32
    %93 = vector.broadcast %92 : i1 to vector<1x256xi1>
    %94 = vector.broadcast %93 : vector<1x256xi1> to vector<1x256xi1>
    %95 = arith.xori %91, %94 : vector<1x256xi1>
    %96 = arith.andi %95, %89 : vector<1x256xi1>
    %97 = vector.broadcast %85 : i32 to vector<1x256xi32>
    %98 = arith.addi %87, %97 : vector<1x256xi32>
    %99 = arith.select %96, %98, %87 : vector<1x256xi1>, vector<1x256xi32>
    %c48_i32 = arith.constant 48 : i32
    %100 = vector.broadcast %c48_i32 : i32 to vector<1x256xi32>
    %101 = arith.cmpi sge, %83, %100 : vector<1x256xi32>
    %c304_i32 = arith.constant 304 : i32
    %102 = vector.broadcast %c304_i32 : i32 to vector<1x256xi32>
    %103 = arith.cmpi slt, %83, %102 : vector<1x256xi32>
    %104 = arith.andi %101, %103 : vector<1x256xi1>
    %c32_i32 = arith.constant 32 : i32
    %105 = vector.broadcast %c32_i32 : i32 to vector<1x256xi32>
    %106 = arith.cmpi sge, %83, %105 : vector<1x256xi32>
    %c288_i32 = arith.constant 288 : i32
    %107 = vector.broadcast %c288_i32 : i32 to vector<1x256xi32>
    %108 = arith.cmpi slt, %83, %107 : vector<1x256xi32>
    %109 = arith.andi %106, %108 : vector<1x256xi1>
    %c16_i32_42 = arith.constant 16 : i32
    %110 = vector.broadcast %c16_i32_42 : i32 to vector<1x256xi32>
    %111 = arith.cmpi sge, %83, %110 : vector<1x256xi32>
    %c272_i32 = arith.constant 272 : i32
    %112 = vector.broadcast %c272_i32 : i32 to vector<1x256xi32>
    %113 = arith.cmpi slt, %83, %112 : vector<1x256xi32>
    %114 = arith.andi %111, %113 : vector<1x256xi1>
    %c0_i32_43 = arith.constant 0 : i32
    %115 = vector.broadcast %c0_i32_43 : i32 to vector<1x256xi32>
    %116 = arith.cmpi sge, %83, %115 : vector<1x256xi32>
    %c256_i32 = arith.constant 256 : i32
    %117 = vector.broadcast %c256_i32 : i32 to vector<1x256xi32>
    %118 = arith.cmpi slt, %83, %117 : vector<1x256xi32>
    %119 = arith.andi %116, %118 : vector<1x256xi1>
    %c-16_i32 = arith.constant -16 : i32
    %120 = vector.broadcast %c-16_i32 : i32 to vector<1x256xi32>
    %121 = arith.cmpi sge, %83, %120 : vector<1x256xi32>
    %c240_i32 = arith.constant 240 : i32
    %122 = vector.broadcast %c240_i32 : i32 to vector<1x256xi32>
    %123 = arith.cmpi slt, %83, %122 : vector<1x256xi32>
    %124 = arith.andi %121, %123 : vector<1x256xi1>
    %c-32_i32 = arith.constant -32 : i32
    %125 = vector.broadcast %c-32_i32 : i32 to vector<1x256xi32>
    %126 = arith.cmpi sge, %83, %125 : vector<1x256xi32>
    %c224_i32 = arith.constant 224 : i32
    %127 = vector.broadcast %c224_i32 : i32 to vector<1x256xi32>
    %128 = arith.cmpi slt, %83, %127 : vector<1x256xi32>
    %129 = arith.andi %126, %128 : vector<1x256xi1>
    %c-48_i32 = arith.constant -48 : i32
    %130 = vector.broadcast %c-48_i32 : i32 to vector<1x256xi32>
    %131 = arith.cmpi sge, %83, %130 : vector<1x256xi32>
    %c208_i32 = arith.constant 208 : i32
    %132 = vector.broadcast %c208_i32 : i32 to vector<1x256xi32>
    %133 = arith.cmpi slt, %83, %132 : vector<1x256xi32>
    %134 = arith.andi %131, %133 : vector<1x256xi1>
    %c3_i32 = arith.constant 3 : i32
    %135 = vector.broadcast %c3_i32 : i32 to vector<1x256xi32>
    %136 = arith.cmpi sge, %99, %135 : vector<1x256xi32>
    %c19_i32 = arith.constant 19 : i32
    %137 = vector.broadcast %c19_i32 : i32 to vector<1x256xi32>
    %138 = arith.cmpi slt, %99, %137 : vector<1x256xi32>
    %139 = arith.andi %136, %138 : vector<1x256xi1>
    %c2_i32 = arith.constant 2 : i32
    %140 = vector.broadcast %c2_i32 : i32 to vector<1x256xi32>
    %141 = arith.cmpi sge, %99, %140 : vector<1x256xi32>
    %c18_i32 = arith.constant 18 : i32
    %142 = vector.broadcast %c18_i32 : i32 to vector<1x256xi32>
    %143 = arith.cmpi slt, %99, %142 : vector<1x256xi32>
    %144 = arith.andi %141, %143 : vector<1x256xi1>
    %c1_i32_44 = arith.constant 1 : i32
    %145 = vector.broadcast %c1_i32_44 : i32 to vector<1x256xi32>
    %146 = arith.cmpi sge, %99, %145 : vector<1x256xi32>
    %c17_i32 = arith.constant 17 : i32
    %147 = vector.broadcast %c17_i32 : i32 to vector<1x256xi32>
    %148 = arith.cmpi slt, %99, %147 : vector<1x256xi32>
    %149 = arith.andi %146, %148 : vector<1x256xi1>
    %c0_i32_45 = arith.constant 0 : i32
    %150 = vector.broadcast %c0_i32_45 : i32 to vector<1x256xi32>
    %151 = arith.cmpi sge, %99, %150 : vector<1x256xi32>
    %c16_i32_46 = arith.constant 16 : i32
    %152 = vector.broadcast %c16_i32_46 : i32 to vector<1x256xi32>
    %153 = arith.cmpi slt, %99, %152 : vector<1x256xi32>
    %154 = arith.andi %151, %153 : vector<1x256xi1>
    %c-1_i32 = arith.constant -1 : i32
    %155 = vector.broadcast %c-1_i32 : i32 to vector<1x256xi32>
    %156 = arith.cmpi sge, %99, %155 : vector<1x256xi32>
    %c15_i32 = arith.constant 15 : i32
    %157 = vector.broadcast %c15_i32 : i32 to vector<1x256xi32>
    %158 = arith.cmpi slt, %99, %157 : vector<1x256xi32>
    %159 = arith.andi %156, %158 : vector<1x256xi1>
    %c-2_i32 = arith.constant -2 : i32
    %160 = vector.broadcast %c-2_i32 : i32 to vector<1x256xi32>
    %161 = arith.cmpi sge, %99, %160 : vector<1x256xi32>
    %c14_i32 = arith.constant 14 : i32
    %162 = vector.broadcast %c14_i32 : i32 to vector<1x256xi32>
    %163 = arith.cmpi slt, %99, %162 : vector<1x256xi32>
    %164 = arith.andi %161, %163 : vector<1x256xi1>
    %c-3_i32 = arith.constant -3 : i32
    %165 = vector.broadcast %c-3_i32 : i32 to vector<1x256xi32>
    %166 = arith.cmpi sge, %99, %165 : vector<1x256xi32>
    %c13_i32 = arith.constant 13 : i32
    %167 = vector.broadcast %c13_i32 : i32 to vector<1x256xi32>
    %168 = arith.cmpi slt, %99, %167 : vector<1x256xi32>
    %169 = arith.andi %166, %168 : vector<1x256xi1>
    %170 = tpu.iota {dimensions = array<i32: 0>} : vector<4x1xi32>
    %c2_i32_47 = arith.constant 2 : i32
    %171 = vector.broadcast %c2_i32_47 : i32 to vector<4x1xi32>
    %172 = arith.cmpi sge, %170, %171 : vector<4x1xi32>
    %c51_i32 = arith.constant 51 : i32
    %173 = tpu.dynamic_rotate %82 by %c51_i32 dim 1 : vector<4x256xf32>, i32 -> vector<4x256xf32>
    %c0_48 = arith.constant 0 : index
    %174 = memref.load %arg1[%c0_48] : memref<98xf32, #tpu.memory_space<smem>>
    %c49 = arith.constant 49 : index
    %175 = memref.load %arg1[%c49] : memref<98xf32, #tpu.memory_space<smem>>
    %176 = vector.broadcast %175 : f32 to vector<4x1xf32>
    %177 = vector.broadcast %174 : f32 to vector<4x1xf32>
    %178 = arith.select %172, %176, %177 : vector<4x1xi1>, vector<4x1xf32>
    %179 = vector.broadcast %178 : vector<4x1xf32> to vector<4x256xf32>
    %180 = arith.mulf %179, %173 : vector<4x256xf32>
    %cst_49 = arith.constant 0.000000e+00 : f32
    %181 = vector.shape_cast %104 : vector<1x256xi1> to vector<1x256xi1>
    %182 = vector.broadcast %181 : vector<1x256xi1> to vector<4x256xi1>
    %183 = vector.broadcast %cst_49 : f32 to vector<4x256xf32>
    %184 = arith.select %182, %180, %183 : vector<4x256xi1>, vector<4x256xf32>
    %c35_i32 = arith.constant 35 : i32
    %185 = tpu.dynamic_rotate %82 by %c35_i32 dim 1 : vector<4x256xf32>, i32 -> vector<4x256xf32>
    %c7 = arith.constant 7 : index
    %186 = memref.load %arg1[%c7] : memref<98xf32, #tpu.memory_space<smem>>
    %c56 = arith.constant 56 : index
    %187 = memref.load %arg1[%c56] : memref<98xf32, #tpu.memory_space<smem>>
    %188 = vector.broadcast %187 : f32 to vector<4x1xf32>
    %189 = vector.broadcast %186 : f32 to vector<4x1xf32>
    %190 = arith.select %172, %188, %189 : vector<4x1xi1>, vector<4x1xf32>
    %191 = vector.broadcast %190 : vector<4x1xf32> to vector<4x256xf32>
    %192 = arith.mulf %191, %185 : vector<4x256xf32>
    %cst_50 = arith.constant 0.000000e+00 : f32
    %193 = vector.shape_cast %109 : vector<1x256xi1> to vector<1x256xi1>
    %194 = vector.broadcast %193 : vector<1x256xi1> to vector<4x256xi1>
    %195 = vector.broadcast %cst_50 : f32 to vector<4x256xf32>
    %196 = arith.select %194, %192, %195 : vector<4x256xi1>, vector<4x256xf32>
    %197 = arith.addf %184, %196 : vector<4x256xf32>
    %c19_i32_51 = arith.constant 19 : i32
    %198 = tpu.dynamic_rotate %82 by %c19_i32_51 dim 1 : vector<4x256xf32>, i32 -> vector<4x256xf32>
    %c14 = arith.constant 14 : index
    %199 = memref.load %arg1[%c14] : memref<98xf32, #tpu.memory_space<smem>>
    %c63 = arith.constant 63 : index
    %200 = memref.load %arg1[%c63] : memref<98xf32, #tpu.memory_space<smem>>
    %201 = vector.broadcast %200 : f32 to vector<4x1xf32>
    %202 = vector.broadcast %199 : f32 to vector<4x1xf32>
    %203 = arith.select %172, %201, %202 : vector<4x1xi1>, vector<4x1xf32>
    %204 = vector.broadcast %203 : vector<4x1xf32> to vector<4x256xf32>
    %205 = arith.mulf %204, %198 : vector<4x256xf32>
    %cst_52 = arith.constant 0.000000e+00 : f32
    %206 = vector.shape_cast %114 : vector<1x256xi1> to vector<1x256xi1>
    %207 = vector.broadcast %206 : vector<1x256xi1> to vector<4x256xi1>
    %208 = vector.broadcast %cst_52 : f32 to vector<4x256xf32>
    %209 = arith.select %207, %205, %208 : vector<4x256xi1>, vector<4x256xf32>
    %210 = arith.addf %197, %209 : vector<4x256xf32>
    %c3_i32_53 = arith.constant 3 : i32
    %211 = tpu.dynamic_rotate %82 by %c3_i32_53 dim 1 : vector<4x256xf32>, i32 -> vector<4x256xf32>
    %c21 = arith.constant 21 : index
    %212 = memref.load %arg1[%c21] : memref<98xf32, #tpu.memory_space<smem>>
    %c70 = arith.constant 70 : index
    %213 = memref.load %arg1[%c70] : memref<98xf32, #tpu.memory_space<smem>>
    %214 = vector.broadcast %213 : f32 to vector<4x1xf32>
    %215 = vector.broadcast %212 : f32 to vector<4x1xf32>
    %216 = arith.select %172, %214, %215 : vector<4x1xi1>, vector<4x1xf32>
    %217 = vector.broadcast %216 : vector<4x1xf32> to vector<4x256xf32>
    %218 = arith.mulf %217, %211 : vector<4x256xf32>
    %cst_54 = arith.constant 0.000000e+00 : f32
    %219 = vector.shape_cast %119 : vector<1x256xi1> to vector<1x256xi1>
    %220 = vector.broadcast %219 : vector<1x256xi1> to vector<4x256xi1>
    %221 = vector.broadcast %cst_54 : f32 to vector<4x256xf32>
    %222 = arith.select %220, %218, %221 : vector<4x256xi1>, vector<4x256xf32>
    %223 = arith.addf %210, %222 : vector<4x256xf32>
    %c243_i32 = arith.constant 243 : i32
    %224 = tpu.dynamic_rotate %82 by %c243_i32 dim 1 : vector<4x256xf32>, i32 -> vector<4x256xf32>
    %c28 = arith.constant 28 : index
    %225 = memref.load %arg1[%c28] : memref<98xf32, #tpu.memory_space<smem>>
    %c77 = arith.constant 77 : index
    %226 = memref.load %arg1[%c77] : memref<98xf32, #tpu.memory_space<smem>>
    %227 = vector.broadcast %226 : f32 to vector<4x1xf32>
    %228 = vector.broadcast %225 : f32 to vector<4x1xf32>
    %229 = arith.select %172, %227, %228 : vector<4x1xi1>, vector<4x1xf32>
    %230 = vector.broadcast %229 : vector<4x1xf32> to vector<4x256xf32>
    %231 = arith.mulf %230, %224 : vector<4x256xf32>
    %cst_55 = arith.constant 0.000000e+00 : f32
    %232 = vector.shape_cast %124 : vector<1x256xi1> to vector<1x256xi1>
    %233 = vector.broadcast %232 : vector<1x256xi1> to vector<4x256xi1>
    %234 = vector.broadcast %cst_55 : f32 to vector<4x256xf32>
    %235 = arith.select %233, %231, %234 : vector<4x256xi1>, vector<4x256xf32>
    %236 = arith.addf %223, %235 : vector<4x256xf32>
    %c227_i32 = arith.constant 227 : i32
    %237 = tpu.dynamic_rotate %82 by %c227_i32 dim 1 : vector<4x256xf32>, i32 -> vector<4x256xf32>
    %c35 = arith.constant 35 : index
    %238 = memref.load %arg1[%c35] : memref<98xf32, #tpu.memory_space<smem>>
    %c84 = arith.constant 84 : index
    %239 = memref.load %arg1[%c84] : memref<98xf32, #tpu.memory_space<smem>>
    %240 = vector.broadcast %239 : f32 to vector<4x1xf32>
    %241 = vector.broadcast %238 : f32 to vector<4x1xf32>
    %242 = arith.select %172, %240, %241 : vector<4x1xi1>, vector<4x1xf32>
    %243 = vector.broadcast %242 : vector<4x1xf32> to vector<4x256xf32>
    %244 = arith.mulf %243, %237 : vector<4x256xf32>
    %cst_56 = arith.constant 0.000000e+00 : f32
    %245 = vector.shape_cast %129 : vector<1x256xi1> to vector<1x256xi1>
    %246 = vector.broadcast %245 : vector<1x256xi1> to vector<4x256xi1>
    %247 = vector.broadcast %cst_56 : f32 to vector<4x256xf32>
    %248 = arith.select %246, %244, %247 : vector<4x256xi1>, vector<4x256xf32>
    %249 = arith.addf %236, %248 : vector<4x256xf32>
    %c211_i32 = arith.constant 211 : i32
    %250 = tpu.dynamic_rotate %82 by %c211_i32 dim 1 : vector<4x256xf32>, i32 -> vector<4x256xf32>
    %c42 = arith.constant 42 : index
    %251 = memref.load %arg1[%c42] : memref<98xf32, #tpu.memory_space<smem>>
    %c91 = arith.constant 91 : index
    %252 = memref.load %arg1[%c91] : memref<98xf32, #tpu.memory_space<smem>>
    %253 = vector.broadcast %252 : f32 to vector<4x1xf32>
    %254 = vector.broadcast %251 : f32 to vector<4x1xf32>
    %255 = arith.select %172, %253, %254 : vector<4x1xi1>, vector<4x1xf32>
    %256 = vector.broadcast %255 : vector<4x1xf32> to vector<4x256xf32>
    %257 = arith.mulf %256, %250 : vector<4x256xf32>
    %cst_57 = arith.constant 0.000000e+00 : f32
    %258 = vector.shape_cast %134 : vector<1x256xi1> to vector<1x256xi1>
    %259 = vector.broadcast %258 : vector<1x256xi1> to vector<4x256xi1>
    %260 = vector.broadcast %cst_57 : f32 to vector<4x256xf32>
    %261 = arith.select %259, %257, %260 : vector<4x256xi1>, vector<4x256xf32>
    %262 = arith.addf %249, %261 : vector<4x256xf32>
    %cst_58 = arith.constant 0.000000e+00 : f32
    %263 = vector.shape_cast %139 : vector<1x256xi1> to vector<1x256xi1>
    %264 = vector.broadcast %263 : vector<1x256xi1> to vector<4x256xi1>
    %265 = vector.broadcast %cst_58 : f32 to vector<4x256xf32>
    %266 = arith.select %264, %262, %265 : vector<4x256xi1>, vector<4x256xf32>
    %c50_i32 = arith.constant 50 : i32
    %267 = tpu.dynamic_rotate %82 by %c50_i32 dim 1 : vector<4x256xf32>, i32 -> vector<4x256xf32>
    %c1_59 = arith.constant 1 : index
    %268 = memref.load %arg1[%c1_59] : memref<98xf32, #tpu.memory_space<smem>>
    %c50 = arith.constant 50 : index
    %269 = memref.load %arg1[%c50] : memref<98xf32, #tpu.memory_space<smem>>
    %270 = vector.broadcast %269 : f32 to vector<4x1xf32>
    %271 = vector.broadcast %268 : f32 to vector<4x1xf32>
    %272 = arith.select %172, %270, %271 : vector<4x1xi1>, vector<4x1xf32>
    %273 = vector.broadcast %272 : vector<4x1xf32> to vector<4x256xf32>
    %274 = arith.mulf %273, %267 : vector<4x256xf32>
    %cst_60 = arith.constant 0.000000e+00 : f32
    %275 = vector.shape_cast %104 : vector<1x256xi1> to vector<1x256xi1>
    %276 = vector.broadcast %275 : vector<1x256xi1> to vector<4x256xi1>
    %277 = vector.broadcast %cst_60 : f32 to vector<4x256xf32>
    %278 = arith.select %276, %274, %277 : vector<4x256xi1>, vector<4x256xf32>
    %c34_i32 = arith.constant 34 : i32
    %279 = tpu.dynamic_rotate %82 by %c34_i32 dim 1 : vector<4x256xf32>, i32 -> vector<4x256xf32>
    %c8 = arith.constant 8 : index
    %280 = memref.load %arg1[%c8] : memref<98xf32, #tpu.memory_space<smem>>
    %c57 = arith.constant 57 : index
    %281 = memref.load %arg1[%c57] : memref<98xf32, #tpu.memory_space<smem>>
    %282 = vector.broadcast %281 : f32 to vector<4x1xf32>
    %283 = vector.broadcast %280 : f32 to vector<4x1xf32>
    %284 = arith.select %172, %282, %283 : vector<4x1xi1>, vector<4x1xf32>
    %285 = vector.broadcast %284 : vector<4x1xf32> to vector<4x256xf32>
    %286 = arith.mulf %285, %279 : vector<4x256xf32>
    %cst_61 = arith.constant 0.000000e+00 : f32
    %287 = vector.shape_cast %109 : vector<1x256xi1> to vector<1x256xi1>
    %288 = vector.broadcast %287 : vector<1x256xi1> to vector<4x256xi1>
    %289 = vector.broadcast %cst_61 : f32 to vector<4x256xf32>
    %290 = arith.select %288, %286, %289 : vector<4x256xi1>, vector<4x256xf32>
    %291 = arith.addf %278, %290 : vector<4x256xf32>
    %c18_i32_62 = arith.constant 18 : i32
    %292 = tpu.dynamic_rotate %82 by %c18_i32_62 dim 1 : vector<4x256xf32>, i32 -> vector<4x256xf32>
    %c15 = arith.constant 15 : index
    %293 = memref.load %arg1[%c15] : memref<98xf32, #tpu.memory_space<smem>>
    %c64 = arith.constant 64 : index
    %294 = memref.load %arg1[%c64] : memref<98xf32, #tpu.memory_space<smem>>
    %295 = vector.broadcast %294 : f32 to vector<4x1xf32>
    %296 = vector.broadcast %293 : f32 to vector<4x1xf32>
    %297 = arith.select %172, %295, %296 : vector<4x1xi1>, vector<4x1xf32>
    %298 = vector.broadcast %297 : vector<4x1xf32> to vector<4x256xf32>
    %299 = arith.mulf %298, %292 : vector<4x256xf32>
    %cst_63 = arith.constant 0.000000e+00 : f32
    %300 = vector.shape_cast %114 : vector<1x256xi1> to vector<1x256xi1>
    %301 = vector.broadcast %300 : vector<1x256xi1> to vector<4x256xi1>
    %302 = vector.broadcast %cst_63 : f32 to vector<4x256xf32>
    %303 = arith.select %301, %299, %302 : vector<4x256xi1>, vector<4x256xf32>
    %304 = arith.addf %291, %303 : vector<4x256xf32>
    %c2_i32_64 = arith.constant 2 : i32
    %305 = tpu.dynamic_rotate %82 by %c2_i32_64 dim 1 : vector<4x256xf32>, i32 -> vector<4x256xf32>
    %c22 = arith.constant 22 : index
    %306 = memref.load %arg1[%c22] : memref<98xf32, #tpu.memory_space<smem>>
    %c71 = arith.constant 71 : index
    %307 = memref.load %arg1[%c71] : memref<98xf32, #tpu.memory_space<smem>>
    %308 = vector.broadcast %307 : f32 to vector<4x1xf32>
    %309 = vector.broadcast %306 : f32 to vector<4x1xf32>
    %310 = arith.select %172, %308, %309 : vector<4x1xi1>, vector<4x1xf32>
    %311 = vector.broadcast %310 : vector<4x1xf32> to vector<4x256xf32>
    %312 = arith.mulf %311, %305 : vector<4x256xf32>
    %cst_65 = arith.constant 0.000000e+00 : f32
    %313 = vector.shape_cast %119 : vector<1x256xi1> to vector<1x256xi1>
    %314 = vector.broadcast %313 : vector<1x256xi1> to vector<4x256xi1>
    %315 = vector.broadcast %cst_65 : f32 to vector<4x256xf32>
    %316 = arith.select %314, %312, %315 : vector<4x256xi1>, vector<4x256xf32>
    %317 = arith.addf %304, %316 : vector<4x256xf32>
    %c242_i32 = arith.constant 242 : i32
    %318 = tpu.dynamic_rotate %82 by %c242_i32 dim 1 : vector<4x256xf32>, i32 -> vector<4x256xf32>
    %c29 = arith.constant 29 : index
    %319 = memref.load %arg1[%c29] : memref<98xf32, #tpu.memory_space<smem>>
    %c78 = arith.constant 78 : index
    %320 = memref.load %arg1[%c78] : memref<98xf32, #tpu.memory_space<smem>>
    %321 = vector.broadcast %320 : f32 to vector<4x1xf32>
    %322 = vector.broadcast %319 : f32 to vector<4x1xf32>
    %323 = arith.select %172, %321, %322 : vector<4x1xi1>, vector<4x1xf32>
    %324 = vector.broadcast %323 : vector<4x1xf32> to vector<4x256xf32>
    %325 = arith.mulf %324, %318 : vector<4x256xf32>
    %cst_66 = arith.constant 0.000000e+00 : f32
    %326 = vector.shape_cast %124 : vector<1x256xi1> to vector<1x256xi1>
    %327 = vector.broadcast %326 : vector<1x256xi1> to vector<4x256xi1>
    %328 = vector.broadcast %cst_66 : f32 to vector<4x256xf32>
    %329 = arith.select %327, %325, %328 : vector<4x256xi1>, vector<4x256xf32>
    %330 = arith.addf %317, %329 : vector<4x256xf32>
    %c226_i32 = arith.constant 226 : i32
    %331 = tpu.dynamic_rotate %82 by %c226_i32 dim 1 : vector<4x256xf32>, i32 -> vector<4x256xf32>
    %c36 = arith.constant 36 : index
    %332 = memref.load %arg1[%c36] : memref<98xf32, #tpu.memory_space<smem>>
    %c85 = arith.constant 85 : index
    %333 = memref.load %arg1[%c85] : memref<98xf32, #tpu.memory_space<smem>>
    %334 = vector.broadcast %333 : f32 to vector<4x1xf32>
    %335 = vector.broadcast %332 : f32 to vector<4x1xf32>
    %336 = arith.select %172, %334, %335 : vector<4x1xi1>, vector<4x1xf32>
    %337 = vector.broadcast %336 : vector<4x1xf32> to vector<4x256xf32>
    %338 = arith.mulf %337, %331 : vector<4x256xf32>
    %cst_67 = arith.constant 0.000000e+00 : f32
    %339 = vector.shape_cast %129 : vector<1x256xi1> to vector<1x256xi1>
    %340 = vector.broadcast %339 : vector<1x256xi1> to vector<4x256xi1>
    %341 = vector.broadcast %cst_67 : f32 to vector<4x256xf32>
    %342 = arith.select %340, %338, %341 : vector<4x256xi1>, vector<4x256xf32>
    %343 = arith.addf %330, %342 : vector<4x256xf32>
    %c210_i32 = arith.constant 210 : i32
    %344 = tpu.dynamic_rotate %82 by %c210_i32 dim 1 : vector<4x256xf32>, i32 -> vector<4x256xf32>
    %c43 = arith.constant 43 : index
    %345 = memref.load %arg1[%c43] : memref<98xf32, #tpu.memory_space<smem>>
    %c92 = arith.constant 92 : index
    %346 = memref.load %arg1[%c92] : memref<98xf32, #tpu.memory_space<smem>>
    %347 = vector.broadcast %346 : f32 to vector<4x1xf32>
    %348 = vector.broadcast %345 : f32 to vector<4x1xf32>
    %349 = arith.select %172, %347, %348 : vector<4x1xi1>, vector<4x1xf32>
    %350 = vector.broadcast %349 : vector<4x1xf32> to vector<4x256xf32>
    %351 = arith.mulf %350, %344 : vector<4x256xf32>
    %cst_68 = arith.constant 0.000000e+00 : f32
    %352 = vector.shape_cast %134 : vector<1x256xi1> to vector<1x256xi1>
    %353 = vector.broadcast %352 : vector<1x256xi1> to vector<4x256xi1>
    %354 = vector.broadcast %cst_68 : f32 to vector<4x256xf32>
    %355 = arith.select %353, %351, %354 : vector<4x256xi1>, vector<4x256xf32>
    %356 = arith.addf %343, %355 : vector<4x256xf32>
    %cst_69 = arith.constant 0.000000e+00 : f32
    %357 = vector.shape_cast %144 : vector<1x256xi1> to vector<1x256xi1>
    %358 = vector.broadcast %357 : vector<1x256xi1> to vector<4x256xi1>
    %359 = vector.broadcast %cst_69 : f32 to vector<4x256xf32>
    %360 = arith.select %358, %356, %359 : vector<4x256xi1>, vector<4x256xf32>
    %361 = arith.addf %266, %360 : vector<4x256xf32>
    %c49_i32 = arith.constant 49 : i32
    %362 = tpu.dynamic_rotate %82 by %c49_i32 dim 1 : vector<4x256xf32>, i32 -> vector<4x256xf32>
    %c2 = arith.constant 2 : index
    %363 = memref.load %arg1[%c2] : memref<98xf32, #tpu.memory_space<smem>>
    %c51 = arith.constant 51 : index
    %364 = memref.load %arg1[%c51] : memref<98xf32, #tpu.memory_space<smem>>
    %365 = vector.broadcast %364 : f32 to vector<4x1xf32>
    %366 = vector.broadcast %363 : f32 to vector<4x1xf32>
    %367 = arith.select %172, %365, %366 : vector<4x1xi1>, vector<4x1xf32>
    %368 = vector.broadcast %367 : vector<4x1xf32> to vector<4x256xf32>
    %369 = arith.mulf %368, %362 : vector<4x256xf32>
    %cst_70 = arith.constant 0.000000e+00 : f32
    %370 = vector.shape_cast %104 : vector<1x256xi1> to vector<1x256xi1>
    %371 = vector.broadcast %370 : vector<1x256xi1> to vector<4x256xi1>
    %372 = vector.broadcast %cst_70 : f32 to vector<4x256xf32>
    %373 = arith.select %371, %369, %372 : vector<4x256xi1>, vector<4x256xf32>
    %c33_i32 = arith.constant 33 : i32
    %374 = tpu.dynamic_rotate %82 by %c33_i32 dim 1 : vector<4x256xf32>, i32 -> vector<4x256xf32>
    %c9 = arith.constant 9 : index
    %375 = memref.load %arg1[%c9] : memref<98xf32, #tpu.memory_space<smem>>
    %c58 = arith.constant 58 : index
    %376 = memref.load %arg1[%c58] : memref<98xf32, #tpu.memory_space<smem>>
    %377 = vector.broadcast %376 : f32 to vector<4x1xf32>
    %378 = vector.broadcast %375 : f32 to vector<4x1xf32>
    %379 = arith.select %172, %377, %378 : vector<4x1xi1>, vector<4x1xf32>
    %380 = vector.broadcast %379 : vector<4x1xf32> to vector<4x256xf32>
    %381 = arith.mulf %380, %374 : vector<4x256xf32>
    %cst_71 = arith.constant 0.000000e+00 : f32
    %382 = vector.shape_cast %109 : vector<1x256xi1> to vector<1x256xi1>
    %383 = vector.broadcast %382 : vector<1x256xi1> to vector<4x256xi1>
    %384 = vector.broadcast %cst_71 : f32 to vector<4x256xf32>
    %385 = arith.select %383, %381, %384 : vector<4x256xi1>, vector<4x256xf32>
    %386 = arith.addf %373, %385 : vector<4x256xf32>
    %c17_i32_72 = arith.constant 17 : i32
    %387 = tpu.dynamic_rotate %82 by %c17_i32_72 dim 1 : vector<4x256xf32>, i32 -> vector<4x256xf32>
    %c16 = arith.constant 16 : index
    %388 = memref.load %arg1[%c16] : memref<98xf32, #tpu.memory_space<smem>>
    %c65 = arith.constant 65 : index
    %389 = memref.load %arg1[%c65] : memref<98xf32, #tpu.memory_space<smem>>
    %390 = vector.broadcast %389 : f32 to vector<4x1xf32>
    %391 = vector.broadcast %388 : f32 to vector<4x1xf32>
    %392 = arith.select %172, %390, %391 : vector<4x1xi1>, vector<4x1xf32>
    %393 = vector.broadcast %392 : vector<4x1xf32> to vector<4x256xf32>
    %394 = arith.mulf %393, %387 : vector<4x256xf32>
    %cst_73 = arith.constant 0.000000e+00 : f32
    %395 = vector.shape_cast %114 : vector<1x256xi1> to vector<1x256xi1>
    %396 = vector.broadcast %395 : vector<1x256xi1> to vector<4x256xi1>
    %397 = vector.broadcast %cst_73 : f32 to vector<4x256xf32>
    %398 = arith.select %396, %394, %397 : vector<4x256xi1>, vector<4x256xf32>
    %399 = arith.addf %386, %398 : vector<4x256xf32>
    %c1_i32_74 = arith.constant 1 : i32
    %400 = tpu.dynamic_rotate %82 by %c1_i32_74 dim 1 : vector<4x256xf32>, i32 -> vector<4x256xf32>
    %c23 = arith.constant 23 : index
    %401 = memref.load %arg1[%c23] : memref<98xf32, #tpu.memory_space<smem>>
    %c72 = arith.constant 72 : index
    %402 = memref.load %arg1[%c72] : memref<98xf32, #tpu.memory_space<smem>>
    %403 = vector.broadcast %402 : f32 to vector<4x1xf32>
    %404 = vector.broadcast %401 : f32 to vector<4x1xf32>
    %405 = arith.select %172, %403, %404 : vector<4x1xi1>, vector<4x1xf32>
    %406 = vector.broadcast %405 : vector<4x1xf32> to vector<4x256xf32>
    %407 = arith.mulf %406, %400 : vector<4x256xf32>
    %cst_75 = arith.constant 0.000000e+00 : f32
    %408 = vector.shape_cast %119 : vector<1x256xi1> to vector<1x256xi1>
    %409 = vector.broadcast %408 : vector<1x256xi1> to vector<4x256xi1>
    %410 = vector.broadcast %cst_75 : f32 to vector<4x256xf32>
    %411 = arith.select %409, %407, %410 : vector<4x256xi1>, vector<4x256xf32>
    %412 = arith.addf %399, %411 : vector<4x256xf32>
    %c241_i32 = arith.constant 241 : i32
    %413 = tpu.dynamic_rotate %82 by %c241_i32 dim 1 : vector<4x256xf32>, i32 -> vector<4x256xf32>
    %c30 = arith.constant 30 : index
    %414 = memref.load %arg1[%c30] : memref<98xf32, #tpu.memory_space<smem>>
    %c79 = arith.constant 79 : index
    %415 = memref.load %arg1[%c79] : memref<98xf32, #tpu.memory_space<smem>>
    %416 = vector.broadcast %415 : f32 to vector<4x1xf32>
    %417 = vector.broadcast %414 : f32 to vector<4x1xf32>
    %418 = arith.select %172, %416, %417 : vector<4x1xi1>, vector<4x1xf32>
    %419 = vector.broadcast %418 : vector<4x1xf32> to vector<4x256xf32>
    %420 = arith.mulf %419, %413 : vector<4x256xf32>
    %cst_76 = arith.constant 0.000000e+00 : f32
    %421 = vector.shape_cast %124 : vector<1x256xi1> to vector<1x256xi1>
    %422 = vector.broadcast %421 : vector<1x256xi1> to vector<4x256xi1>
    %423 = vector.broadcast %cst_76 : f32 to vector<4x256xf32>
    %424 = arith.select %422, %420, %423 : vector<4x256xi1>, vector<4x256xf32>
    %425 = arith.addf %412, %424 : vector<4x256xf32>
    %c225_i32 = arith.constant 225 : i32
    %426 = tpu.dynamic_rotate %82 by %c225_i32 dim 1 : vector<4x256xf32>, i32 -> vector<4x256xf32>
    %c37 = arith.constant 37 : index
    %427 = memref.load %arg1[%c37] : memref<98xf32, #tpu.memory_space<smem>>
    %c86 = arith.constant 86 : index
    %428 = memref.load %arg1[%c86] : memref<98xf32, #tpu.memory_space<smem>>
    %429 = vector.broadcast %428 : f32 to vector<4x1xf32>
    %430 = vector.broadcast %427 : f32 to vector<4x1xf32>
    %431 = arith.select %172, %429, %430 : vector<4x1xi1>, vector<4x1xf32>
    %432 = vector.broadcast %431 : vector<4x1xf32> to vector<4x256xf32>
    %433 = arith.mulf %432, %426 : vector<4x256xf32>
    %cst_77 = arith.constant 0.000000e+00 : f32
    %434 = vector.shape_cast %129 : vector<1x256xi1> to vector<1x256xi1>
    %435 = vector.broadcast %434 : vector<1x256xi1> to vector<4x256xi1>
    %436 = vector.broadcast %cst_77 : f32 to vector<4x256xf32>
    %437 = arith.select %435, %433, %436 : vector<4x256xi1>, vector<4x256xf32>
    %438 = arith.addf %425, %437 : vector<4x256xf32>
    %c209_i32 = arith.constant 209 : i32
    %439 = tpu.dynamic_rotate %82 by %c209_i32 dim 1 : vector<4x256xf32>, i32 -> vector<4x256xf32>
    %c44 = arith.constant 44 : index
    %440 = memref.load %arg1[%c44] : memref<98xf32, #tpu.memory_space<smem>>
    %c93 = arith.constant 93 : index
    %441 = memref.load %arg1[%c93] : memref<98xf32, #tpu.memory_space<smem>>
    %442 = vector.broadcast %441 : f32 to vector<4x1xf32>
    %443 = vector.broadcast %440 : f32 to vector<4x1xf32>
    %444 = arith.select %172, %442, %443 : vector<4x1xi1>, vector<4x1xf32>
    %445 = vector.broadcast %444 : vector<4x1xf32> to vector<4x256xf32>
    %446 = arith.mulf %445, %439 : vector<4x256xf32>
    %cst_78 = arith.constant 0.000000e+00 : f32
    %447 = vector.shape_cast %134 : vector<1x256xi1> to vector<1x256xi1>
    %448 = vector.broadcast %447 : vector<1x256xi1> to vector<4x256xi1>
    %449 = vector.broadcast %cst_78 : f32 to vector<4x256xf32>
    %450 = arith.select %448, %446, %449 : vector<4x256xi1>, vector<4x256xf32>
    %451 = arith.addf %438, %450 : vector<4x256xf32>
    %cst_79 = arith.constant 0.000000e+00 : f32
    %452 = vector.shape_cast %149 : vector<1x256xi1> to vector<1x256xi1>
    %453 = vector.broadcast %452 : vector<1x256xi1> to vector<4x256xi1>
    %454 = vector.broadcast %cst_79 : f32 to vector<4x256xf32>
    %455 = arith.select %453, %451, %454 : vector<4x256xi1>, vector<4x256xf32>
    %456 = arith.addf %361, %455 : vector<4x256xf32>
    %c48_i32_80 = arith.constant 48 : i32
    %457 = tpu.dynamic_rotate %82 by %c48_i32_80 dim 1 : vector<4x256xf32>, i32 -> vector<4x256xf32>
    %c3 = arith.constant 3 : index
    %458 = memref.load %arg1[%c3] : memref<98xf32, #tpu.memory_space<smem>>
    %c52 = arith.constant 52 : index
    %459 = memref.load %arg1[%c52] : memref<98xf32, #tpu.memory_space<smem>>
    %460 = vector.broadcast %459 : f32 to vector<4x1xf32>
    %461 = vector.broadcast %458 : f32 to vector<4x1xf32>
    %462 = arith.select %172, %460, %461 : vector<4x1xi1>, vector<4x1xf32>
    %463 = vector.broadcast %462 : vector<4x1xf32> to vector<4x256xf32>
    %464 = arith.mulf %463, %457 : vector<4x256xf32>
    %cst_81 = arith.constant 0.000000e+00 : f32
    %465 = vector.shape_cast %104 : vector<1x256xi1> to vector<1x256xi1>
    %466 = vector.broadcast %465 : vector<1x256xi1> to vector<4x256xi1>
    %467 = vector.broadcast %cst_81 : f32 to vector<4x256xf32>
    %468 = arith.select %466, %464, %467 : vector<4x256xi1>, vector<4x256xf32>
    %c32_i32_82 = arith.constant 32 : i32
    %469 = tpu.dynamic_rotate %82 by %c32_i32_82 dim 1 : vector<4x256xf32>, i32 -> vector<4x256xf32>
    %c10 = arith.constant 10 : index
    %470 = memref.load %arg1[%c10] : memref<98xf32, #tpu.memory_space<smem>>
    %c59 = arith.constant 59 : index
    %471 = memref.load %arg1[%c59] : memref<98xf32, #tpu.memory_space<smem>>
    %472 = vector.broadcast %471 : f32 to vector<4x1xf32>
    %473 = vector.broadcast %470 : f32 to vector<4x1xf32>
    %474 = arith.select %172, %472, %473 : vector<4x1xi1>, vector<4x1xf32>
    %475 = vector.broadcast %474 : vector<4x1xf32> to vector<4x256xf32>
    %476 = arith.mulf %475, %469 : vector<4x256xf32>
    %cst_83 = arith.constant 0.000000e+00 : f32
    %477 = vector.shape_cast %109 : vector<1x256xi1> to vector<1x256xi1>
    %478 = vector.broadcast %477 : vector<1x256xi1> to vector<4x256xi1>
    %479 = vector.broadcast %cst_83 : f32 to vector<4x256xf32>
    %480 = arith.select %478, %476, %479 : vector<4x256xi1>, vector<4x256xf32>
    %481 = arith.addf %468, %480 : vector<4x256xf32>
    %c16_i32_84 = arith.constant 16 : i32
    %482 = tpu.dynamic_rotate %82 by %c16_i32_84 dim 1 : vector<4x256xf32>, i32 -> vector<4x256xf32>
    %c17 = arith.constant 17 : index
    %483 = memref.load %arg1[%c17] : memref<98xf32, #tpu.memory_space<smem>>
    %c66 = arith.constant 66 : index
    %484 = memref.load %arg1[%c66] : memref<98xf32, #tpu.memory_space<smem>>
    %485 = vector.broadcast %484 : f32 to vector<4x1xf32>
    %486 = vector.broadcast %483 : f32 to vector<4x1xf32>
    %487 = arith.select %172, %485, %486 : vector<4x1xi1>, vector<4x1xf32>
    %488 = vector.broadcast %487 : vector<4x1xf32> to vector<4x256xf32>
    %489 = arith.mulf %488, %482 : vector<4x256xf32>
    %cst_85 = arith.constant 0.000000e+00 : f32
    %490 = vector.shape_cast %114 : vector<1x256xi1> to vector<1x256xi1>
    %491 = vector.broadcast %490 : vector<1x256xi1> to vector<4x256xi1>
    %492 = vector.broadcast %cst_85 : f32 to vector<4x256xf32>
    %493 = arith.select %491, %489, %492 : vector<4x256xi1>, vector<4x256xf32>
    %494 = arith.addf %481, %493 : vector<4x256xf32>
    %c24 = arith.constant 24 : index
    %495 = memref.load %arg1[%c24] : memref<98xf32, #tpu.memory_space<smem>>
    %c73 = arith.constant 73 : index
    %496 = memref.load %arg1[%c73] : memref<98xf32, #tpu.memory_space<smem>>
    %497 = vector.broadcast %496 : f32 to vector<4x1xf32>
    %498 = vector.broadcast %495 : f32 to vector<4x1xf32>
    %499 = arith.select %172, %497, %498 : vector<4x1xi1>, vector<4x1xf32>
    %500 = vector.broadcast %499 : vector<4x1xf32> to vector<4x256xf32>
    %501 = arith.mulf %500, %82 : vector<4x256xf32>
    %cst_86 = arith.constant 0.000000e+00 : f32
    %502 = vector.shape_cast %119 : vector<1x256xi1> to vector<1x256xi1>
    %503 = vector.broadcast %502 : vector<1x256xi1> to vector<4x256xi1>
    %504 = vector.broadcast %cst_86 : f32 to vector<4x256xf32>
    %505 = arith.select %503, %501, %504 : vector<4x256xi1>, vector<4x256xf32>
    %506 = arith.addf %494, %505 : vector<4x256xf32>
    %c240_i32_87 = arith.constant 240 : i32
    %507 = tpu.dynamic_rotate %82 by %c240_i32_87 dim 1 : vector<4x256xf32>, i32 -> vector<4x256xf32>
    %c31 = arith.constant 31 : index
    %508 = memref.load %arg1[%c31] : memref<98xf32, #tpu.memory_space<smem>>
    %c80 = arith.constant 80 : index
    %509 = memref.load %arg1[%c80] : memref<98xf32, #tpu.memory_space<smem>>
    %510 = vector.broadcast %509 : f32 to vector<4x1xf32>
    %511 = vector.broadcast %508 : f32 to vector<4x1xf32>
    %512 = arith.select %172, %510, %511 : vector<4x1xi1>, vector<4x1xf32>
    %513 = vector.broadcast %512 : vector<4x1xf32> to vector<4x256xf32>
    %514 = arith.mulf %513, %507 : vector<4x256xf32>
    %cst_88 = arith.constant 0.000000e+00 : f32
    %515 = vector.shape_cast %124 : vector<1x256xi1> to vector<1x256xi1>
    %516 = vector.broadcast %515 : vector<1x256xi1> to vector<4x256xi1>
    %517 = vector.broadcast %cst_88 : f32 to vector<4x256xf32>
    %518 = arith.select %516, %514, %517 : vector<4x256xi1>, vector<4x256xf32>
    %519 = arith.addf %506, %518 : vector<4x256xf32>
    %c224_i32_89 = arith.constant 224 : i32
    %520 = tpu.dynamic_rotate %82 by %c224_i32_89 dim 1 : vector<4x256xf32>, i32 -> vector<4x256xf32>
    %c38 = arith.constant 38 : index
    %521 = memref.load %arg1[%c38] : memref<98xf32, #tpu.memory_space<smem>>
    %c87 = arith.constant 87 : index
    %522 = memref.load %arg1[%c87] : memref<98xf32, #tpu.memory_space<smem>>
    %523 = vector.broadcast %522 : f32 to vector<4x1xf32>
    %524 = vector.broadcast %521 : f32 to vector<4x1xf32>
    %525 = arith.select %172, %523, %524 : vector<4x1xi1>, vector<4x1xf32>
    %526 = vector.broadcast %525 : vector<4x1xf32> to vector<4x256xf32>
    %527 = arith.mulf %526, %520 : vector<4x256xf32>
    %cst_90 = arith.constant 0.000000e+00 : f32
    %528 = vector.shape_cast %129 : vector<1x256xi1> to vector<1x256xi1>
    %529 = vector.broadcast %528 : vector<1x256xi1> to vector<4x256xi1>
    %530 = vector.broadcast %cst_90 : f32 to vector<4x256xf32>
    %531 = arith.select %529, %527, %530 : vector<4x256xi1>, vector<4x256xf32>
    %532 = arith.addf %519, %531 : vector<4x256xf32>
    %c208_i32_91 = arith.constant 208 : i32
    %533 = tpu.dynamic_rotate %82 by %c208_i32_91 dim 1 : vector<4x256xf32>, i32 -> vector<4x256xf32>
    %c45 = arith.constant 45 : index
    %534 = memref.load %arg1[%c45] : memref<98xf32, #tpu.memory_space<smem>>
    %c94 = arith.constant 94 : index
    %535 = memref.load %arg1[%c94] : memref<98xf32, #tpu.memory_space<smem>>
    %536 = vector.broadcast %535 : f32 to vector<4x1xf32>
    %537 = vector.broadcast %534 : f32 to vector<4x1xf32>
    %538 = arith.select %172, %536, %537 : vector<4x1xi1>, vector<4x1xf32>
    %539 = vector.broadcast %538 : vector<4x1xf32> to vector<4x256xf32>
    %540 = arith.mulf %539, %533 : vector<4x256xf32>
    %cst_92 = arith.constant 0.000000e+00 : f32
    %541 = vector.shape_cast %134 : vector<1x256xi1> to vector<1x256xi1>
    %542 = vector.broadcast %541 : vector<1x256xi1> to vector<4x256xi1>
    %543 = vector.broadcast %cst_92 : f32 to vector<4x256xf32>
    %544 = arith.select %542, %540, %543 : vector<4x256xi1>, vector<4x256xf32>
    %545 = arith.addf %532, %544 : vector<4x256xf32>
    %cst_93 = arith.constant 0.000000e+00 : f32
    %546 = vector.shape_cast %154 : vector<1x256xi1> to vector<1x256xi1>
    %547 = vector.broadcast %546 : vector<1x256xi1> to vector<4x256xi1>
    %548 = vector.broadcast %cst_93 : f32 to vector<4x256xf32>
    %549 = arith.select %547, %545, %548 : vector<4x256xi1>, vector<4x256xf32>
    %550 = arith.addf %456, %549 : vector<4x256xf32>
    %c47_i32 = arith.constant 47 : i32
    %551 = tpu.dynamic_rotate %82 by %c47_i32 dim 1 : vector<4x256xf32>, i32 -> vector<4x256xf32>
    %c4 = arith.constant 4 : index
    %552 = memref.load %arg1[%c4] : memref<98xf32, #tpu.memory_space<smem>>
    %c53 = arith.constant 53 : index
    %553 = memref.load %arg1[%c53] : memref<98xf32, #tpu.memory_space<smem>>
    %554 = vector.broadcast %553 : f32 to vector<4x1xf32>
    %555 = vector.broadcast %552 : f32 to vector<4x1xf32>
    %556 = arith.select %172, %554, %555 : vector<4x1xi1>, vector<4x1xf32>
    %557 = vector.broadcast %556 : vector<4x1xf32> to vector<4x256xf32>
    %558 = arith.mulf %557, %551 : vector<4x256xf32>
    %cst_94 = arith.constant 0.000000e+00 : f32
    %559 = vector.shape_cast %104 : vector<1x256xi1> to vector<1x256xi1>
    %560 = vector.broadcast %559 : vector<1x256xi1> to vector<4x256xi1>
    %561 = vector.broadcast %cst_94 : f32 to vector<4x256xf32>
    %562 = arith.select %560, %558, %561 : vector<4x256xi1>, vector<4x256xf32>
    %c31_i32 = arith.constant 31 : i32
    %563 = tpu.dynamic_rotate %82 by %c31_i32 dim 1 : vector<4x256xf32>, i32 -> vector<4x256xf32>
    %c11 = arith.constant 11 : index
    %564 = memref.load %arg1[%c11] : memref<98xf32, #tpu.memory_space<smem>>
    %c60 = arith.constant 60 : index
    %565 = memref.load %arg1[%c60] : memref<98xf32, #tpu.memory_space<smem>>
    %566 = vector.broadcast %565 : f32 to vector<4x1xf32>
    %567 = vector.broadcast %564 : f32 to vector<4x1xf32>
    %568 = arith.select %172, %566, %567 : vector<4x1xi1>, vector<4x1xf32>
    %569 = vector.broadcast %568 : vector<4x1xf32> to vector<4x256xf32>
    %570 = arith.mulf %569, %563 : vector<4x256xf32>
    %cst_95 = arith.constant 0.000000e+00 : f32
    %571 = vector.shape_cast %109 : vector<1x256xi1> to vector<1x256xi1>
    %572 = vector.broadcast %571 : vector<1x256xi1> to vector<4x256xi1>
    %573 = vector.broadcast %cst_95 : f32 to vector<4x256xf32>
    %574 = arith.select %572, %570, %573 : vector<4x256xi1>, vector<4x256xf32>
    %575 = arith.addf %562, %574 : vector<4x256xf32>
    %c15_i32_96 = arith.constant 15 : i32
    %576 = tpu.dynamic_rotate %82 by %c15_i32_96 dim 1 : vector<4x256xf32>, i32 -> vector<4x256xf32>
    %c18 = arith.constant 18 : index
    %577 = memref.load %arg1[%c18] : memref<98xf32, #tpu.memory_space<smem>>
    %c67 = arith.constant 67 : index
    %578 = memref.load %arg1[%c67] : memref<98xf32, #tpu.memory_space<smem>>
    %579 = vector.broadcast %578 : f32 to vector<4x1xf32>
    %580 = vector.broadcast %577 : f32 to vector<4x1xf32>
    %581 = arith.select %172, %579, %580 : vector<4x1xi1>, vector<4x1xf32>
    %582 = vector.broadcast %581 : vector<4x1xf32> to vector<4x256xf32>
    %583 = arith.mulf %582, %576 : vector<4x256xf32>
    %cst_97 = arith.constant 0.000000e+00 : f32
    %584 = vector.shape_cast %114 : vector<1x256xi1> to vector<1x256xi1>
    %585 = vector.broadcast %584 : vector<1x256xi1> to vector<4x256xi1>
    %586 = vector.broadcast %cst_97 : f32 to vector<4x256xf32>
    %587 = arith.select %585, %583, %586 : vector<4x256xi1>, vector<4x256xf32>
    %588 = arith.addf %575, %587 : vector<4x256xf32>
    %c255_i32 = arith.constant 255 : i32
    %589 = tpu.dynamic_rotate %82 by %c255_i32 dim 1 : vector<4x256xf32>, i32 -> vector<4x256xf32>
    %c25 = arith.constant 25 : index
    %590 = memref.load %arg1[%c25] : memref<98xf32, #tpu.memory_space<smem>>
    %c74 = arith.constant 74 : index
    %591 = memref.load %arg1[%c74] : memref<98xf32, #tpu.memory_space<smem>>
    %592 = vector.broadcast %591 : f32 to vector<4x1xf32>
    %593 = vector.broadcast %590 : f32 to vector<4x1xf32>
    %594 = arith.select %172, %592, %593 : vector<4x1xi1>, vector<4x1xf32>
    %595 = vector.broadcast %594 : vector<4x1xf32> to vector<4x256xf32>
    %596 = arith.mulf %595, %589 : vector<4x256xf32>
    %cst_98 = arith.constant 0.000000e+00 : f32
    %597 = vector.shape_cast %119 : vector<1x256xi1> to vector<1x256xi1>
    %598 = vector.broadcast %597 : vector<1x256xi1> to vector<4x256xi1>
    %599 = vector.broadcast %cst_98 : f32 to vector<4x256xf32>
    %600 = arith.select %598, %596, %599 : vector<4x256xi1>, vector<4x256xf32>
    %601 = arith.addf %588, %600 : vector<4x256xf32>
    %c239_i32 = arith.constant 239 : i32
    %602 = tpu.dynamic_rotate %82 by %c239_i32 dim 1 : vector<4x256xf32>, i32 -> vector<4x256xf32>
    %c32 = arith.constant 32 : index
    %603 = memref.load %arg1[%c32] : memref<98xf32, #tpu.memory_space<smem>>
    %c81 = arith.constant 81 : index
    %604 = memref.load %arg1[%c81] : memref<98xf32, #tpu.memory_space<smem>>
    %605 = vector.broadcast %604 : f32 to vector<4x1xf32>
    %606 = vector.broadcast %603 : f32 to vector<4x1xf32>
    %607 = arith.select %172, %605, %606 : vector<4x1xi1>, vector<4x1xf32>
    %608 = vector.broadcast %607 : vector<4x1xf32> to vector<4x256xf32>
    %609 = arith.mulf %608, %602 : vector<4x256xf32>
    %cst_99 = arith.constant 0.000000e+00 : f32
    %610 = vector.shape_cast %124 : vector<1x256xi1> to vector<1x256xi1>
    %611 = vector.broadcast %610 : vector<1x256xi1> to vector<4x256xi1>
    %612 = vector.broadcast %cst_99 : f32 to vector<4x256xf32>
    %613 = arith.select %611, %609, %612 : vector<4x256xi1>, vector<4x256xf32>
    %614 = arith.addf %601, %613 : vector<4x256xf32>
    %c223_i32 = arith.constant 223 : i32
    %615 = tpu.dynamic_rotate %82 by %c223_i32 dim 1 : vector<4x256xf32>, i32 -> vector<4x256xf32>
    %c39 = arith.constant 39 : index
    %616 = memref.load %arg1[%c39] : memref<98xf32, #tpu.memory_space<smem>>
    %c88 = arith.constant 88 : index
    %617 = memref.load %arg1[%c88] : memref<98xf32, #tpu.memory_space<smem>>
    %618 = vector.broadcast %617 : f32 to vector<4x1xf32>
    %619 = vector.broadcast %616 : f32 to vector<4x1xf32>
    %620 = arith.select %172, %618, %619 : vector<4x1xi1>, vector<4x1xf32>
    %621 = vector.broadcast %620 : vector<4x1xf32> to vector<4x256xf32>
    %622 = arith.mulf %621, %615 : vector<4x256xf32>
    %cst_100 = arith.constant 0.000000e+00 : f32
    %623 = vector.shape_cast %129 : vector<1x256xi1> to vector<1x256xi1>
    %624 = vector.broadcast %623 : vector<1x256xi1> to vector<4x256xi1>
    %625 = vector.broadcast %cst_100 : f32 to vector<4x256xf32>
    %626 = arith.select %624, %622, %625 : vector<4x256xi1>, vector<4x256xf32>
    %627 = arith.addf %614, %626 : vector<4x256xf32>
    %c207_i32 = arith.constant 207 : i32
    %628 = tpu.dynamic_rotate %82 by %c207_i32 dim 1 : vector<4x256xf32>, i32 -> vector<4x256xf32>
    %c46 = arith.constant 46 : index
    %629 = memref.load %arg1[%c46] : memref<98xf32, #tpu.memory_space<smem>>
    %c95 = arith.constant 95 : index
    %630 = memref.load %arg1[%c95] : memref<98xf32, #tpu.memory_space<smem>>
    %631 = vector.broadcast %630 : f32 to vector<4x1xf32>
    %632 = vector.broadcast %629 : f32 to vector<4x1xf32>
    %633 = arith.select %172, %631, %632 : vector<4x1xi1>, vector<4x1xf32>
    %634 = vector.broadcast %633 : vector<4x1xf32> to vector<4x256xf32>
    %635 = arith.mulf %634, %628 : vector<4x256xf32>
    %cst_101 = arith.constant 0.000000e+00 : f32
    %636 = vector.shape_cast %134 : vector<1x256xi1> to vector<1x256xi1>
    %637 = vector.broadcast %636 : vector<1x256xi1> to vector<4x256xi1>
    %638 = vector.broadcast %cst_101 : f32 to vector<4x256xf32>
    %639 = arith.select %637, %635, %638 : vector<4x256xi1>, vector<4x256xf32>
    %640 = arith.addf %627, %639 : vector<4x256xf32>
    %cst_102 = arith.constant 0.000000e+00 : f32
    %641 = vector.shape_cast %159 : vector<1x256xi1> to vector<1x256xi1>
    %642 = vector.broadcast %641 : vector<1x256xi1> to vector<4x256xi1>
    %643 = vector.broadcast %cst_102 : f32 to vector<4x256xf32>
    %644 = arith.select %642, %640, %643 : vector<4x256xi1>, vector<4x256xf32>
    %645 = arith.addf %550, %644 : vector<4x256xf32>
    %c46_i32 = arith.constant 46 : i32
    %646 = tpu.dynamic_rotate %82 by %c46_i32 dim 1 : vector<4x256xf32>, i32 -> vector<4x256xf32>
    %c5 = arith.constant 5 : index
    %647 = memref.load %arg1[%c5] : memref<98xf32, #tpu.memory_space<smem>>
    %c54 = arith.constant 54 : index
    %648 = memref.load %arg1[%c54] : memref<98xf32, #tpu.memory_space<smem>>
    %649 = vector.broadcast %648 : f32 to vector<4x1xf32>
    %650 = vector.broadcast %647 : f32 to vector<4x1xf32>
    %651 = arith.select %172, %649, %650 : vector<4x1xi1>, vector<4x1xf32>
    %652 = vector.broadcast %651 : vector<4x1xf32> to vector<4x256xf32>
    %653 = arith.mulf %652, %646 : vector<4x256xf32>
    %cst_103 = arith.constant 0.000000e+00 : f32
    %654 = vector.shape_cast %104 : vector<1x256xi1> to vector<1x256xi1>
    %655 = vector.broadcast %654 : vector<1x256xi1> to vector<4x256xi1>
    %656 = vector.broadcast %cst_103 : f32 to vector<4x256xf32>
    %657 = arith.select %655, %653, %656 : vector<4x256xi1>, vector<4x256xf32>
    %c30_i32 = arith.constant 30 : i32
    %658 = tpu.dynamic_rotate %82 by %c30_i32 dim 1 : vector<4x256xf32>, i32 -> vector<4x256xf32>
    %c12 = arith.constant 12 : index
    %659 = memref.load %arg1[%c12] : memref<98xf32, #tpu.memory_space<smem>>
    %c61 = arith.constant 61 : index
    %660 = memref.load %arg1[%c61] : memref<98xf32, #tpu.memory_space<smem>>
    %661 = vector.broadcast %660 : f32 to vector<4x1xf32>
    %662 = vector.broadcast %659 : f32 to vector<4x1xf32>
    %663 = arith.select %172, %661, %662 : vector<4x1xi1>, vector<4x1xf32>
    %664 = vector.broadcast %663 : vector<4x1xf32> to vector<4x256xf32>
    %665 = arith.mulf %664, %658 : vector<4x256xf32>
    %cst_104 = arith.constant 0.000000e+00 : f32
    %666 = vector.shape_cast %109 : vector<1x256xi1> to vector<1x256xi1>
    %667 = vector.broadcast %666 : vector<1x256xi1> to vector<4x256xi1>
    %668 = vector.broadcast %cst_104 : f32 to vector<4x256xf32>
    %669 = arith.select %667, %665, %668 : vector<4x256xi1>, vector<4x256xf32>
    %670 = arith.addf %657, %669 : vector<4x256xf32>
    %c14_i32_105 = arith.constant 14 : i32
    %671 = tpu.dynamic_rotate %82 by %c14_i32_105 dim 1 : vector<4x256xf32>, i32 -> vector<4x256xf32>
    %c19 = arith.constant 19 : index
    %672 = memref.load %arg1[%c19] : memref<98xf32, #tpu.memory_space<smem>>
    %c68 = arith.constant 68 : index
    %673 = memref.load %arg1[%c68] : memref<98xf32, #tpu.memory_space<smem>>
    %674 = vector.broadcast %673 : f32 to vector<4x1xf32>
    %675 = vector.broadcast %672 : f32 to vector<4x1xf32>
    %676 = arith.select %172, %674, %675 : vector<4x1xi1>, vector<4x1xf32>
    %677 = vector.broadcast %676 : vector<4x1xf32> to vector<4x256xf32>
    %678 = arith.mulf %677, %671 : vector<4x256xf32>
    %cst_106 = arith.constant 0.000000e+00 : f32
    %679 = vector.shape_cast %114 : vector<1x256xi1> to vector<1x256xi1>
    %680 = vector.broadcast %679 : vector<1x256xi1> to vector<4x256xi1>
    %681 = vector.broadcast %cst_106 : f32 to vector<4x256xf32>
    %682 = arith.select %680, %678, %681 : vector<4x256xi1>, vector<4x256xf32>
    %683 = arith.addf %670, %682 : vector<4x256xf32>
    %c254_i32 = arith.constant 254 : i32
    %684 = tpu.dynamic_rotate %82 by %c254_i32 dim 1 : vector<4x256xf32>, i32 -> vector<4x256xf32>
    %c26 = arith.constant 26 : index
    %685 = memref.load %arg1[%c26] : memref<98xf32, #tpu.memory_space<smem>>
    %c75 = arith.constant 75 : index
    %686 = memref.load %arg1[%c75] : memref<98xf32, #tpu.memory_space<smem>>
    %687 = vector.broadcast %686 : f32 to vector<4x1xf32>
    %688 = vector.broadcast %685 : f32 to vector<4x1xf32>
    %689 = arith.select %172, %687, %688 : vector<4x1xi1>, vector<4x1xf32>
    %690 = vector.broadcast %689 : vector<4x1xf32> to vector<4x256xf32>
    %691 = arith.mulf %690, %684 : vector<4x256xf32>
    %cst_107 = arith.constant 0.000000e+00 : f32
    %692 = vector.shape_cast %119 : vector<1x256xi1> to vector<1x256xi1>
    %693 = vector.broadcast %692 : vector<1x256xi1> to vector<4x256xi1>
    %694 = vector.broadcast %cst_107 : f32 to vector<4x256xf32>
    %695 = arith.select %693, %691, %694 : vector<4x256xi1>, vector<4x256xf32>
    %696 = arith.addf %683, %695 : vector<4x256xf32>
    %c238_i32 = arith.constant 238 : i32
    %697 = tpu.dynamic_rotate %82 by %c238_i32 dim 1 : vector<4x256xf32>, i32 -> vector<4x256xf32>
    %c33 = arith.constant 33 : index
    %698 = memref.load %arg1[%c33] : memref<98xf32, #tpu.memory_space<smem>>
    %c82 = arith.constant 82 : index
    %699 = memref.load %arg1[%c82] : memref<98xf32, #tpu.memory_space<smem>>
    %700 = vector.broadcast %699 : f32 to vector<4x1xf32>
    %701 = vector.broadcast %698 : f32 to vector<4x1xf32>
    %702 = arith.select %172, %700, %701 : vector<4x1xi1>, vector<4x1xf32>
    %703 = vector.broadcast %702 : vector<4x1xf32> to vector<4x256xf32>
    %704 = arith.mulf %703, %697 : vector<4x256xf32>
    %cst_108 = arith.constant 0.000000e+00 : f32
    %705 = vector.shape_cast %124 : vector<1x256xi1> to vector<1x256xi1>
    %706 = vector.broadcast %705 : vector<1x256xi1> to vector<4x256xi1>
    %707 = vector.broadcast %cst_108 : f32 to vector<4x256xf32>
    %708 = arith.select %706, %704, %707 : vector<4x256xi1>, vector<4x256xf32>
    %709 = arith.addf %696, %708 : vector<4x256xf32>
    %c222_i32 = arith.constant 222 : i32
    %710 = tpu.dynamic_rotate %82 by %c222_i32 dim 1 : vector<4x256xf32>, i32 -> vector<4x256xf32>
    %c40 = arith.constant 40 : index
    %711 = memref.load %arg1[%c40] : memref<98xf32, #tpu.memory_space<smem>>
    %c89 = arith.constant 89 : index
    %712 = memref.load %arg1[%c89] : memref<98xf32, #tpu.memory_space<smem>>
    %713 = vector.broadcast %712 : f32 to vector<4x1xf32>
    %714 = vector.broadcast %711 : f32 to vector<4x1xf32>
    %715 = arith.select %172, %713, %714 : vector<4x1xi1>, vector<4x1xf32>
    %716 = vector.broadcast %715 : vector<4x1xf32> to vector<4x256xf32>
    %717 = arith.mulf %716, %710 : vector<4x256xf32>
    %cst_109 = arith.constant 0.000000e+00 : f32
    %718 = vector.shape_cast %129 : vector<1x256xi1> to vector<1x256xi1>
    %719 = vector.broadcast %718 : vector<1x256xi1> to vector<4x256xi1>
    %720 = vector.broadcast %cst_109 : f32 to vector<4x256xf32>
    %721 = arith.select %719, %717, %720 : vector<4x256xi1>, vector<4x256xf32>
    %722 = arith.addf %709, %721 : vector<4x256xf32>
    %c206_i32 = arith.constant 206 : i32
    %723 = tpu.dynamic_rotate %82 by %c206_i32 dim 1 : vector<4x256xf32>, i32 -> vector<4x256xf32>
    %c47 = arith.constant 47 : index
    %724 = memref.load %arg1[%c47] : memref<98xf32, #tpu.memory_space<smem>>
    %c96 = arith.constant 96 : index
    %725 = memref.load %arg1[%c96] : memref<98xf32, #tpu.memory_space<smem>>
    %726 = vector.broadcast %725 : f32 to vector<4x1xf32>
    %727 = vector.broadcast %724 : f32 to vector<4x1xf32>
    %728 = arith.select %172, %726, %727 : vector<4x1xi1>, vector<4x1xf32>
    %729 = vector.broadcast %728 : vector<4x1xf32> to vector<4x256xf32>
    %730 = arith.mulf %729, %723 : vector<4x256xf32>
    %cst_110 = arith.constant 0.000000e+00 : f32
    %731 = vector.shape_cast %134 : vector<1x256xi1> to vector<1x256xi1>
    %732 = vector.broadcast %731 : vector<1x256xi1> to vector<4x256xi1>
    %733 = vector.broadcast %cst_110 : f32 to vector<4x256xf32>
    %734 = arith.select %732, %730, %733 : vector<4x256xi1>, vector<4x256xf32>
    %735 = arith.addf %722, %734 : vector<4x256xf32>
    %cst_111 = arith.constant 0.000000e+00 : f32
    %736 = vector.shape_cast %164 : vector<1x256xi1> to vector<1x256xi1>
    %737 = vector.broadcast %736 : vector<1x256xi1> to vector<4x256xi1>
    %738 = vector.broadcast %cst_111 : f32 to vector<4x256xf32>
    %739 = arith.select %737, %735, %738 : vector<4x256xi1>, vector<4x256xf32>
    %740 = arith.addf %645, %739 : vector<4x256xf32>
    %c45_i32 = arith.constant 45 : i32
    %741 = tpu.dynamic_rotate %82 by %c45_i32 dim 1 : vector<4x256xf32>, i32 -> vector<4x256xf32>
    %c6 = arith.constant 6 : index
    %742 = memref.load %arg1[%c6] : memref<98xf32, #tpu.memory_space<smem>>
    %c55 = arith.constant 55 : index
    %743 = memref.load %arg1[%c55] : memref<98xf32, #tpu.memory_space<smem>>
    %744 = vector.broadcast %743 : f32 to vector<4x1xf32>
    %745 = vector.broadcast %742 : f32 to vector<4x1xf32>
    %746 = arith.select %172, %744, %745 : vector<4x1xi1>, vector<4x1xf32>
    %747 = vector.broadcast %746 : vector<4x1xf32> to vector<4x256xf32>
    %748 = arith.mulf %747, %741 : vector<4x256xf32>
    %cst_112 = arith.constant 0.000000e+00 : f32
    %749 = vector.shape_cast %104 : vector<1x256xi1> to vector<1x256xi1>
    %750 = vector.broadcast %749 : vector<1x256xi1> to vector<4x256xi1>
    %751 = vector.broadcast %cst_112 : f32 to vector<4x256xf32>
    %752 = arith.select %750, %748, %751 : vector<4x256xi1>, vector<4x256xf32>
    %c29_i32 = arith.constant 29 : i32
    %753 = tpu.dynamic_rotate %82 by %c29_i32 dim 1 : vector<4x256xf32>, i32 -> vector<4x256xf32>
    %c13 = arith.constant 13 : index
    %754 = memref.load %arg1[%c13] : memref<98xf32, #tpu.memory_space<smem>>
    %c62 = arith.constant 62 : index
    %755 = memref.load %arg1[%c62] : memref<98xf32, #tpu.memory_space<smem>>
    %756 = vector.broadcast %755 : f32 to vector<4x1xf32>
    %757 = vector.broadcast %754 : f32 to vector<4x1xf32>
    %758 = arith.select %172, %756, %757 : vector<4x1xi1>, vector<4x1xf32>
    %759 = vector.broadcast %758 : vector<4x1xf32> to vector<4x256xf32>
    %760 = arith.mulf %759, %753 : vector<4x256xf32>
    %cst_113 = arith.constant 0.000000e+00 : f32
    %761 = vector.shape_cast %109 : vector<1x256xi1> to vector<1x256xi1>
    %762 = vector.broadcast %761 : vector<1x256xi1> to vector<4x256xi1>
    %763 = vector.broadcast %cst_113 : f32 to vector<4x256xf32>
    %764 = arith.select %762, %760, %763 : vector<4x256xi1>, vector<4x256xf32>
    %765 = arith.addf %752, %764 : vector<4x256xf32>
    %c13_i32_114 = arith.constant 13 : i32
    %766 = tpu.dynamic_rotate %82 by %c13_i32_114 dim 1 : vector<4x256xf32>, i32 -> vector<4x256xf32>
    %c20 = arith.constant 20 : index
    %767 = memref.load %arg1[%c20] : memref<98xf32, #tpu.memory_space<smem>>
    %c69 = arith.constant 69 : index
    %768 = memref.load %arg1[%c69] : memref<98xf32, #tpu.memory_space<smem>>
    %769 = vector.broadcast %768 : f32 to vector<4x1xf32>
    %770 = vector.broadcast %767 : f32 to vector<4x1xf32>
    %771 = arith.select %172, %769, %770 : vector<4x1xi1>, vector<4x1xf32>
    %772 = vector.broadcast %771 : vector<4x1xf32> to vector<4x256xf32>
    %773 = arith.mulf %772, %766 : vector<4x256xf32>
    %cst_115 = arith.constant 0.000000e+00 : f32
    %774 = vector.shape_cast %114 : vector<1x256xi1> to vector<1x256xi1>
    %775 = vector.broadcast %774 : vector<1x256xi1> to vector<4x256xi1>
    %776 = vector.broadcast %cst_115 : f32 to vector<4x256xf32>
    %777 = arith.select %775, %773, %776 : vector<4x256xi1>, vector<4x256xf32>
    %778 = arith.addf %765, %777 : vector<4x256xf32>
    %c253_i32 = arith.constant 253 : i32
    %779 = tpu.dynamic_rotate %82 by %c253_i32 dim 1 : vector<4x256xf32>, i32 -> vector<4x256xf32>
    %c27 = arith.constant 27 : index
    %780 = memref.load %arg1[%c27] : memref<98xf32, #tpu.memory_space<smem>>
    %c76 = arith.constant 76 : index
    %781 = memref.load %arg1[%c76] : memref<98xf32, #tpu.memory_space<smem>>
    %782 = vector.broadcast %781 : f32 to vector<4x1xf32>
    %783 = vector.broadcast %780 : f32 to vector<4x1xf32>
    %784 = arith.select %172, %782, %783 : vector<4x1xi1>, vector<4x1xf32>
    %785 = vector.broadcast %784 : vector<4x1xf32> to vector<4x256xf32>
    %786 = arith.mulf %785, %779 : vector<4x256xf32>
    %cst_116 = arith.constant 0.000000e+00 : f32
    %787 = vector.shape_cast %119 : vector<1x256xi1> to vector<1x256xi1>
    %788 = vector.broadcast %787 : vector<1x256xi1> to vector<4x256xi1>
    %789 = vector.broadcast %cst_116 : f32 to vector<4x256xf32>
    %790 = arith.select %788, %786, %789 : vector<4x256xi1>, vector<4x256xf32>
    %791 = arith.addf %778, %790 : vector<4x256xf32>
    %c237_i32 = arith.constant 237 : i32
    %792 = tpu.dynamic_rotate %82 by %c237_i32 dim 1 : vector<4x256xf32>, i32 -> vector<4x256xf32>
    %c34 = arith.constant 34 : index
    %793 = memref.load %arg1[%c34] : memref<98xf32, #tpu.memory_space<smem>>
    %c83 = arith.constant 83 : index
    %794 = memref.load %arg1[%c83] : memref<98xf32, #tpu.memory_space<smem>>
    %795 = vector.broadcast %794 : f32 to vector<4x1xf32>
    %796 = vector.broadcast %793 : f32 to vector<4x1xf32>
    %797 = arith.select %172, %795, %796 : vector<4x1xi1>, vector<4x1xf32>
    %798 = vector.broadcast %797 : vector<4x1xf32> to vector<4x256xf32>
    %799 = arith.mulf %798, %792 : vector<4x256xf32>
    %cst_117 = arith.constant 0.000000e+00 : f32
    %800 = vector.shape_cast %124 : vector<1x256xi1> to vector<1x256xi1>
    %801 = vector.broadcast %800 : vector<1x256xi1> to vector<4x256xi1>
    %802 = vector.broadcast %cst_117 : f32 to vector<4x256xf32>
    %803 = arith.select %801, %799, %802 : vector<4x256xi1>, vector<4x256xf32>
    %804 = arith.addf %791, %803 : vector<4x256xf32>
    %c221_i32 = arith.constant 221 : i32
    %805 = tpu.dynamic_rotate %82 by %c221_i32 dim 1 : vector<4x256xf32>, i32 -> vector<4x256xf32>
    %c41 = arith.constant 41 : index
    %806 = memref.load %arg1[%c41] : memref<98xf32, #tpu.memory_space<smem>>
    %c90 = arith.constant 90 : index
    %807 = memref.load %arg1[%c90] : memref<98xf32, #tpu.memory_space<smem>>
    %808 = vector.broadcast %807 : f32 to vector<4x1xf32>
    %809 = vector.broadcast %806 : f32 to vector<4x1xf32>
    %810 = arith.select %172, %808, %809 : vector<4x1xi1>, vector<4x1xf32>
    %811 = vector.broadcast %810 : vector<4x1xf32> to vector<4x256xf32>
    %812 = arith.mulf %811, %805 : vector<4x256xf32>
    %cst_118 = arith.constant 0.000000e+00 : f32
    %813 = vector.shape_cast %129 : vector<1x256xi1> to vector<1x256xi1>
    %814 = vector.broadcast %813 : vector<1x256xi1> to vector<4x256xi1>
    %815 = vector.broadcast %cst_118 : f32 to vector<4x256xf32>
    %816 = arith.select %814, %812, %815 : vector<4x256xi1>, vector<4x256xf32>
    %817 = arith.addf %804, %816 : vector<4x256xf32>
    %c205_i32 = arith.constant 205 : i32
    %818 = tpu.dynamic_rotate %82 by %c205_i32 dim 1 : vector<4x256xf32>, i32 -> vector<4x256xf32>
    %c48 = arith.constant 48 : index
    %819 = memref.load %arg1[%c48] : memref<98xf32, #tpu.memory_space<smem>>
    %c97 = arith.constant 97 : index
    %820 = memref.load %arg1[%c97] : memref<98xf32, #tpu.memory_space<smem>>
    %821 = vector.broadcast %820 : f32 to vector<4x1xf32>
    %822 = vector.broadcast %819 : f32 to vector<4x1xf32>
    %823 = arith.select %172, %821, %822 : vector<4x1xi1>, vector<4x1xf32>
    %824 = vector.broadcast %823 : vector<4x1xf32> to vector<4x256xf32>
    %825 = arith.mulf %824, %818 : vector<4x256xf32>
    %cst_119 = arith.constant 0.000000e+00 : f32
    %826 = vector.shape_cast %134 : vector<1x256xi1> to vector<1x256xi1>
    %827 = vector.broadcast %826 : vector<1x256xi1> to vector<4x256xi1>
    %828 = vector.broadcast %cst_119 : f32 to vector<4x256xf32>
    %829 = arith.select %827, %825, %828 : vector<4x256xi1>, vector<4x256xf32>
    %830 = arith.addf %817, %829 : vector<4x256xf32>
    %cst_120 = arith.constant 0.000000e+00 : f32
    %831 = vector.shape_cast %169 : vector<1x256xi1> to vector<1x256xi1>
    %832 = vector.broadcast %831 : vector<1x256xi1> to vector<4x256xi1>
    %833 = vector.broadcast %cst_120 : f32 to vector<4x256xf32>
    %834 = arith.select %832, %830, %833 : vector<4x256xi1>, vector<4x256xf32>
    %835 = arith.addf %740, %834 : vector<4x256xf32>
    %836 = vector.extract_strided_slice %835 {offsets = [0, 0], sizes = [2, 256], strides = [1, 1]} : vector<4x256xf32> to vector<2x256xf32>
    %837 = vector.extract_strided_slice %835 {offsets = [2, 0], sizes = [2, 256], strides = [1, 1]} : vector<4x256xf32> to vector<2x256xf32>
    %838 = arith.addf %836, %837 : vector<2x256xf32>
    %839 = arith.negf %838 : vector<2x256xf32>
    %840 = math.exp %839 : vector<2x256xf32>
    %cst_121 = arith.constant 1.000000e+00 : f32
    %841 = vector.broadcast %cst_121 : f32 to vector<2x256xf32>
    %842 = arith.addf %841, %840 : vector<2x256xf32>
    %843 = arith.divf %841, %842 : vector<2x256xf32>
    %c0_122 = arith.constant 0 : index
    %c0_123 = arith.constant 0 : index
    %c0_124 = arith.constant 0 : index
    %844 = vector.load %arg4[%c0_122, %c0_123, %c0_124] : memref<2x32x256xf32, #tpu.memory_space<vmem>>, vector<1x32x256xf32>
    %845 = vector.shape_cast %844 : vector<1x32x256xf32> to vector<32x256xf32>
    %846 = vector.broadcast %32 : vector<32x1xf32> to vector<32x256xf32>
    %847 = arith.mulf %845, %846 : vector<32x256xf32>
    %848 = vector.extract_strided_slice %843 {offsets = [0, 0], sizes = [1, 256], strides = [1, 1]} : vector<2x256xf32> to vector<1x256xf32>
    %849 = vector.broadcast %848 : vector<1x256xf32> to vector<32x256xf32>
    %850 = arith.mulf %847, %849 : vector<32x256xf32>
    %c0_125 = arith.constant 0 : index
    %c0_126 = arith.constant 0 : index
    %c0_127 = arith.constant 0 : index
    %851 = vector.load %arg5[%c0_125, %c0_126, %c0_127] : memref<2x32x256xf32, #tpu.memory_space<vmem>>, vector<1x32x256xf32>
    %852 = vector.shape_cast %851 : vector<1x32x256xf32> to vector<32x256xf32>
    %853 = vector.shape_cast %850 : vector<32x256xf32> to vector<1x32x256xf32>
    tpu.vector_store %arg5[%c0_125, %c0_126, %c0_127], %853 {strides = array<i32>} : memref<2x32x256xf32, #tpu.memory_space<vmem>>, vector<1x32x256xf32>,
    %c1_128 = arith.constant 1 : index
    %c0_129 = arith.constant 0 : index
    %c0_130 = arith.constant 0 : index
    %854 = vector.load %arg4[%c1_128, %c0_129, %c0_130] : memref<2x32x256xf32, #tpu.memory_space<vmem>>, vector<1x32x256xf32>
    %855 = vector.shape_cast %854 : vector<1x32x256xf32> to vector<32x256xf32>
    %856 = vector.broadcast %73 : vector<32x1xf32> to vector<32x256xf32>
    %857 = arith.mulf %855, %856 : vector<32x256xf32>
    %858 = vector.extract_strided_slice %843 {offsets = [1, 0], sizes = [1, 256], strides = [1, 1]} : vector<2x256xf32> to vector<1x256xf32>
    %859 = vector.broadcast %858 : vector<1x256xf32> to vector<32x256xf32>
    %860 = arith.mulf %857, %859 : vector<32x256xf32>
    %c1_131 = arith.constant 1 : index
    %c0_132 = arith.constant 0 : index
    %c0_133 = arith.constant 0 : index
    %861 = vector.load %arg5[%c1_131, %c0_132, %c0_133] : memref<2x32x256xf32, #tpu.memory_space<vmem>>, vector<1x32x256xf32>
    %862 = vector.shape_cast %861 : vector<1x32x256xf32> to vector<32x256xf32>
    %863 = vector.shape_cast %860 : vector<32x256xf32> to vector<1x32x256xf32>
    tpu.vector_store %arg5[%c1_131, %c0_132, %c0_133], %863 {strides = array<i32>} : memref<2x32x256xf32, #tpu.memory_space<vmem>>, vector<1x32x256xf32>,
    return
  }
  func.func @transform_0(%arg0: i32) -> i32 {
    %c0_i32 = arith.constant 0 : i32
    %c0_i32_0 = arith.constant 0 : i32
    return %c0_i32 : i32
  }
  func.func @transform_1(%arg0: i32) -> (i32, i32) {
    %c0_i32 = arith.constant 0 : i32
    %c0_i32_0 = arith.constant 0 : i32
    %c0_i32_1 = arith.constant 0 : i32
    return %c0_i32, %c0_i32_0 : i32, i32
  }
  func.func @transform_2(%arg0: i32) -> (i32, i32) {
    %c0_i32 = arith.constant 0 : i32
    %c0_i32_0 = arith.constant 0 : i32
    %c0_i32_1 = arith.constant 0 : i32
    return %c0_i32, %c0_i32_0 : i32, i32
  }
  func.func @transform_3(%arg0: i32) -> (i32, i32, i32) {
    %c0_i32 = arith.constant 0 : i32
    %c0_i32_0 = arith.constant 0 : i32
    %c0_i32_1 = arith.constant 0 : i32
    return %arg0, %c0_i32, %c0_i32_0 : i32, i32, i32
  }
  func.func @transform_4(%arg0: i32) -> (i32, i32, i32) {
    %c0_i32 = arith.constant 0 : i32
    %c0_i32_0 = arith.constant 0 : i32
    %c0_i32_1 = arith.constant 0 : i32
    return %arg0, %c0_i32, %c0_i32_0 : i32, i32, i32
  }
}

</mosaic_0001>

<llo_original>
// kernel: tpu_custom_call.1
$region0: #{tpu_custom_call.1}
  #allocation0 [shape = 'u32[]', space=smem, size = 0x4, offset = 0x4, fixed_abs, tag = 'smem constant byte address 0x4 - core index']
  #allocation1 [shape = 'u32[72,128]{1,0:T(1,128)}', space=vmem, size = 0x9000, scoped, tag = 'internal scratch']
  %s0 = inlined_call_operand.vmem [shape: f32[98], index: 0, kind: input, shape index: {}]
  %s1 = inlined_call_operand.vmem [shape: f32[32,2], index: 1, kind: input, shape index: {}]
  %s2 = inlined_call_operand.vmem [shape: f32[32,2], index: 2, kind: input, shape index: {}]
  %s3 = inlined_call_operand.hbm [shape: f32[2,32,256], index: 3, kind: input, shape index: {}]
  %s4 = inlined_call_operand.hbm [shape: f32[2,32,256], index: 4, kind: output, shape index: {}]
  %s5 = sld [smem:[#allocation0]]
  $region34: #{tpu_custom_call.1} parent=0
    _
  %s7 = ssub.s32 1, %s5
  %s8 = scalar_select 0, %s7, %s5
  $region1: #{tpu_custom_call.1} parent=0
    #allocation2 [shape = 'u8[512]{0}', space=smem, size = 0x200, scoped, tag = 'input window, operand 0, single buffered']
    #allocation3 [shape = 's32[1]{0}', space=sflag, size = 0x4, scoped, tag = 'scoped memory for tpu_custom_call.1']
    #allocation4 [shape = 's32[1]{0}', space=sflag, size = 0x4, scoped, tag = 'scoped memory for tpu_custom_call.1']
    #allocation5 [shape = 's32[1]{0}', space=sflag, size = 0x4, scoped, tag = 'scoped memory for tpu_custom_call.1']
    #allocation6 [shape = 'u8[65536]{0}', space=vmem, size = 0x10000, scoped, tag = 'input window, operand 3, single buffered']
    #allocation7 [shape = 'u8[65536]{0}', space=vmem, size = 0x10000, scoped, tag = 'output window, operand 0, single buffered']
    %9 = vsyncpa [#allocation5], 0
    %10 = vsyncpa [#allocation3], 0
    %11 = vsyncpa [#allocation4], 0
    // Predicated region
    $region2: #{tpu_custom_call.1} parent=1 // pred_check
      _
    $region3: #{tpu_custom_call.1} parent=1 // pred_check_branch
      %13 = sbr.rel (0) target = $region5
    $region4: #{tpu_custom_call.1} parent=1 // pred_region
      %15 = vsyncadd [#allocation5], 0
      %s17 = sshll.u32 %s0, 4
      %s18 = int_to_ptr.vmem [resolvable:$true] %s17
      %20 = dma.vmem_to_smem %s18, 16, [#allocation2], [#allocation5]
    $region5: #{tpu_custom_call.1} parent=1 // pred_fallthru
      _
    // Predicated region
    $region6: #{tpu_custom_call.1} parent=1 // pred_check
      _
    $region7: #{tpu_custom_call.1} parent=1 // pred_check_branch
      %22 = sbr.rel (0) target = $region9
    $region8: #{tpu_custom_call.1} parent=1 // pred_region
      _
    $region9: #{tpu_custom_call.1} parent=1 // pred_fallthru
      _
    // Predicated region
    $region10: #{tpu_custom_call.1} parent=1 // pred_check
      _
    $region11: #{tpu_custom_call.1} parent=1 // pred_check_branch
      %24 = sbr.rel (0) target = $region13
    $region12: #{tpu_custom_call.1} parent=1 // pred_region
      _
    $region13: #{tpu_custom_call.1} parent=1 // pred_fallthru
      _
    // Predicated region
    $region14: #{tpu_custom_call.1} parent=1 // pred_check
      _
    $region15: #{tpu_custom_call.1} parent=1 // pred_check_branch
      %26 = sbr.rel (0) target = $region17
    $region16: #{tpu_custom_call.1} parent=1 // pred_region
      %28 = vsyncadd [#allocation3], 0
      %s29 = sshll.u32 %s3, 4
      %s30 = int_to_ptr.hbm [resolvable:$true] %s29
      %s31 = sshll.u32 [#allocation6], 4
      %s32 = int_to_ptr.vmem [resolvable:$true] %s31
      %37 = dma.hbm_to_vmem [thread:$0]  %s30, 2048, %s32, [#allocation3], 256, 256, 16
    $region17: #{tpu_custom_call.1} parent=1 // pred_fallthru
      _
    // Predicated region
    $region18: #{tpu_custom_call.1} parent=1 // pred_check
      _
    $region19: #{tpu_custom_call.1} parent=1 // pred_check_branch
      %39 = sbr.rel (0) target = $region21
    $region20: #{tpu_custom_call.1} parent=1 // pred_region
      %41 = dma.done [#allocation5], 16
    $region21: #{tpu_custom_call.1} parent=1 // pred_fallthru
      _
    // Predicated region
    $region22: #{tpu_custom_call.1} parent=1 // pred_check
      _
    $region23: #{tpu_custom_call.1} parent=1 // pred_check_branch
      %43 = sbr.rel (0) target = $region25
    $region24: #{tpu_custom_call.1} parent=1 // pred_region
      %45 = dma.done [#allocation3], 2048
    $region25: #{tpu_custom_call.1} parent=1 // pred_fallthru
      _
    %46 = sfence
    %v47 = vld [vmem:[#allocation6] sm:$0xff]
    %v48 = vld [vmem:[#allocation6 + $0x8] sm:$0xff]
    %v49 = vld [vmem:[#allocation6 + $0x10] sm:$0xff]
    %v50 = vld [vmem:[#allocation6 + $0x18] sm:$0xff]
    %v51 = vld [vmem:[#allocation6 + $0x20] sm:$0xff]
    %v52 = vld [vmem:[#allocation6 + $0x28] sm:$0xff]
    %v53 = vld [vmem:[#allocation6 + $0x30] sm:$0xff]
    %v54 = vld [vmem:[#allocation6 + $0x38] sm:$0xff]
    %v55 = vadd.f32 %v47, %v48
    %56 = vadd.xlane.f32.xlu0 %v55
    %v57 = vpop.xlane.xlu0 %56
    %v58 = vadd.f32 %v49, %v50
    %59 = vadd.xlane.f32.xlu0 %v58
    %v60 = vpop.xlane.xlu0 %59
    %v61 = vadd.f32 %v51, %v52
    %62 = vadd.xlane.f32.xlu0 %v61
    %v63 = vpop.xlane.xlu0 %62
    %v64 = vadd.f32 %v53, %v54
    %65 = vadd.xlane.f32.xlu0 %v64
    %v66 = vpop.xlane.xlu0 %65
    %v67 = vrcp.pop 256.0
    %v68 = vmul.f32 256.0, %v67
    %v69 = vsub.f32 1.0, %v68
    %v70 = vmul.f32 %v67, %v69
    %v71 = vadd.f32 %v67, %v70
    %vm72 = vweird.f32 %v67
    %v73 = vsel %vm72, %v67, %v71
    %v74 = vmul.f32 %v57, %v73
    %v75 = vmul.f32 %v60, %v73
    %v76 = vmul.f32 %v63, %v73
    %v77 = vmul.f32 %v66, %v73
    %v78 = vmax.f32 %v47, %v48
    %79 = vmax.xlane.f32.xlu0 %v78
    %v80 = vpop.xlane.xlu0 %79
    %v81 = vmax.f32 %v49, %v50
    %82 = vmax.xlane.f32.xlu0 %v81
    %v83 = vpop.xlane.xlu0 %82
    %v84 = vmax.f32 %v51, %v52
    %85 = vmax.xlane.f32.xlu0 %v84
    %v86 = vpop.xlane.xlu0 %85
    %v87 = vmax.f32 %v53, %v54
    %88 = vmax.xlane.f32.xlu0 %v87
    %v89 = vpop.xlane.xlu0 %88
    %v90 = vld [vmem:[%s1] sm:$0xff]
    %v91 = vld [vmem:[%s1 + $0x8] sm:$0xff]
    %v92 = vld [vmem:[%s1 + $0x10] sm:$0xff]
    %v93 = vld [vmem:[%s1 + $0x18] sm:$0xff]
    %v94 = vmul.f32 %v90, %v74
    %v95 = vmul.f32 %v91, %v75
    %v96 = vmul.f32 %v92, %v76
    %v97 = vmul.f32 %v93, %v77
    %vm98 = vcmask 15360
    %v99 = vsel %vm98, %v94, 0.0
    %v100 = vsel %vm98, %v95, 0.0
    %v101 = vadd.f32 %v99, %v100
    %v102 = vsel %vm98, %v96, 0.0
    %v103 = vadd.f32 %v101, %v102
    %v104 = vsel %vm98, %v97, 0.0
    %v105 = vadd.f32 %v103, %v104
    %v106 = vrot.slane %v105, 4
    %v107 = vadd.f32 %v105, %v106
    %v108 = vrot.slane %v107, 2
    %v109 = vadd.f32 %v107, %v108
    %v110 = vrot.slane %v109, 1
    %v111 = vadd.f32 %v109, %v110
    %v112 = vmul.f32 %v90, %v80
    %v113 = vmul.f32 %v91, %v83
    %v114 = vmul.f32 %v92, %v86
    %v115 = vmul.f32 %v93, %v89
    %v116 = vsel %vm98, %v112, 0.0
    %v117 = vsel %vm98, %v113, 0.0
    %v118 = vadd.f32 %v116, %v117
    %v119 = vsel %vm98, %v114, 0.0
    %v120 = vadd.f32 %v118, %v119
    %v121 = vsel %vm98, %v115, 0.0
    %v122 = vadd.f32 %v120, %v121
    %v123 = vrot.slane %v122, 4
    %v124 = vadd.f32 %v122, %v123
    %v125 = vrot.slane %v124, 2
    %v126 = vadd.f32 %v124, %v125
    %v127 = vrot.slane %v126, 1
    %v128 = vadd.f32 %v126, %v127
    %v129 = vmax.f32 %v111, 0.0
    %v130 = vmax.f32 %v128, 0.0
    %v131 = vadd.f32 %v129, %v130
    %v132 = vld [vmem:[%s2] sm:$0xff]
    %v133 = vld [vmem:[%s2 + $0x8] sm:$0xff]
    %v134 = vld [vmem:[%s2 + $0x10] sm:$0xff]
    %v135 = vld [vmem:[%s2 + $0x18] sm:$0xff]
    %v136 = vmul.f32 %v132, %v131
    %v137 = vmul.f32 %v133, %v131
    %v138 = vmul.f32 %v134, %v131
    %v139 = vmul.f32 %v135, %v131
    %v140 = vsel %vm98, %v136, 0.0
    %141 = vadd.xlane.f32.xlu0 %v140
    %v142 = vpop.xlane.xlu0 %141
    %v143 = vsel %vm98, %v137, 0.0
    %144 = vadd.xlane.f32.xlu0 %v143
    %v145 = vpop.xlane.xlu0 %144
    %v146 = vsel %vm98, %v138, 0.0
    %147 = vadd.xlane.f32.xlu0 %v146
    %v148 = vpop.xlane.xlu0 %147
    %v149 = vsel %vm98, %v139, 0.0
    %150 = vadd.xlane.f32.xlu0 %v149
    %v151 = vpop.xlane.xlu0 %150
    %v152 = vxor.u32 %v142, 2147483648
    %v153 = vxor.u32 %v145, 2147483648
    %v154 = vxor.u32 %v148, 2147483648
    %v155 = vxor.u32 %v151, 2147483648
    %v156 = vmul.f32 %v152, 1.442695
    %v157 = vpow.pop %v156
    %v158 = vmul.f32 %v153, 1.442695
    %v159 = vpow.pop %v158
    %v160 = vmul.f32 %v154, 1.442695
    %v161 = vpow.pop %v160
    %v162 = vmul.f32 %v155, 1.442695
    %v163 = vpow.pop %v162
    %v164 = vadd.f32 %v157, 1.0
    %v165 = vadd.f32 %v159, 1.0
    %v166 = vadd.f32 %v161, 1.0
    %v167 = vadd.f32 %v163, 1.0
    %v168 = vrcp.pop %v164
    %v169 = vmul.f32 %v164, %v168
    %v170 = vsub.f32 1.0, %v169
    %v171 = vmul.f32 %v168, %v170
    %v172 = vadd.f32 %v168, %v171
    %vm173 = vweird.f32 %v164
    %vm174 = vweird.f32 %v168
    %vm175 = vmor %vm173, %vm174
    %v176 = vsel %vm175, %v168, %v172
    %v177 = vand.u32 2147483647, %v164
    %vm178 = vcmp.eq.f32.partialorder %v177, 8.507059e+37
    %v179 = vand.u32 %v164, 2147483648
    %v180 = vor.u32 1.1754944e-38, %v179
    %v181 = vsel %vm178, %v180, %v176
    %v182 = vmul.f32 1.0, %v181
    %v183 = vrcp.pop %v165
    %v184 = vmul.f32 %v165, %v183
    %v185 = vsub.f32 1.0, %v184
    %v186 = vmul.f32 %v183, %v185
    %v187 = vadd.f32 %v183, %v186
    %vm188 = vweird.f32 %v165
    %vm189 = vweird.f32 %v183
    %vm190 = vmor %vm188, %vm189
    %v191 = vsel %vm190, %v183, %v187
    %v192 = vand.u32 2147483647, %v165
    %vm193 = vcmp.eq.f32.partialorder %v192, 8.507059e+37
    %v194 = vand.u32 %v165, 2147483648
    %v195 = vor.u32 1.1754944e-38, %v194
    %v196 = vsel %vm193, %v195, %v191
    %v197 = vmul.f32 1.0, %v196
    %v198 = vrcp.pop %v166
    %v199 = vmul.f32 %v166, %v198
    %v200 = vsub.f32 1.0, %v199
    %v201 = vmul.f32 %v198, %v200
    %v202 = vadd.f32 %v198, %v201
    %vm203 = vweird.f32 %v166
    %vm204 = vweird.f32 %v198
    %vm205 = vmor %vm203, %vm204
    %v206 = vsel %vm205, %v198, %v202
    %v207 = vand.u32 2147483647, %v166
    %vm208 = vcmp.eq.f32.partialorder %v207, 8.507059e+37
    %v209 = vand.u32 %v166, 2147483648
    %v210 = vor.u32 1.1754944e-38, %v209
    %v211 = vsel %vm208, %v210, %v206
    %v212 = vmul.f32 1.0, %v211
    %v213 = vrcp.pop %v167
    %v214 = vmul.f32 %v167, %v213
    %v215 = vsub.f32 1.0, %v214
    %v216 = vmul.f32 %v213, %v215
    %v217 = vadd.f32 %v213, %v216
    %vm218 = vweird.f32 %v167
    %vm219 = vweird.f32 %v213
    %vm220 = vmor %vm218, %vm219
    %v221 = vsel %vm220, %v213, %v217
    %v222 = vand.u32 2147483647, %v167
    %vm223 = vcmp.eq.f32.partialorder %v222, 8.507059e+37
    %v224 = vand.u32 %v167, 2147483648
    %v225 = vor.u32 1.1754944e-38, %v224
    %v226 = vsel %vm223, %v225, %v221
    %v227 = vmul.f32 1.0, %v226
    %v228 = vmul.f32 %v47, %v182
    %v229 = vmul.f32 %v48, %v182
    %v230 = vmul.f32 %v49, %v197
    %v231 = vmul.f32 %v50, %v197
    %v232 = vmul.f32 %v51, %v212
    %v233 = vmul.f32 %v52, %v212
    %v234 = vmul.f32 %v53, %v227
    %v235 = vmul.f32 %v54, %v227
    %v236 = vadd.f32 %v228, %v230
    %v237 = vadd.f32 %v236, %v232
    %v238 = vadd.f32 %v237, %v234
    %v239 = vrot.slane %v238, 4
    %v240 = vadd.f32 %v238, %v239
    %v241 = vrot.slane %v240, 2
    %v242 = vadd.f32 %v240, %v241
    %v243 = vrot.slane %v242, 1
    %v244 = vadd.f32 %v242, %v243
    %v245 = vadd.f32 %v229, %v231
    %v246 = vadd.f32 %v245, %v233
    %v247 = vadd.f32 %v246, %v235
    %v248 = vrot.slane %v247, 4
    %v249 = vadd.f32 %v247, %v248
    %v250 = vrot.slane %v249, 2
    %v251 = vadd.f32 %v249, %v250
    %v252 = vrot.slane %v251, 1
    %v253 = vadd.f32 %v251, %v252
    %v254 = vrcp.pop 32.0
    %v255 = vmul.f32 32.0, %v254
    %v256 = vsub.f32 1.0, %v255
    %v257 = vmul.f32 %v254, %v256
    %v258 = vadd.f32 %v254, %v257
    %vm259 = vweird.f32 %v254
    %v260 = vsel %vm259, %v254, %v258
    %v261 = vmul.f32 %v244, %v260
    %v262 = vmul.f32 %v253, %v260
    %v263 = vmax.f32 %v228, %v232
    %v264 = vmax.f32 %v230, %v234
    %v265 = vmax.f32 %v263, %v264
    %v266 = vrot.slane %v265, 4
    %v267 = vmax.f32 %v265, %v266
    %v268 = vrot.slane %v267, 2
    %v269 = vmax.f32 %v267, %v268
    %v270 = vrot.slane %v269, 1
    %v271 = vmax.f32 %v269, %v270
    %v272 = vmax.f32 %v229, %v233
    %v273 = vmax.f32 %v231, %v235
    %v274 = vmax.f32 %v272, %v273
    %v275 = vrot.slane %v274, 4
    %v276 = vmax.f32 %v274, %v275
    %v277 = vrot.slane %v276, 2
    %v278 = vmax.f32 %v276, %v277
    %v279 = vrot.slane %v278, 1
    %v280 = vmax.f32 %v278, %v279
    %s281 = scalar_lea.vmem [#allocation6], 64
    %v282 = vld [vmem:[%s281] sm:$0xff]
    %v283 = vld [vmem:[%s281 + $0x8] sm:$0xff]
    %v284 = vld [vmem:[%s281 + $0x10] sm:$0xff]
    %v285 = vld [vmem:[%s281 + $0x18] sm:$0xff]
    %v286 = vld [vmem:[%s281 + $0x20] sm:$0xff]
    %v287 = vld [vmem:[%s281 + $0x28] sm:$0xff]
    %v288 = vld [vmem:[%s281 + $0x30] sm:$0xff]
    %v289 = vld [vmem:[%s281 + $0x38] sm:$0xff]
    %v290 = vadd.f32 %v282, %v283
    %291 = vadd.xlane.f32.xlu0 %v290
    %v292 = vpop.xlane.xlu0 %291
    %v293 = vadd.f32 %v284, %v285
    %294 = vadd.xlane.f32.xlu0 %v293
    %v295 = vpop.xlane.xlu0 %294
    %v296 = vadd.f32 %v286, %v287
    %297 = vadd.xlane.f32.xlu0 %v296
    %v298 = vpop.xlane.xlu0 %297
    %v299 = vadd.f32 %v288, %v289
    %300 = vadd.xlane.f32.xlu0 %v299
    %v301 = vpop.xlane.xlu0 %300
    %v302 = vmul.f32 %v292, %v73
    %v303 = vmul.f32 %v295, %v73
    %v304 = vmul.f32 %v298, %v73
    %v305 = vmul.f32 %v301, %v73
    %v306 = vmax.f32 %v282, %v283
    %307 = vmax.xlane.f32.xlu0 %v306
    %v308 = vpop.xlane.xlu0 %307
    %v309 = vmax.f32 %v284, %v285
    %310 = vmax.xlane.f32.xlu0 %v309
    %v311 = vpop.xlane.xlu0 %310
    %v312 = vmax.f32 %v286, %v287
    %313 = vmax.xlane.f32.xlu0 %v312
    %v314 = vpop.xlane.xlu0 %313
    %v315 = vmax.f32 %v288, %v289
    %316 = vmax.xlane.f32.xlu0 %v315
    %v317 = vpop.xlane.xlu0 %316
    %v318 = vmul.f32 %v90, %v302
    %v319 = vmul.f32 %v91, %v303
    %v320 = vmul.f32 %v92, %v304
    %v321 = vmul.f32 %v93, %v305
    %v322 = vsel %vm98, %v318, 0.0
    %v323 = vsel %vm98, %v319, 0.0
    %v324 = vadd.f32 %v322, %v323
    %v325 = vsel %vm98, %v320, 0.0
    %v326 = vadd.f32 %v324, %v325
    %v327 = vsel %vm98, %v321, 0.0
    %v328 = vadd.f32 %v326, %v327
    %v329 = vrot.slane %v328, 4
    %v330 = vadd.f32 %v328, %v329
    %v331 = vrot.slane %v330, 2
    %v332 = vadd.f32 %v330, %v331
    %v333 = vrot.slane %v332, 1
    %v334 = vadd.f32 %v332, %v333
    %v335 = vmul.f32 %v90, %v308
    %v336 = vmul.f32 %v91, %v311
    %v337 = vmul.f32 %v92, %v314
    %v338 = vmul.f32 %v93, %v317
    %v339 = vsel %vm98, %v335, 0.0
    %v340 = vsel %vm98, %v336, 0.0
    %v341 = vadd.f32 %v339, %v340
    %v342 = vsel %vm98, %v337, 0.0
    %v343 = vadd.f32 %v341, %v342
    %v344 = vsel %vm98, %v338, 0.0
    %v345 = vadd.f32 %v343, %v344
    %v346 = vrot.slane %v345, 4
    %v347 = vadd.f32 %v345, %v346
    %v348 = vrot.slane %v347, 2
    %v349 = vadd.f32 %v347, %v348
    %v350 = vrot.slane %v349, 1
    %v351 = vadd.f32 %v349, %v350
    %v352 = vmax.f32 %v334, 0.0
    %v353 = vmax.f32 %v351, 0.0
    %v354 = vadd.f32 %v352, %v353
    %v355 = vmul.f32 %v132, %v354
    %v356 = vmul.f32 %v133, %v354
    %v357 = vmul.f32 %v134, %v354
    %v358 = vmul.f32 %v135, %v354
    %v359 = vsel %vm98, %v355, 0.0
    %360 = vadd.xlane.f32.xlu0 %v359
    %v361 = vpop.xlane.xlu0 %360
    %v362 = vsel %vm98, %v356, 0.0
    %363 = vadd.xlane.f32.xlu0 %v362
    %v364 = vpop.xlane.xlu0 %363
    %v365 = vsel %vm98, %v357, 0.0
    %366 = vadd.xlane.f32.xlu0 %v365
    %v367 = vpop.xlane.xlu0 %366
    %v368 = vsel %vm98, %v358, 0.0
    %369 = vadd.xlane.f32.xlu0 %v368
    %v370 = vpop.xlane.xlu0 %369
    %v371 = vxor.u32 %v361, 2147483648
    %v372 = vxor.u32 %v364, 2147483648
    %v373 = vxor.u32 %v367, 2147483648
    %v374 = vxor.u32 %v370, 2147483648
    %v375 = vmul.f32 %v371, 1.442695
    %v376 = vpow.pop %v375
    %v377 = vmul.f32 %v372, 1.442695
    %v378 = vpow.pop %v377
    %v379 = vmul.f32 %v373, 1.442695
    %v380 = vpow.pop %v379
    %v381 = vmul.f32 %v374, 1.442695
    %v382 = vpow.pop %v381
    %v383 = vadd.f32 %v376, 1.0
    %v384 = vadd.f32 %v378, 1.0
    %v385 = vadd.f32 %v380, 1.0
    %v386 = vadd.f32 %v382, 1.0
    %v387 = vrcp.pop %v383
    %v388 = vmul.f32 %v383, %v387
    %v389 = vsub.f32 1.0, %v388
    %v390 = vmul.f32 %v387, %v389
    %v391 = vadd.f32 %v387, %v390
    %vm392 = vweird.f32 %v383
    %vm393 = vweird.f32 %v387
    %vm394 = vmor %vm392, %vm393
    %v395 = vsel %vm394, %v387, %v391
    %v396 = vand.u32 2147483647, %v383
    %vm397 = vcmp.eq.f32.partialorder %v396, 8.507059e+37
    %v398 = vand.u32 %v383, 2147483648
    %v399 = vor.u32 1.1754944e-38, %v398
    %v400 = vsel %vm397, %v399, %v395
    %v401 = vmul.f32 1.0, %v400
    %v402 = vrcp.pop %v384
    %v403 = vmul.f32 %v384, %v402
    %v404 = vsub.f32 1.0, %v403
    %v405 = vmul.f32 %v402, %v404
    %v406 = vadd.f32 %v402, %v405
    %vm407 = vweird.f32 %v384
    %vm408 = vweird.f32 %v402
    %vm409 = vmor %vm407, %vm408
    %v410 = vsel %vm409, %v402, %v406
    %v411 = vand.u32 2147483647, %v384
    %vm412 = vcmp.eq.f32.partialorder %v411, 8.507059e+37
    %v413 = vand.u32 %v384, 2147483648
    %v414 = vor.u32 1.1754944e-38, %v413
    %v415 = vsel %vm412, %v414, %v410
    %v416 = vmul.f32 1.0, %v415
    %v417 = vrcp.pop %v385
    %v418 = vmul.f32 %v385, %v417
    %v419 = vsub.f32 1.0, %v418
    %v420 = vmul.f32 %v417, %v419
    %v421 = vadd.f32 %v417, %v420
    %vm422 = vweird.f32 %v385
    %vm423 = vweird.f32 %v417
    %vm424 = vmor %vm422, %vm423
    %v425 = vsel %vm424, %v417, %v421
    %v426 = vand.u32 2147483647, %v385
    %vm427 = vcmp.eq.f32.partialorder %v426, 8.507059e+37
    %v428 = vand.u32 %v385, 2147483648
    %v429 = vor.u32 1.1754944e-38, %v428
    %v430 = vsel %vm427, %v429, %v425
    %v431 = vmul.f32 1.0, %v430
    %v432 = vrcp.pop %v386
    %v433 = vmul.f32 %v386, %v432
    %v434 = vsub.f32 1.0, %v433
    %v435 = vmul.f32 %v432, %v434
    %v436 = vadd.f32 %v432, %v435
    %vm437 = vweird.f32 %v386
    %vm438 = vweird.f32 %v432
    %vm439 = vmor %vm437, %vm438
    %v440 = vsel %vm439, %v432, %v436
    %v441 = vand.u32 2147483647, %v386
    %vm442 = vcmp.eq.f32.partialorder %v441, 8.507059e+37
    %v443 = vand.u32 %v386, 2147483648
    %v444 = vor.u32 1.1754944e-38, %v443
    %v445 = vsel %vm442, %v444, %v440
    %v446 = vmul.f32 1.0, %v445
    %v447 = vmul.f32 %v282, %v401
    %v448 = vmul.f32 %v283, %v401
    %v449 = vmul.f32 %v284, %v416
    %v450 = vmul.f32 %v285, %v416
    %v451 = vmul.f32 %v286, %v431
    %v452 = vmul.f32 %v287, %v431
    %v453 = vmul.f32 %v288, %v446
    %v454 = vmul.f32 %v289, %v446
    %v455 = vadd.f32 %v447, %v449
    %v456 = vadd.f32 %v455, %v451
    %v457 = vadd.f32 %v456, %v453
    %v458 = vrot.slane %v457, 4
    %v459 = vadd.f32 %v457, %v458
    %v460 = vrot.slane %v459, 2
    %v461 = vadd.f32 %v459, %v460
    %v462 = vrot.slane %v461, 1
    %v463 = vadd.f32 %v461, %v462
    %v464 = vadd.f32 %v448, %v450
    %v465 = vadd.f32 %v464, %v452
    %v466 = vadd.f32 %v465, %v454
    %v467 = vrot.slane %v466, 4
    %v468 = vadd.f32 %v466, %v467
    %v469 = vrot.slane %v468, 2
    %v470 = vadd.f32 %v468, %v469
    %v471 = vrot.slane %v470, 1
    %v472 = vadd.f32 %v470, %v471
    %v473 = vmul.f32 %v463, %v260
    %v474 = vmul.f32 %v472, %v260
    %v475 = vmax.f32 %v447, %v451
    %v476 = vmax.f32 %v449, %v453
    %v477 = vmax.f32 %v475, %v476
    %v478 = vrot.slane %v477, 4
    %v479 = vmax.f32 %v477, %v478
    %v480 = vrot.slane %v479, 2
    %v481 = vmax.f32 %v479, %v480
    %v482 = vrot.slane %v481, 1
    %v483 = vmax.f32 %v481, %v482
    %v484 = vmax.f32 %v448, %v452
    %v485 = vmax.f32 %v450, %v454
    %v486 = vmax.f32 %v484, %v485
    %v487 = vrot.slane %v486, 4
    %v488 = vmax.f32 %v486, %v487
    %v489 = vrot.slane %v488, 2
    %v490 = vmax.f32 %v488, %v489
    %v491 = vrot.slane %v490, 1
    %v492 = vmax.f32 %v490, %v491
    %vm493 = vcmask 1040384
    %v494 = vsel %vm493, %v261, %v473
    %v495 = vsel %vm493, %v262, %v474
    %vm496 = vcmask 1041408
    %v497 = vsel %vm496, %v494, %v271
    %v498 = vsel %vm496, %v495, %v280
    %vm499 = vcmask 1042432
    %v500 = vsel %vm499, %v497, %v483
    %v501 = vsel %vm499, %v498, %v492
    %v502 = vlaneseq
    %v503 = vand.u32 %v502, 127
    %v504 = vadd.s32 %v503, 128
    %vm505 = vcmp.lt.s32.totalorder %v503, 0
    %v506 = vsub.s32 0, %v503
    %v507 = vsel %vm505, %v506, %v503
    %v508 = vshrl.u32 %v507, 4
    %v509 = vand.u32 %v507, 15
    %v510 = vsub.s32 0, %v509
    %v511 = vsel %vm505, %v510, %v509
    %vm512 = vcmp.lt.s32.totalorder %v504, 0
    %v513 = vsub.s32 0, %v504
    %v514 = vsel %vm512, %v513, %v504
    %v515 = vshrl.u32 %v514, 4
    %v516 = vand.u32 %v514, 15
    %v517 = vsub.s32 0, %v516
    %v518 = vsel %vm512, %v517, %v516
    %vm519 = vcmp.ne.s32.totalorder %v511, 0
    %vm520 = vcmp.ne.s32.totalorder %v518, 0
    %vm521 = vcmp.lt.s32.totalorder %v511, 0
    %vm522 = vcmp.lt.s32.totalorder %v518, 0
    %vm523 = vmand %vm521, %vm519
    %vm524 = vmand %vm522, %vm520
    %v525 = vadd.s32 %v511, 16
    %v526 = vadd.s32 %v518, 16
    %v527 = vsel %vm523, %v525, %v511
    %v528 = vsel %vm524, %v526, %v518
    %vm529 = vcmp.ge.s32.totalorder %v503, 48
    %vm530 = vcmp.ge.s32.totalorder %v504, 48
    %vm531 = vcmp.lt.s32.totalorder %v503, 304
    %vm532 = vcmp.lt.s32.totalorder %v504, 304
    %vm533 = vmand %vm529, %vm531
    %vm534 = vmand %vm530, %vm532
    %vm535 = vcmp.ge.s32.totalorder %v503, 32
    %vm536 = vcmp.ge.s32.totalorder %v504, 32
    %vm537 = vcmp.lt.s32.totalorder %v503, 288
    %vm538 = vcmp.lt.s32.totalorder %v504, 288
    %vm539 = vmand %vm535, %vm537
    %vm540 = vmand %vm536, %vm538
    %vm541 = vcmp.ge.s32.totalorder %v503, 16
    %vm542 = vcmp.ge.s32.totalorder %v504, 16
    %vm543 = vcmp.lt.s32.totalorder %v503, 272
    %vm544 = vcmp.lt.s32.totalorder %v504, 272
    %vm545 = vmand %vm541, %vm543
    %vm546 = vmand %vm542, %vm544
    %vm547 = vcmp.ge.s32.totalorder %v503, 0
    %vm548 = vcmp.ge.s32.totalorder %v504, 0
    %vm549 = vcmp.lt.s32.totalorder %v503, 256
    %vm550 = vcmp.lt.s32.totalorder %v504, 256
    %vm551 = vmand %vm547, %vm549
    %vm552 = vmand %vm548, %vm550
    %vm553 = vcmp.ge.s32.totalorder %v503, 4294967280
    %vm554 = vcmp.ge.s32.totalorder %v504, 4294967280
    %vm555 = vcmp.lt.s32.totalorder %v503, 240
    %vm556 = vcmp.lt.s32.totalorder %v504, 240
    %vm557 = vmand %vm553, %vm555
    %vm558 = vmand %vm554, %vm556
    %vm559 = vcmp.ge.s32.totalorder %v503, 4294967264
    %vm560 = vcmp.ge.s32.totalorder %v504, 4294967264
    %vm561 = vcmp.lt.s32.totalorder %v503, 224
    %vm562 = vcmp.lt.s32.totalorder %v504, 224
    %vm563 = vmand %vm559, %vm561
    %vm564 = vmand %vm560, %vm562
    %vm565 = vcmp.ge.s32.totalorder %v503, 4294967248
    %vm566 = vcmp.ge.s32.totalorder %v504, 4294967248
    %vm567 = vcmp.lt.s32.totalorder %v503, 208
    %vm568 = vcmp.lt.s32.totalorder %v504, 208
    %vm569 = vmand %vm565, %vm567
    %vm570 = vmand %vm566, %vm568
    %vm571 = vcmp.ge.s32.totalorder %v527, 3
    %vm572 = vcmp.ge.s32.totalorder %v528, 3
    %vm573 = vcmp.lt.s32.totalorder %v527, 19
    %vm574 = vcmp.lt.s32.totalorder %v528, 19
    %vm575 = vmand %vm571, %vm573
    %vm576 = vmand %vm572, %vm574
    %vm577 = vcmp.ge.s32.totalorder %v527, 2
    %vm578 = vcmp.ge.s32.totalorder %v528, 2
    %vm579 = vcmp.lt.s32.totalorder %v527, 18
    %vm580 = vcmp.lt.s32.totalorder %v528, 18
    %vm581 = vmand %vm577, %vm579
    %vm582 = vmand %vm578, %vm580
    %vm583 = vcmp.ge.s32.totalorder %v527, 1
    %vm584 = vcmp.ge.s32.totalorder %v528, 1
    %vm585 = vcmp.lt.s32.totalorder %v527, 17
    %vm586 = vcmp.lt.s32.totalorder %v528, 17
    %vm587 = vmand %vm583, %vm585
    %vm588 = vmand %vm584, %vm586
    %vm589 = vcmp.ge.s32.totalorder %v527, 0
    %vm590 = vcmp.ge.s32.totalorder %v528, 0
    %vm591 = vcmp.lt.s32.totalorder %v527, 16
    %vm592 = vcmp.lt.s32.totalorder %v528, 16
    %vm593 = vmand %vm589, %vm591
    %vm594 = vmand %vm590, %vm592
    %vm595 = vcmp.ge.s32.totalorder %v527, 4294967295
    %vm596 = vcmp.ge.s32.totalorder %v528, 4294967295
    %vm597 = vcmp.lt.s32.totalorder %v527, 15
    %vm598 = vcmp.lt.s32.totalorder %v528, 15
    %vm599 = vmand %vm595, %vm597
    %vm600 = vmand %vm596, %vm598
    %vm601 = vcmp.ge.s32.totalorder %v527, 4294967294
    %vm602 = vcmp.ge.s32.totalorder %v528, 4294967294
    %vm603 = vcmp.lt.s32.totalorder %v527, 14
    %vm604 = vcmp.lt.s32.totalorder %v528, 14
    %vm605 = vmand %vm601, %vm603
    %vm606 = vmand %vm602, %vm604
    %vm607 = vcmp.ge.s32.totalorder %v527, 4294967293
    %vm608 = vcmp.ge.s32.totalorder %v528, 4294967293
    %vm609 = vcmp.lt.s32.totalorder %v527, 13
    %vm610 = vcmp.lt.s32.totalorder %v528, 13
    %vm611 = vmand %vm607, %vm609
    %vm612 = vmand %vm608, %vm610
    %v613 = vlaneseq
    %v614 = vshrl.u32 %v613, 7
    %vm615 = vcmp.ge.s32.totalorder %v614, 2
    %616 = vrot.lane.b32.xlu0 %v500, 51
    %v617 = vpop.permute.xlu0 %616
    %618 = vrot.lane.b32.xlu0 %v501, 51
    %v619 = vpop.permute.xlu0 %618
    %vm620 = vcmp.lt.s32.totalorder %v503, 51
    %v621 = vsel %vm620, %v617, %v619
    %v622 = vsel %vm620, %v619, %v617
    %s623 = sld [smem:[#allocation2]]
    %s624 = sld [smem:[#allocation2 + $0x31]]
    %v625 = vstv %s624
    %v626 = vstv %s623
    %v627 = vsel %vm615, %v625, %v626
    %v628 = vmul.f32 %v627, %v622
    %v629 = vmul.f32 %v627, %v621
    %v630 = vsel %vm533, 1, 0
    %v631 = vsel %vm534, 1, 0
    %vm632 = vcmp.eq.s32.totalorder %v630, 1
    %vm633 = vcmp.eq.s32.totalorder %v631, 1
    %v634 = vsel %vm632, %v628, 0.0
    %v635 = vsel %vm633, %v629, 0.0
    %636 = vrot.lane.b32.xlu0 %v500, 35
    %v637 = vpop.permute.xlu0 %636
    %638 = vrot.lane.b32.xlu0 %v501, 35
    %v639 = vpop.permute.xlu0 %638
    %vm640 = vcmp.lt.s32.totalorder %v503, 35
    %v641 = vsel %vm640, %v637, %v639
    %v642 = vsel %vm640, %v639, %v637
    %s643 = sld [smem:[#allocation2 + $0x7]]
    %s644 = sld [smem:[#allocation2 + $0x38]]
    %v645 = vstv %s644
    %v646 = vstv %s643
    %v647 = vsel %vm615, %v645, %v646
    %v648 = vmul.f32 %v647, %v642
    %v649 = vmul.f32 %v647, %v641
    %v650 = vsel %vm539, 1, 0
    %v651 = vsel %vm540, 1, 0
    %vm652 = vcmp.eq.s32.totalorder %v650, 1
    %vm653 = vcmp.eq.s32.totalorder %v651, 1
    %v654 = vsel %vm652, %v648, 0.0
    %v655 = vsel %vm653, %v649, 0.0
    %v656 = vadd.f32 %v634, %v654
    %v657 = vadd.f32 %v635, %v655
    %658 = vrot.lane.b32.xlu0 %v500, 19
    %v659 = vpop.permute.xlu0 %658
    %660 = vrot.lane.b32.xlu0 %v501, 19
    %v661 = vpop.permute.xlu0 %660
    %vm662 = vcmp.lt.s32.totalorder %v503, 19
    %v663 = vsel %vm662, %v659, %v661
    %v664 = vsel %vm662, %v661, %v659
    %s665 = sld [smem:[#allocation2 + $0xe]]
    %s666 = sld [smem:[#allocation2 + $0x3f]]
    %v667 = vstv %s666
    %v668 = vstv %s665
    %v669 = vsel %vm615, %v667, %v668
    %v670 = vmul.f32 %v669, %v664
    %v671 = vmul.f32 %v669, %v663
    %v672 = vsel %vm545, 1, 0
    %v673 = vsel %vm546, 1, 0
    %vm674 = vcmp.eq.s32.totalorder %v672, 1
    %vm675 = vcmp.eq.s32.totalorder %v673, 1
    %v676 = vsel %vm674, %v670, 0.0
    %v677 = vsel %vm675, %v671, 0.0
    %v678 = vadd.f32 %v656, %v676
    %v679 = vadd.f32 %v657, %v677
    %680 = vrot.lane.b32.xlu0 %v500, 3
    %v681 = vpop.permute.xlu0 %680
    %682 = vrot.lane.b32.xlu0 %v501, 3
    %v683 = vpop.permute.xlu0 %682
    %vm684 = vcmp.lt.s32.totalorder %v503, 3
    %v685 = vsel %vm684, %v681, %v683
    %v686 = vsel %vm684, %v683, %v681
    %s687 = sld [smem:[#allocation2 + $0x15]]
    %s688 = sld [smem:[#allocation2 + $0x46]]
    %v689 = vstv %s688
    %v690 = vstv %s687
    %v691 = vsel %vm615, %v689, %v690
    %v692 = vmul.f32 %v691, %v686
    %v693 = vmul.f32 %v691, %v685
    %v694 = vsel %vm551, 1, 0
    %v695 = vsel %vm552, 1, 0
    %vm696 = vcmp.eq.s32.totalorder %v694, 1
    %vm697 = vcmp.eq.s32.totalorder %v695, 1
    %v698 = vsel %vm696, %v692, 0.0
    %v699 = vsel %vm697, %v693, 0.0
    %v700 = vadd.f32 %v678, %v698
    %v701 = vadd.f32 %v679, %v699
    %702 = vrot.lane.b32.xlu0 %v500, 115
    %v703 = vpop.permute.xlu0 %702
    %704 = vrot.lane.b32.xlu0 %v501, 115
    %v705 = vpop.permute.xlu0 %704
    %vm706 = vcmp.lt.s32.totalorder %v503, 115
    %v707 = vsel %vm706, %v703, %v705
    %v708 = vsel %vm706, %v705, %v703
    %s709 = sld [smem:[#allocation2 + $0x1c]]
    %s710 = sld [smem:[#allocation2 + $0x4d]]
    %v711 = vstv %s710
    %v712 = vstv %s709
    %v713 = vsel %vm615, %v711, %v712
    %v714 = vmul.f32 %v713, %v707
    %v715 = vmul.f32 %v713, %v708
    %v716 = vsel %vm557, 1, 0
    %v717 = vsel %vm558, 1, 0
    %vm718 = vcmp.eq.s32.totalorder %v716, 1
    %vm719 = vcmp.eq.s32.totalorder %v717, 1
    %v720 = vsel %vm718, %v714, 0.0
    %v721 = vsel %vm719, %v715, 0.0
    %v722 = vadd.f32 %v700, %v720
    %v723 = vadd.f32 %v701, %v721
    %724 = vrot.lane.b32.xlu0 %v500, 99
    %v725 = vpop.permute.xlu0 %724
    %726 = vrot.lane.b32.xlu0 %v501, 99
    %v727 = vpop.permute.xlu0 %726
    %vm728 = vcmp.lt.s32.totalorder %v503, 99
    %v729 = vsel %vm728, %v725, %v727
    %v730 = vsel %vm728, %v727, %v725
    %s731 = sld [smem:[#allocation2 + $0x23]]
    %s732 = sld [smem:[#allocation2 + $0x54]]
    %v733 = vstv %s732
    %v734 = vstv %s731
    %v735 = vsel %vm615, %v733, %v734
    %v736 = vmul.f32 %v735, %v729
    %v737 = vmul.f32 %v735, %v730
    %v738 = vsel %vm563, 1, 0
    %v739 = vsel %vm564, 1, 0
    %vm740 = vcmp.eq.s32.totalorder %v738, 1
    %vm741 = vcmp.eq.s32.totalorder %v739, 1
    %v742 = vsel %vm740, %v736, 0.0
    %v743 = vsel %vm741, %v737, 0.0
    %v744 = vadd.f32 %v722, %v742
    %v745 = vadd.f32 %v723, %v743
    %746 = vrot.lane.b32.xlu0 %v500, 83
    %v747 = vpop.permute.xlu0 %746
    %748 = vrot.lane.b32.xlu0 %v501, 83
    %v749 = vpop.permute.xlu0 %748
    %vm750 = vcmp.lt.s32.totalorder %v503, 83
    %v751 = vsel %vm750, %v747, %v749
    %v752 = vsel %vm750, %v749, %v747
    %s753 = sld [smem:[#allocation2 + $0x2a]]
    %s754 = sld [smem:[#allocation2 + $0x5b]]
    %v755 = vstv %s754
    %v756 = vstv %s753
    %v757 = vsel %vm615, %v755, %v756
    %v758 = vmul.f32 %v757, %v751
    %v759 = vmul.f32 %v757, %v752
    %v760 = vsel %vm569, 1, 0
    %v761 = vsel %vm570, 1, 0
    %vm762 = vcmp.eq.s32.totalorder %v760, 1
    %vm763 = vcmp.eq.s32.totalorder %v761, 1
    %v764 = vsel %vm762, %v758, 0.0
    %v765 = vsel %vm763, %v759, 0.0
    %v766 = vadd.f32 %v744, %v764
    %v767 = vadd.f32 %v745, %v765
    %v768 = vsel %vm575, 1, 0
    %v769 = vsel %vm576, 1, 0
    %vm770 = vcmp.eq.s32.totalorder %v768, 1
    %vm771 = vcmp.eq.s32.totalorder %v769, 1
    %v772 = vsel %vm770, %v766, 0.0
    %v773 = vsel %vm771, %v767, 0.0
    %774 = vrot.lane.b32.xlu0 %v500, 50
    %v775 = vpop.permute.xlu0 %774
    %776 = vrot.lane.b32.xlu0 %v501, 50
    %v777 = vpop.permute.xlu0 %776
    %vm778 = vcmp.lt.s32.totalorder %v503, 50
    %v779 = vsel %vm778, %v775, %v777
    %v780 = vsel %vm778, %v777, %v775
    %s781 = sld [smem:[#allocation2 + $0x1]]
    %s782 = sld [smem:[#allocation2 + $0x32]]
    %v783 = vstv %s782
    %v784 = vstv %s781
    %v785 = vsel %vm615, %v783, %v784
    %v786 = vmul.f32 %v785, %v780
    %v787 = vmul.f32 %v785, %v779
    %v788 = vsel %vm632, %v786, 0.0
    %v789 = vsel %vm633, %v787, 0.0
    %790 = vrot.lane.b32.xlu0 %v500, 34
    %v791 = vpop.permute.xlu0 %790
    %792 = vrot.lane.b32.xlu0 %v501, 34
    %v793 = vpop.permute.xlu0 %792
    %vm794 = vcmp.lt.s32.totalorder %v503, 34
    %v795 = vsel %vm794, %v791, %v793
    %v796 = vsel %vm794, %v793, %v791
    %s797 = sld [smem:[#allocation2 + $0x8]]
    %s798 = sld [smem:[#allocation2 + $0x39]]
    %v799 = vstv %s798
    %v800 = vstv %s797
    %v801 = vsel %vm615, %v799, %v800
    %v802 = vmul.f32 %v801, %v796
    %v803 = vmul.f32 %v801, %v795
    %v804 = vsel %vm652, %v802, 0.0
    %v805 = vsel %vm653, %v803, 0.0
    %v806 = vadd.f32 %v788, %v804
    %v807 = vadd.f32 %v789, %v805
    %808 = vrot.lane.b32.xlu0 %v500, 18
    %v809 = vpop.permute.xlu0 %808
    %810 = vrot.lane.b32.xlu0 %v501, 18
    %v811 = vpop.permute.xlu0 %810
    %vm812 = vcmp.lt.s32.totalorder %v503, 18
    %v813 = vsel %vm812, %v809, %v811
    %v814 = vsel %vm812, %v811, %v809
    %s815 = sld [smem:[#allocation2 + $0xf]]
    %s816 = sld [smem:[#allocation2 + $0x40]]
    %v817 = vstv %s816
    %v818 = vstv %s815
    %v819 = vsel %vm615, %v817, %v818
    %v820 = vmul.f32 %v819, %v814
    %v821 = vmul.f32 %v819, %v813
    %v822 = vsel %vm674, %v820, 0.0
    %v823 = vsel %vm675, %v821, 0.0
    %v824 = vadd.f32 %v806, %v822
    %v825 = vadd.f32 %v807, %v823
    %826 = vrot.lane.b32.xlu0 %v500, 2
    %v827 = vpop.permute.xlu0 %826
    %828 = vrot.lane.b32.xlu0 %v501, 2
    %v829 = vpop.permute.xlu0 %828
    %vm830 = vcmp.lt.s32.totalorder %v503, 2
    %v831 = vsel %vm830, %v827, %v829
    %v832 = vsel %vm830, %v829, %v827
    %s833 = sld [smem:[#allocation2 + $0x16]]
    %s834 = sld [smem:[#allocation2 + $0x47]]
    %v835 = vstv %s834
    %v836 = vstv %s833
    %v837 = vsel %vm615, %v835, %v836
    %v838 = vmul.f32 %v837, %v832
    %v839 = vmul.f32 %v837, %v831
    %v840 = vsel %vm696, %v838, 0.0
    %v841 = vsel %vm697, %v839, 0.0
    %v842 = vadd.f32 %v824, %v840
    %v843 = vadd.f32 %v825, %v841
    %844 = vrot.lane.b32.xlu0 %v500, 114
    %v845 = vpop.permute.xlu0 %844
    %846 = vrot.lane.b32.xlu0 %v501, 114
    %v847 = vpop.permute.xlu0 %846
    %vm848 = vcmp.lt.s32.totalorder %v503, 114
    %v849 = vsel %vm848, %v845, %v847
    %v850 = vsel %vm848, %v847, %v845
    %s851 = sld [smem:[#allocation2 + $0x1d]]
    %s852 = sld [smem:[#allocation2 + $0x4e]]
    %v853 = vstv %s852
    %v854 = vstv %s851
    %v855 = vsel %vm615, %v853, %v854
    %v856 = vmul.f32 %v855, %v849
    %v857 = vmul.f32 %v855, %v850
    %v858 = vsel %vm718, %v856, 0.0
    %v859 = vsel %vm719, %v857, 0.0
    %v860 = vadd.f32 %v842, %v858
    %v861 = vadd.f32 %v843, %v859
    %862 = vrot.lane.b32.xlu0 %v500, 98
    %v863 = vpop.permute.xlu0 %862
    %864 = vrot.lane.b32.xlu0 %v501, 98
    %v865 = vpop.permute.xlu0 %864
    %vm866 = vcmp.lt.s32.totalorder %v503, 98
    %v867 = vsel %vm866, %v863, %v865
    %v868 = vsel %vm866, %v865, %v863
    %s869 = sld [smem:[#allocation2 + $0x24]]
    %s870 = sld [smem:[#allocation2 + $0x55]]
    %v871 = vstv %s870
    %v872 = vstv %s869
    %v873 = vsel %vm615, %v871, %v872
    %v874 = vmul.f32 %v873, %v867
    %v875 = vmul.f32 %v873, %v868
    %v876 = vsel %vm740, %v874, 0.0
    %v877 = vsel %vm741, %v875, 0.0
    %v878 = vadd.f32 %v860, %v876
    %v879 = vadd.f32 %v861, %v877
    %880 = vrot.lane.b32.xlu0 %v500, 82
    %v881 = vpop.permute.xlu0 %880
    %882 = vrot.lane.b32.xlu0 %v501, 82
    %v883 = vpop.permute.xlu0 %882
    %vm884 = vcmp.lt.s32.totalorder %v503, 82
    %v885 = vsel %vm884, %v881, %v883
    %v886 = vsel %vm884, %v883, %v881
    %s887 = sld [smem:[#allocation2 + $0x2b]]
    %s888 = sld [smem:[#allocation2 + $0x5c]]
    %v889 = vstv %s888
    %v890 = vstv %s887
    %v891 = vsel %vm615, %v889, %v890
    %v892 = vmul.f32 %v891, %v885
    %v893 = vmul.f32 %v891, %v886
    %v894 = vsel %vm762, %v892, 0.0
    %v895 = vsel %vm763, %v893, 0.0
    %v896 = vadd.f32 %v878, %v894
    %v897 = vadd.f32 %v879, %v895
    %v898 = vsel %vm581, 1, 0
    %v899 = vsel %vm582, 1, 0
    %vm900 = vcmp.eq.s32.totalorder %v898, 1
    %vm901 = vcmp.eq.s32.totalorder %v899, 1
    %v902 = vsel %vm900, %v896, 0.0
    %v903 = vsel %vm901, %v897, 0.0
    %v904 = vadd.f32 %v772, %v902
    %v905 = vadd.f32 %v773, %v903
    %906 = vrot.lane.b32.xlu0 %v500, 49
    %v907 = vpop.permute.xlu0 %906
    %908 = vrot.lane.b32.xlu0 %v501, 49
    %v909 = vpop.permute.xlu0 %908
    %vm910 = vcmp.lt.s32.totalorder %v503, 49
    %v911 = vsel %vm910, %v907, %v909
    %v912 = vsel %vm910, %v909, %v907
    %s913 = sld [smem:[#allocation2 + $0x2]]
    %s914 = sld [smem:[#allocation2 + $0x33]]
    %v915 = vstv %s914
    %v916 = vstv %s913
    %v917 = vsel %vm615, %v915, %v916
    %v918 = vmul.f32 %v917, %v912
    %v919 = vmul.f32 %v917, %v911
    %v920 = vsel %vm632, %v918, 0.0
    %v921 = vsel %vm633, %v919, 0.0
    %922 = vrot.lane.b32.xlu0 %v500, 33
    %v923 = vpop.permute.xlu0 %922
    %924 = vrot.lane.b32.xlu0 %v501, 33
    %v925 = vpop.permute.xlu0 %924
    %vm926 = vcmp.lt.s32.totalorder %v503, 33
    %v927 = vsel %vm926, %v923, %v925
    %v928 = vsel %vm926, %v925, %v923
    %s929 = sld [smem:[#allocation2 + $0x9]]
    %s930 = sld [smem:[#allocation2 + $0x3a]]
    %v931 = vstv %s930
    %v932 = vstv %s929
    %v933 = vsel %vm615, %v931, %v932
    %v934 = vmul.f32 %v933, %v928
    %v935 = vmul.f32 %v933, %v927
    %v936 = vsel %vm652, %v934, 0.0
    %v937 = vsel %vm653, %v935, 0.0
    %v938 = vadd.f32 %v920, %v936
    %v939 = vadd.f32 %v921, %v937
    %940 = vrot.lane.b32.xlu0 %v500, 17
    %v941 = vpop.permute.xlu0 %940
    %942 = vrot.lane.b32.xlu0 %v501, 17
    %v943 = vpop.permute.xlu0 %942
    %vm944 = vcmp.lt.s32.totalorder %v503, 17
    %v945 = vsel %vm944, %v941, %v943
    %v946 = vsel %vm944, %v943, %v941
    %s947 = sld [smem:[#allocation2 + $0x10]]
    %s948 = sld [smem:[#allocation2 + $0x41]]
    %v949 = vstv %s948
    %v950 = vstv %s947
    %v951 = vsel %vm615, %v949, %v950
    %v952 = vmul.f32 %v951, %v946
    %v953 = vmul.f32 %v951, %v945
    %v954 = vsel %vm674, %v952, 0.0
    %v955 = vsel %vm675, %v953, 0.0
    %v956 = vadd.f32 %v938, %v954
    %v957 = vadd.f32 %v939, %v955
    %958 = vrot.lane.b32.xlu0 %v500, 1
    %v959 = vpop.permute.xlu0 %958
    %960 = vrot.lane.b32.xlu0 %v501, 1
    %v961 = vpop.permute.xlu0 %960
    %vm962 = vcmp.lt.s32.totalorder %v503, 1
    %v963 = vsel %vm962, %v959, %v961
    %v964 = vsel %vm962, %v961, %v959
    %s965 = sld [smem:[#allocation2 + $0x17]]
    %s966 = sld [smem:[#allocation2 + $0x48]]
    %v967 = vstv %s966
    %v968 = vstv %s965
    %v969 = vsel %vm615, %v967, %v968
    %v970 = vmul.f32 %v969, %v964
    %v971 = vmul.f32 %v969, %v963
    %v972 = vsel %vm696, %v970, 0.0
    %v973 = vsel %vm697, %v971, 0.0
    %v974 = vadd.f32 %v956, %v972
    %v975 = vadd.f32 %v957, %v973
    %976 = vrot.lane.b32.xlu0 %v500, 113
    %v977 = vpop.permute.xlu0 %976
    %978 = vrot.lane.b32.xlu0 %v501, 113
    %v979 = vpop.permute.xlu0 %978
    %vm980 = vcmp.lt.s32.totalorder %v503, 113
    %v981 = vsel %vm980, %v977, %v979
    %v982 = vsel %vm980, %v979, %v977
    %s983 = sld [smem:[#allocation2 + $0x1e]]
    %s984 = sld [smem:[#allocation2 + $0x4f]]
    %v985 = vstv %s984
    %v986 = vstv %s983
    %v987 = vsel %vm615, %v985, %v986
    %v988 = vmul.f32 %v987, %v981
    %v989 = vmul.f32 %v987, %v982
    %v990 = vsel %vm718, %v988, 0.0
    %v991 = vsel %vm719, %v989, 0.0
    %v992 = vadd.f32 %v974, %v990
    %v993 = vadd.f32 %v975, %v991
    %994 = vrot.lane.b32.xlu0 %v500, 97
    %v995 = vpop.permute.xlu0 %994
    %996 = vrot.lane.b32.xlu0 %v501, 97
    %v997 = vpop.permute.xlu0 %996
    %vm998 = vcmp.lt.s32.totalorder %v503, 97
    %v999 = vsel %vm998, %v995, %v997
    %v1000 = vsel %vm998, %v997, %v995
    %s1001 = sld [smem:[#allocation2 + $0x25]]
    %s1002 = sld [smem:[#allocation2 + $0x56]]
    %v1003 = vstv %s1002
    %v1004 = vstv %s1001
    %v1005 = vsel %vm615, %v1003, %v1004
    %v1006 = vmul.f32 %v1005, %v999
    %v1007 = vmul.f32 %v1005, %v1000
    %v1008 = vsel %vm740, %v1006, 0.0
    %v1009 = vsel %vm741, %v1007, 0.0
    %v1010 = vadd.f32 %v992, %v1008
    %v1011 = vadd.f32 %v993, %v1009
    %1012 = vrot.lane.b32.xlu0 %v500, 81
    %v1013 = vpop.permute.xlu0 %1012
    %1014 = vrot.lane.b32.xlu0 %v501, 81
    %v1015 = vpop.permute.xlu0 %1014
    %vm1016 = vcmp.lt.s32.totalorder %v503, 81
    %v1017 = vsel %vm1016, %v1013, %v1015
    %v1018 = vsel %vm1016, %v1015, %v1013
    %s1019 = sld [smem:[#allocation2 + $0x2c]]
    %s1020 = sld [smem:[#allocation2 + $0x5d]]
    %v1021 = vstv %s1020
    %v1022 = vstv %s1019
    %v1023 = vsel %vm615, %v1021, %v1022
    %v1024 = vmul.f32 %v1023, %v1017
    %v1025 = vmul.f32 %v1023, %v1018
    %v1026 = vsel %vm762, %v1024, 0.0
    %v1027 = vsel %vm763, %v1025, 0.0
    %v1028 = vadd.f32 %v1010, %v1026
    %v1029 = vadd.f32 %v1011, %v1027
    %v1030 = vsel %vm587, 1, 0
    %v1031 = vsel %vm588, 1, 0
    %vm1032 = vcmp.eq.s32.totalorder %v1030, 1
    %vm1033 = vcmp.eq.s32.totalorder %v1031, 1
    %v1034 = vsel %vm1032, %v1028, 0.0
    %v1035 = vsel %vm1033, %v1029, 0.0
    %v1036 = vadd.f32 %v904, %v1034
    %v1037 = vadd.f32 %v905, %v1035
    %1038 = vrot.lane.b32.xlu0 %v500, 48
    %v1039 = vpop.permute.xlu0 %1038
    %1040 = vrot.lane.b32.xlu0 %v501, 48
    %v1041 = vpop.permute.xlu0 %1040
    %vm1042 = vcmp.lt.s32.totalorder %v503, 48
    %v1043 = vsel %vm1042, %v1039, %v1041
    %v1044 = vsel %vm1042, %v1041, %v1039
    %s1045 = sld [smem:[#allocation2 + $0x3]]
    %s1046 = sld [smem:[#allocation2 + $0x34]]
    %v1047 = vstv %s1046
    %v1048 = vstv %s1045
    %v1049 = vsel %vm615, %v1047, %v1048
    %v1050 = vmul.f32 %v1049, %v1044
    %v1051 = vmul.f32 %v1049, %v1043
    %v1052 = vsel %vm632, %v1050, 0.0
    %v1053 = vsel %vm633, %v1051, 0.0
    %1054 = vrot.lane.b32.xlu0 %v500, 32
    %v1055 = vpop.permute.xlu0 %1054
    %1056 = vrot.lane.b32.xlu0 %v501, 32
    %v1057 = vpop.permute.xlu0 %1056
    %vm1058 = vcmp.lt.s32.totalorder %v503, 32
    %v1059 = vsel %vm1058, %v1055, %v1057
    %v1060 = vsel %vm1058, %v1057, %v1055
    %s1061 = sld [smem:[#allocation2 + $0xa]]
    %s1062 = sld [smem:[#allocation2 + $0x3b]]
    %v1063 = vstv %s1062
    %v1064 = vstv %s1061
    %v1065 = vsel %vm615, %v1063, %v1064
    %v1066 = vmul.f32 %v1065, %v1060
    %v1067 = vmul.f32 %v1065, %v1059
    %v1068 = vsel %vm652, %v1066, 0.0
    %v1069 = vsel %vm653, %v1067, 0.0
    %v1070 = vadd.f32 %v1052, %v1068
    %v1071 = vadd.f32 %v1053, %v1069
    %1072 = vrot.lane.b32.xlu0 %v500, 16
    %v1073 = vpop.permute.xlu0 %1072
    %1074 = vrot.lane.b32.xlu0 %v501, 16
    %v1075 = vpop.permute.xlu0 %1074
    %vm1076 = vcmp.lt.s32.totalorder %v503, 16
    %v1077 = vsel %vm1076, %v1073, %v1075
    %v1078 = vsel %vm1076, %v1075, %v1073
    %s1079 = sld [smem:[#allocation2 + $0x11]]
    %s1080 = sld [smem:[#allocation2 + $0x42]]
    %v1081 = vstv %s1080
    %v1082 = vstv %s1079
    %v1083 = vsel %vm615, %v1081, %v1082
    %v1084 = vmul.f32 %v1083, %v1078
    %v1085 = vmul.f32 %v1083, %v1077
    %v1086 = vsel %vm674, %v1084, 0.0
    %v1087 = vsel %vm675, %v1085, 0.0
    %v1088 = vadd.f32 %v1070, %v1086
    %v1089 = vadd.f32 %v1071, %v1087
    %s1090 = sld [smem:[#allocation2 + $0x18]]
    %s1091 = sld [smem:[#allocation2 + $0x49]]
    %v1092 = vstv %s1091
    %v1093 = vstv %s1090
    %v1094 = vsel %vm615, %v1092, %v1093
    %v1095 = vmul.f32 %v1094, %v500
    %v1096 = vmul.f32 %v1094, %v501
    %v1097 = vsel %vm696, %v1095, 0.0
    %v1098 = vsel %vm697, %v1096, 0.0
    %v1099 = vadd.f32 %v1088, %v1097
    %v1100 = vadd.f32 %v1089, %v1098
    %1101 = vrot.lane.b32.xlu0 %v500, 112
    %v1102 = vpop.permute.xlu0 %1101
    %1103 = vrot.lane.b32.xlu0 %v501, 112
    %v1104 = vpop.permute.xlu0 %1103
    %vm1105 = vcmp.lt.s32.totalorder %v503, 112
    %v1106 = vsel %vm1105, %v1102, %v1104
    %v1107 = vsel %vm1105, %v1104, %v1102
    %s1108 = sld [smem:[#allocation2 + $0x1f]]
    %s1109 = sld [smem:[#allocation2 + $0x50]]
    %v1110 = vstv %s1109
    %v1111 = vstv %s1108
    %v1112 = vsel %vm615, %v1110, %v1111
    %v1113 = vmul.f32 %v1112, %v1106
    %v1114 = vmul.f32 %v1112, %v1107
    %v1115 = vsel %vm718, %v1113, 0.0
    %v1116 = vsel %vm719, %v1114, 0.0
    %v1117 = vadd.f32 %v1099, %v1115
    %v1118 = vadd.f32 %v1100, %v1116
    %1119 = vrot.lane.b32.xlu0 %v500, 96
    %v1120 = vpop.permute.xlu0 %1119
    %1121 = vrot.lane.b32.xlu0 %v501, 96
    %v1122 = vpop.permute.xlu0 %1121
    %vm1123 = vcmp.lt.s32.totalorder %v503, 96
    %v1124 = vsel %vm1123, %v1120, %v1122
    %v1125 = vsel %vm1123, %v1122, %v1120
    %s1126 = sld [smem:[#allocation2 + $0x26]]
    %s1127 = sld [smem:[#allocation2 + $0x57]]
    %v1128 = vstv %s1127
    %v1129 = vstv %s1126
    %v1130 = vsel %vm615, %v1128, %v1129
    %v1131 = vmul.f32 %v1130, %v1124
    %v1132 = vmul.f32 %v1130, %v1125
    %v1133 = vsel %vm740, %v1131, 0.0
    %v1134 = vsel %vm741, %v1132, 0.0
    %v1135 = vadd.f32 %v1117, %v1133
    %v1136 = vadd.f32 %v1118, %v1134
    %1137 = vrot.lane.b32.xlu0 %v500, 80
    %v1138 = vpop.permute.xlu0 %1137
    %1139 = vrot.lane.b32.xlu0 %v501, 80
    %v1140 = vpop.permute.xlu0 %1139
    %vm1141 = vcmp.lt.s32.totalorder %v503, 80
    %v1142 = vsel %vm1141, %v1138, %v1140
    %v1143 = vsel %vm1141, %v1140, %v1138
    %s1144 = sld [smem:[#allocation2 + $0x2d]]
    %s1145 = sld [smem:[#allocation2 + $0x5e]]
    %v1146 = vstv %s1145
    %v1147 = vstv %s1144
    %v1148 = vsel %vm615, %v1146, %v1147
    %v1149 = vmul.f32 %v1148, %v1142
    %v1150 = vmul.f32 %v1148, %v1143
    %v1151 = vsel %vm762, %v1149, 0.0
    %v1152 = vsel %vm763, %v1150, 0.0
    %v1153 = vadd.f32 %v1135, %v1151
    %v1154 = vadd.f32 %v1136, %v1152
    %v1155 = vsel %vm593, 1, 0
    %v1156 = vsel %vm594, 1, 0
    %vm1157 = vcmp.eq.s32.totalorder %v1155, 1
    %vm1158 = vcmp.eq.s32.totalorder %v1156, 1
    %v1159 = vsel %vm1157, %v1153, 0.0
    %v1160 = vsel %vm1158, %v1154, 0.0
    %v1161 = vadd.f32 %v1036, %v1159
    %v1162 = vadd.f32 %v1037, %v1160
    %1163 = vrot.lane.b32.xlu0 %v500, 47
    %v1164 = vpop.permute.xlu0 %1163
    %1165 = vrot.lane.b32.xlu0 %v501, 47
    %v1166 = vpop.permute.xlu0 %1165
    %vm1167 = vcmp.lt.s32.totalorder %v503, 47
    %v1168 = vsel %vm1167, %v1164, %v1166
    %v1169 = vsel %vm1167, %v1166, %v1164
    %s1170 = sld [smem:[#allocation2 + $0x4]]
    %s1171 = sld [smem:[#allocation2 + $0x35]]
    %v1172 = vstv %s1171
    %v1173 = vstv %s1170
    %v1174 = vsel %vm615, %v1172, %v1173
    %v1175 = vmul.f32 %v1174, %v1169
    %v1176 = vmul.f32 %v1174, %v1168
    %v1177 = vsel %vm632, %v1175, 0.0
    %v1178 = vsel %vm633, %v1176, 0.0
    %1179 = vrot.lane.b32.xlu0 %v500, 31
    %v1180 = vpop.permute.xlu0 %1179
    %1181 = vrot.lane.b32.xlu0 %v501, 31
    %v1182 = vpop.permute.xlu0 %1181
    %vm1183 = vcmp.lt.s32.totalorder %v503, 31
    %v1184 = vsel %vm1183, %v1180, %v1182
    %v1185 = vsel %vm1183, %v1182, %v1180
    %s1186 = sld [smem:[#allocation2 + $0xb]]
    %s1187 = sld [smem:[#allocation2 + $0x3c]]
    %v1188 = vstv %s1187
    %v1189 = vstv %s1186
    %v1190 = vsel %vm615, %v1188, %v1189
    %v1191 = vmul.f32 %v1190, %v1185
    %v1192 = vmul.f32 %v1190, %v1184
    %v1193 = vsel %vm652, %v1191, 0.0
    %v1194 = vsel %vm653, %v1192, 0.0
    %v1195 = vadd.f32 %v1177, %v1193
    %v1196 = vadd.f32 %v1178, %v1194
    %1197 = vrot.lane.b32.xlu0 %v500, 15
    %v1198 = vpop.permute.xlu0 %1197
    %1199 = vrot.lane.b32.xlu0 %v501, 15
    %v1200 = vpop.permute.xlu0 %1199
    %vm1201 = vcmp.lt.s32.totalorder %v503, 15
    %v1202 = vsel %vm1201, %v1198, %v1200
    %v1203 = vsel %vm1201, %v1200, %v1198
    %s1204 = sld [smem:[#allocation2 + $0x12]]
    %s1205 = sld [smem:[#allocation2 + $0x43]]
    %v1206 = vstv %s1205
    %v1207 = vstv %s1204
    %v1208 = vsel %vm615, %v1206, %v1207
    %v1209 = vmul.f32 %v1208, %v1203
    %v1210 = vmul.f32 %v1208, %v1202
    %v1211 = vsel %vm674, %v1209, 0.0
    %v1212 = vsel %vm675, %v1210, 0.0
    %v1213 = vadd.f32 %v1195, %v1211
    %v1214 = vadd.f32 %v1196, %v1212
    %1215 = vrot.lane.b32.xlu0 %v500, 127
    %v1216 = vpop.permute.xlu0 %1215
    %1217 = vrot.lane.b32.xlu0 %v501, 127
    %v1218 = vpop.permute.xlu0 %1217
    %vm1219 = vcmp.lt.s32.totalorder %v503, 127
    %v1220 = vsel %vm1219, %v1216, %v1218
    %v1221 = vsel %vm1219, %v1218, %v1216
    %s1222 = sld [smem:[#allocation2 + $0x19]]
    %s1223 = sld [smem:[#allocation2 + $0x4a]]
    %v1224 = vstv %s1223
    %v1225 = vstv %s1222
    %v1226 = vsel %vm615, %v1224, %v1225
    %v1227 = vmul.f32 %v1226, %v1220
    %v1228 = vmul.f32 %v1226, %v1221
    %v1229 = vsel %vm696, %v1227, 0.0
    %v1230 = vsel %vm697, %v1228, 0.0
    %v1231 = vadd.f32 %v1213, %v1229
    %v1232 = vadd.f32 %v1214, %v1230
    %1233 = vrot.lane.b32.xlu0 %v500, 111
    %v1234 = vpop.permute.xlu0 %1233
    %1235 = vrot.lane.b32.xlu0 %v501, 111
    %v1236 = vpop.permute.xlu0 %1235
    %vm1237 = vcmp.lt.s32.totalorder %v503, 111
    %v1238 = vsel %vm1237, %v1234, %v1236
    %v1239 = vsel %vm1237, %v1236, %v1234
    %s1240 = sld [smem:[#allocation2 + $0x20]]
    %s1241 = sld [smem:[#allocation2 + $0x51]]
    %v1242 = vstv %s1241
    %v1243 = vstv %s1240
    %v1244 = vsel %vm615, %v1242, %v1243
    %v1245 = vmul.f32 %v1244, %v1238
    %v1246 = vmul.f32 %v1244, %v1239
    %v1247 = vsel %vm718, %v1245, 0.0
    %v1248 = vsel %vm719, %v1246, 0.0
    %v1249 = vadd.f32 %v1231, %v1247
    %v1250 = vadd.f32 %v1232, %v1248
    %1251 = vrot.lane.b32.xlu0 %v500, 95
    %v1252 = vpop.permute.xlu0 %1251
    %1253 = vrot.lane.b32.xlu0 %v501, 95
    %v1254 = vpop.permute.xlu0 %1253
    %vm1255 = vcmp.lt.s32.totalorder %v503, 95
    %v1256 = vsel %vm1255, %v1252, %v1254
    %v1257 = vsel %vm1255, %v1254, %v1252
    %s1258 = sld [smem:[#allocation2 + $0x27]]
    %s1259 = sld [smem:[#allocation2 + $0x58]]
    %v1260 = vstv %s1259
    %v1261 = vstv %s1258
    %v1262 = vsel %vm615, %v1260, %v1261
    %v1263 = vmul.f32 %v1262, %v1256
    %v1264 = vmul.f32 %v1262, %v1257
    %v1265 = vsel %vm740, %v1263, 0.0
    %v1266 = vsel %vm741, %v1264, 0.0
    %v1267 = vadd.f32 %v1249, %v1265
    %v1268 = vadd.f32 %v1250, %v1266
    %1269 = vrot.lane.b32.xlu0 %v500, 79
    %v1270 = vpop.permute.xlu0 %1269
    %1271 = vrot.lane.b32.xlu0 %v501, 79
    %v1272 = vpop.permute.xlu0 %1271
    %vm1273 = vcmp.lt.s32.totalorder %v503, 79
    %v1274 = vsel %vm1273, %v1270, %v1272
    %v1275 = vsel %vm1273, %v1272, %v1270
    %s1276 = sld [smem:[#allocation2 + $0x2e]]
    %s1277 = sld [smem:[#allocation2 + $0x5f]]
    %v1278 = vstv %s1277
    %v1279 = vstv %s1276
    %v1280 = vsel %vm615, %v1278, %v1279
    %v1281 = vmul.f32 %v1280, %v1274
    %v1282 = vmul.f32 %v1280, %v1275
    %v1283 = vsel %vm762, %v1281, 0.0
    %v1284 = vsel %vm763, %v1282, 0.0
    %v1285 = vadd.f32 %v1267, %v1283
    %v1286 = vadd.f32 %v1268, %v1284
    %v1287 = vsel %vm599, 1, 0
    %v1288 = vsel %vm600, 1, 0
    %vm1289 = vcmp.eq.s32.totalorder %v1287, 1
    %vm1290 = vcmp.eq.s32.totalorder %v1288, 1
    %v1291 = vsel %vm1289, %v1285, 0.0
    %v1292 = vsel %vm1290, %v1286, 0.0
    %v1293 = vadd.f32 %v1161, %v1291
    %v1294 = vadd.f32 %v1162, %v1292
    %1295 = vrot.lane.b32.xlu0 %v500, 46
    %v1296 = vpop.permute.xlu0 %1295
    %1297 = vrot.lane.b32.xlu0 %v501, 46
    %v1298 = vpop.permute.xlu0 %1297
    %vm1299 = vcmp.lt.s32.totalorder %v503, 46
    %v1300 = vsel %vm1299, %v1296, %v1298
    %v1301 = vsel %vm1299, %v1298, %v1296
    %s1302 = sld [smem:[#allocation2 + $0x5]]
    %s1303 = sld [smem:[#allocation2 + $0x36]]
    %v1304 = vstv %s1303
    %v1305 = vstv %s1302
    %v1306 = vsel %vm615, %v1304, %v1305
    %v1307 = vmul.f32 %v1306, %v1301
    %v1308 = vmul.f32 %v1306, %v1300
    %v1309 = vsel %vm632, %v1307, 0.0
    %v1310 = vsel %vm633, %v1308, 0.0
    %1311 = vrot.lane.b32.xlu0 %v500, 30
    %v1312 = vpop.permute.xlu0 %1311
    %1313 = vrot.lane.b32.xlu0 %v501, 30
    %v1314 = vpop.permute.xlu0 %1313
    %vm1315 = vcmp.lt.s32.totalorder %v503, 30
    %v1316 = vsel %vm1315, %v1312, %v1314
    %v1317 = vsel %vm1315, %v1314, %v1312
    %s1318 = sld [smem:[#allocation2 + $0xc]]
    %s1319 = sld [smem:[#allocation2 + $0x3d]]
    %v1320 = vstv %s1319
    %v1321 = vstv %s1318
    %v1322 = vsel %vm615, %v1320, %v1321
    %v1323 = vmul.f32 %v1322, %v1317
    %v1324 = vmul.f32 %v1322, %v1316
    %v1325 = vsel %vm652, %v1323, 0.0
    %v1326 = vsel %vm653, %v1324, 0.0
    %v1327 = vadd.f32 %v1309, %v1325
    %v1328 = vadd.f32 %v1310, %v1326
    %1329 = vrot.lane.b32.xlu0 %v500, 14
    %v1330 = vpop.permute.xlu0 %1329
    %1331 = vrot.lane.b32.xlu0 %v501, 14
    %v1332 = vpop.permute.xlu0 %1331
    %vm1333 = vcmp.lt.s32.totalorder %v503, 14
    %v1334 = vsel %vm1333, %v1330, %v1332
    %v1335 = vsel %vm1333, %v1332, %v1330
    %s1336 = sld [smem:[#allocation2 + $0x13]]
    %s1337 = sld [smem:[#allocation2 + $0x44]]
    %v1338 = vstv %s1337
    %v1339 = vstv %s1336
    %v1340 = vsel %vm615, %v1338, %v1339
    %v1341 = vmul.f32 %v1340, %v1335
    %v1342 = vmul.f32 %v1340, %v1334
    %v1343 = vsel %vm674, %v1341, 0.0
    %v1344 = vsel %vm675, %v1342, 0.0
    %v1345 = vadd.f32 %v1327, %v1343
    %v1346 = vadd.f32 %v1328, %v1344
    %1347 = vrot.lane.b32.xlu0 %v500, 126
    %v1348 = vpop.permute.xlu0 %1347
    %1349 = vrot.lane.b32.xlu0 %v501, 126
    %v1350 = vpop.permute.xlu0 %1349
    %vm1351 = vcmp.lt.s32.totalorder %v503, 126
    %v1352 = vsel %vm1351, %v1348, %v1350
    %v1353 = vsel %vm1351, %v1350, %v1348
    %s1354 = sld [smem:[#allocation2 + $0x1a]]
    %s1355 = sld [smem:[#allocation2 + $0x4b]]
    %v1356 = vstv %s1355
    %v1357 = vstv %s1354
    %v1358 = vsel %vm615, %v1356, %v1357
    %v1359 = vmul.f32 %v1358, %v1352
    %v1360 = vmul.f32 %v1358, %v1353
    %v1361 = vsel %vm696, %v1359, 0.0
    %v1362 = vsel %vm697, %v1360, 0.0
    %v1363 = vadd.f32 %v1345, %v1361
    %v1364 = vadd.f32 %v1346, %v1362
    %1365 = vrot.lane.b32.xlu0 %v500, 110
    %v1366 = vpop.permute.xlu0 %1365
    %1367 = vrot.lane.b32.xlu0 %v501, 110
    %v1368 = vpop.permute.xlu0 %1367
    %vm1369 = vcmp.lt.s32.totalorder %v503, 110
    %v1370 = vsel %vm1369, %v1366, %v1368
    %v1371 = vsel %vm1369, %v1368, %v1366
    %s1372 = sld [smem:[#allocation2 + $0x21]]
    %s1373 = sld [smem:[#allocation2 + $0x52]]
    %v1374 = vstv %s1373
    %v1375 = vstv %s1372
    %v1376 = vsel %vm615, %v1374, %v1375
    %v1377 = vmul.f32 %v1376, %v1370
    %v1378 = vmul.f32 %v1376, %v1371
    %v1379 = vsel %vm718, %v1377, 0.0
    %v1380 = vsel %vm719, %v1378, 0.0
    %v1381 = vadd.f32 %v1363, %v1379
    %v1382 = vadd.f32 %v1364, %v1380
    %1383 = vrot.lane.b32.xlu0 %v500, 94
    %v1384 = vpop.permute.xlu0 %1383
    %1385 = vrot.lane.b32.xlu0 %v501, 94
    %v1386 = vpop.permute.xlu0 %1385
    %vm1387 = vcmp.lt.s32.totalorder %v503, 94
    %v1388 = vsel %vm1387, %v1384, %v1386
    %v1389 = vsel %vm1387, %v1386, %v1384
    %s1390 = sld [smem:[#allocation2 + $0x28]]
    %s1391 = sld [smem:[#allocation2 + $0x59]]
    %v1392 = vstv %s1391
    %v1393 = vstv %s1390
    %v1394 = vsel %vm615, %v1392, %v1393
    %v1395 = vmul.f32 %v1394, %v1388
    %v1396 = vmul.f32 %v1394, %v1389
    %v1397 = vsel %vm740, %v1395, 0.0
    %v1398 = vsel %vm741, %v1396, 0.0
    %v1399 = vadd.f32 %v1381, %v1397
    %v1400 = vadd.f32 %v1382, %v1398
    %1401 = vrot.lane.b32.xlu0 %v500, 78
    %v1402 = vpop.permute.xlu0 %1401
    %1403 = vrot.lane.b32.xlu0 %v501, 78
    %v1404 = vpop.permute.xlu0 %1403
    %vm1405 = vcmp.lt.s32.totalorder %v503, 78
    %v1406 = vsel %vm1405, %v1402, %v1404
    %v1407 = vsel %vm1405, %v1404, %v1402
    %s1408 = sld [smem:[#allocation2 + $0x2f]]
    %s1409 = sld [smem:[#allocation2 + $0x60]]
    %v1410 = vstv %s1409
    %v1411 = vstv %s1408
    %v1412 = vsel %vm615, %v1410, %v1411
    %v1413 = vmul.f32 %v1412, %v1406
    %v1414 = vmul.f32 %v1412, %v1407
    %v1415 = vsel %vm762, %v1413, 0.0
    %v1416 = vsel %vm763, %v1414, 0.0
    %v1417 = vadd.f32 %v1399, %v1415
    %v1418 = vadd.f32 %v1400, %v1416
    %v1419 = vsel %vm605, 1, 0
    %v1420 = vsel %vm606, 1, 0
    %vm1421 = vcmp.eq.s32.totalorder %v1419, 1
    %vm1422 = vcmp.eq.s32.totalorder %v1420, 1
    %v1423 = vsel %vm1421, %v1417, 0.0
    %v1424 = vsel %vm1422, %v1418, 0.0
    %v1425 = vadd.f32 %v1293, %v1423
    %v1426 = vadd.f32 %v1294, %v1424
    %1427 = vrot.lane.b32.xlu0 %v500, 45
    %v1428 = vpop.permute.xlu0 %1427
    %1429 = vrot.lane.b32.xlu0 %v501, 45
    %v1430 = vpop.permute.xlu0 %1429
    %vm1431 = vcmp.lt.s32.totalorder %v503, 45
    %v1432 = vsel %vm1431, %v1428, %v1430
    %v1433 = vsel %vm1431, %v1430, %v1428
    %s1434 = sld [smem:[#allocation2 + $0x6]]
    %s1435 = sld [smem:[#allocation2 + $0x37]]
    %v1436 = vstv %s1435
    %v1437 = vstv %s1434
    %v1438 = vsel %vm615, %v1436, %v1437
    %v1439 = vmul.f32 %v1438, %v1433
    %v1440 = vmul.f32 %v1438, %v1432
    %v1441 = vsel %vm632, %v1439, 0.0
    %v1442 = vsel %vm633, %v1440, 0.0
    %1443 = vrot.lane.b32.xlu0 %v500, 29
    %v1444 = vpop.permute.xlu0 %1443
    %1445 = vrot.lane.b32.xlu0 %v501, 29
    %v1446 = vpop.permute.xlu0 %1445
    %vm1447 = vcmp.lt.s32.totalorder %v503, 29
    %v1448 = vsel %vm1447, %v1444, %v1446
    %v1449 = vsel %vm1447, %v1446, %v1444
    %s1450 = sld [smem:[#allocation2 + $0xd]]
    %s1451 = sld [smem:[#allocation2 + $0x3e]]
    %v1452 = vstv %s1451
    %v1453 = vstv %s1450
    %v1454 = vsel %vm615, %v1452, %v1453
    %v1455 = vmul.f32 %v1454, %v1449
    %v1456 = vmul.f32 %v1454, %v1448
    %v1457 = vsel %vm652, %v1455, 0.0
    %v1458 = vsel %vm653, %v1456, 0.0
    %v1459 = vadd.f32 %v1441, %v1457
    %v1460 = vadd.f32 %v1442, %v1458
    %1461 = vrot.lane.b32.xlu0 %v500, 13
    %v1462 = vpop.permute.xlu0 %1461
    %1463 = vrot.lane.b32.xlu0 %v501, 13
    %v1464 = vpop.permute.xlu0 %1463
    %vm1465 = vcmp.lt.s32.totalorder %v503, 13
    %v1466 = vsel %vm1465, %v1462, %v1464
    %v1467 = vsel %vm1465, %v1464, %v1462
    %s1468 = sld [smem:[#allocation2 + $0x14]]
    %s1469 = sld [smem:[#allocation2 + $0x45]]
    %v1470 = vstv %s1469
    %v1471 = vstv %s1468
    %v1472 = vsel %vm615, %v1470, %v1471
    %v1473 = vmul.f32 %v1472, %v1467
    %v1474 = vmul.f32 %v1472, %v1466
    %v1475 = vsel %vm674, %v1473, 0.0
    %v1476 = vsel %vm675, %v1474, 0.0
    %v1477 = vadd.f32 %v1459, %v1475
    %v1478 = vadd.f32 %v1460, %v1476
    %1479 = vrot.lane.b32.xlu0 %v500, 125
    %v1480 = vpop.permute.xlu0 %1479
    %1481 = vrot.lane.b32.xlu0 %v501, 125
    %v1482 = vpop.permute.xlu0 %1481
    %vm1483 = vcmp.lt.s32.totalorder %v503, 125
    %v1484 = vsel %vm1483, %v1480, %v1482
    %v1485 = vsel %vm1483, %v1482, %v1480
    %s1486 = sld [smem:[#allocation2 + $0x1b]]
    %s1487 = sld [smem:[#allocation2 + $0x4c]]
    %v1488 = vstv %s1487
    %v1489 = vstv %s1486
    %v1490 = vsel %vm615, %v1488, %v1489
    %v1491 = vmul.f32 %v1490, %v1484
    %v1492 = vmul.f32 %v1490, %v1485
    %v1493 = vsel %vm696, %v1491, 0.0
    %v1494 = vsel %vm697, %v1492, 0.0
    %v1495 = vadd.f32 %v1477, %v1493
    %v1496 = vadd.f32 %v1478, %v1494
    %1497 = vrot.lane.b32.xlu0 %v500, 109
    %v1498 = vpop.permute.xlu0 %1497
    %1499 = vrot.lane.b32.xlu0 %v501, 109
    %v1500 = vpop.permute.xlu0 %1499
    %vm1501 = vcmp.lt.s32.totalorder %v503, 109
    %v1502 = vsel %vm1501, %v1498, %v1500
    %v1503 = vsel %vm1501, %v1500, %v1498
    %s1504 = sld [smem:[#allocation2 + $0x22]]
    %s1505 = sld [smem:[#allocation2 + $0x53]]
    %v1506 = vstv %s1505
    %v1507 = vstv %s1504
    %v1508 = vsel %vm615, %v1506, %v1507
    %v1509 = vmul.f32 %v1508, %v1502
    %v1510 = vmul.f32 %v1508, %v1503
    %v1511 = vsel %vm718, %v1509, 0.0
    %v1512 = vsel %vm719, %v1510, 0.0
    %v1513 = vadd.f32 %v1495, %v1511
    %v1514 = vadd.f32 %v1496, %v1512
    %1515 = vrot.lane.b32.xlu0 %v500, 93
    %v1516 = vpop.permute.xlu0 %1515
    %1517 = vrot.lane.b32.xlu0 %v501, 93
    %v1518 = vpop.permute.xlu0 %1517
    %vm1519 = vcmp.lt.s32.totalorder %v503, 93
    %v1520 = vsel %vm1519, %v1516, %v1518
    %v1521 = vsel %vm1519, %v1518, %v1516
    %s1522 = sld [smem:[#allocation2 + $0x29]]
    %s1523 = sld [smem:[#allocation2 + $0x5a]]
    %v1524 = vstv %s1523
    %v1525 = vstv %s1522
    %v1526 = vsel %vm615, %v1524, %v1525
    %v1527 = vmul.f32 %v1526, %v1520
    %v1528 = vmul.f32 %v1526, %v1521
    %v1529 = vsel %vm740, %v1527, 0.0
    %v1530 = vsel %vm741, %v1528, 0.0
    %v1531 = vadd.f32 %v1513, %v1529
    %v1532 = vadd.f32 %v1514, %v1530
    %1533 = vrot.lane.b32.xlu0 %v500, 77
    %v1534 = vpop.permute.xlu0 %1533
    %1535 = vrot.lane.b32.xlu0 %v501, 77
    %v1536 = vpop.permute.xlu0 %1535
    %vm1537 = vcmp.lt.s32.totalorder %v503, 77
    %v1538 = vsel %vm1537, %v1534, %v1536
    %v1539 = vsel %vm1537, %v1536, %v1534
    %s1540 = sld [smem:[#allocation2 + $0x30]]
    %s1541 = sld [smem:[#allocation2 + $0x61]]
    %v1542 = vstv %s1541
    %v1543 = vstv %s1540
    %v1544 = vsel %vm615, %v1542, %v1543
    %v1545 = vmul.f32 %v1544, %v1538
    %v1546 = vmul.f32 %v1544, %v1539
    %v1547 = vsel %vm762, %v1545, 0.0
    %v1548 = vsel %vm763, %v1546, 0.0
    %v1549 = vadd.f32 %v1531, %v1547
    %v1550 = vadd.f32 %v1532, %v1548
    %v1551 = vsel %vm611, 1, 0
    %v1552 = vsel %vm612, 1, 0
    %vm1553 = vcmp.eq.s32.totalorder %v1551, 1
    %vm1554 = vcmp.eq.s32.totalorder %v1552, 1
    %v1555 = vsel %vm1553, %v1549, 0.0
    %v1556 = vsel %vm1554, %v1550, 0.0
    %v1557 = vadd.f32 %v1425, %v1555
    %v1558 = vadd.f32 %v1426, %v1556
    %v1561 = vrot.slane %v1557, 2
    %v1562 = vrot.slane %v1558, 2
    %v1565 = vadd.f32 %v1557, %v1561
    %v1566 = vadd.f32 %v1558, %v1562
    %v1567 = vxor.u32 %v1565, 2147483648
    %v1568 = vxor.u32 %v1566, 2147483648
    %v1569 = vmul.f32 %v1567, 1.442695
    %v1570 = vpow.pop %v1569
    %v1571 = vmul.f32 %v1568, 1.442695
    %v1572 = vpow.pop %v1571
    %v1573 = vadd.f32 %v1570, 1.0
    %v1574 = vadd.f32 %v1572, 1.0
    %v1575 = vrcp.pop %v1573
    %v1576 = vmul.f32 %v1573, %v1575
    %v1577 = vsub.f32 1.0, %v1576
    %v1578 = vmul.f32 %v1575, %v1577
    %v1579 = vadd.f32 %v1575, %v1578
    %vm1580 = vweird.f32 %v1573
    %vm1581 = vweird.f32 %v1575
    %vm1582 = vmor %vm1580, %vm1581
    %v1583 = vsel %vm1582, %v1575, %v1579
    %v1584 = vand.u32 2147483647, %v1573
    %vm1585 = vcmp.eq.f32.partialorder %v1584, 8.507059e+37
    %v1586 = vand.u32 %v1573, 2147483648
    %v1587 = vor.u32 1.1754944e-38, %v1586
    %v1588 = vsel %vm1585, %v1587, %v1583
    %v1589 = vmul.f32 1.0, %v1588
    %v1590 = vrcp.pop %v1574
    %v1591 = vmul.f32 %v1574, %v1590
    %v1592 = vsub.f32 1.0, %v1591
    %v1593 = vmul.f32 %v1590, %v1592
    %v1594 = vadd.f32 %v1590, %v1593
    %vm1595 = vweird.f32 %v1574
    %vm1596 = vweird.f32 %v1590
    %vm1597 = vmor %vm1595, %vm1596
    %v1598 = vsel %vm1597, %v1590, %v1594
    %v1599 = vand.u32 2147483647, %v1574
    %vm1600 = vcmp.eq.f32.partialorder %v1599, 8.507059e+37
    %v1601 = vand.u32 %v1574, 2147483648
    %v1602 = vor.u32 1.1754944e-38, %v1601
    %v1603 = vsel %vm1600, %v1602, %v1598
    %v1604 = vmul.f32 1.0, %v1603
    %v1605 = vperm.slane %v1589, 0
    %v1606 = vperm.slane %v1604, 0
    %v1607 = vmul.f32 %v228, %v1605
    %v1608 = vmul.f32 %v229, %v1606
    %v1609 = vmul.f32 %v230, %v1605
    %v1610 = vmul.f32 %v231, %v1606
    %v1611 = vmul.f32 %v232, %v1605
    %v1612 = vmul.f32 %v233, %v1606
    %v1613 = vmul.f32 %v234, %v1605
    %v1614 = vmul.f32 %v235, %v1606
    %1615 = vst [vmem:[#allocation7] sm:$0xff] %v1607
    %1616 = vst [vmem:[#allocation7 + $0x8] sm:$0xff] %v1608
    %1617 = vst [vmem:[#allocation7 + $0x10] sm:$0xff] %v1609
    %1618 = vst [vmem:[#allocation7 + $0x18] sm:$0xff] %v1610
    %1619 = vst [vmem:[#allocation7 + $0x20] sm:$0xff] %v1611
    %1620 = vst [vmem:[#allocation7 + $0x28] sm:$0xff] %v1612
    %1621 = vst [vmem:[#allocation7 + $0x30] sm:$0xff] %v1613
    %1622 = vst [vmem:[#allocation7 + $0x38] sm:$0xff] %v1614
    %v1623 = vld [vmem:[%s281] sm:$0xff]
    %v1624 = vld [vmem:[%s281 + $0x8] sm:$0xff]
    %v1625 = vld [vmem:[%s281 + $0x10] sm:$0xff]
    %v1626 = vld [vmem:[%s281 + $0x18] sm:$0xff]
    %v1627 = vld [vmem:[%s281 + $0x20] sm:$0xff]
    %v1628 = vld [vmem:[%s281 + $0x28] sm:$0xff]
    %v1629 = vld [vmem:[%s281 + $0x30] sm:$0xff]
    %v1630 = vld [vmem:[%s281 + $0x38] sm:$0xff]
    %v1631 = vmul.f32 %v1623, %v401
    %v1632 = vmul.f32 %v1624, %v401
    %v1633 = vmul.f32 %v1625, %v416
    %v1634 = vmul.f32 %v1626, %v416
    %v1635 = vmul.f32 %v1627, %v431
    %v1636 = vmul.f32 %v1628, %v431
    %v1637 = vmul.f32 %v1629, %v446
    %v1638 = vmul.f32 %v1630, %v446
    %v1639 = vperm.slane %v1589, 1
    %v1640 = vperm.slane %v1604, 1
    %v1641 = vmul.f32 %v1631, %v1639
    %v1642 = vmul.f32 %v1632, %v1640
    %v1643 = vmul.f32 %v1633, %v1639
    %v1644 = vmul.f32 %v1634, %v1640
    %v1645 = vmul.f32 %v1635, %v1639
    %v1646 = vmul.f32 %v1636, %v1640
    %v1647 = vmul.f32 %v1637, %v1639
    %v1648 = vmul.f32 %v1638, %v1640
    %s1649 = scalar_lea.vmem [#allocation7], 64
    %1650 = vst [vmem:[%s1649] sm:$0xff] %v1641
    %1651 = vst [vmem:[%s1649 + $0x8] sm:$0xff] %v1642
    %1652 = vst [vmem:[%s1649 + $0x10] sm:$0xff] %v1643
    %1653 = vst [vmem:[%s1649 + $0x18] sm:$0xff] %v1644
    %1654 = vst [vmem:[%s1649 + $0x20] sm:$0xff] %v1645
    %1655 = vst [vmem:[%s1649 + $0x28] sm:$0xff] %v1646
    %1656 = vst [vmem:[%s1649 + $0x30] sm:$0xff] %v1647
    %1657 = vst [vmem:[%s1649 + $0x38] sm:$0xff] %v1648
    // Predicated region
    $region26: #{tpu_custom_call.1} parent=1 // pred_check
      _
    $region27: #{tpu_custom_call.1} parent=1 // pred_check_branch
      %1659 = sbr.rel (0) target = $region29
    $region28: #{tpu_custom_call.1} parent=1 // pred_region
      %1661 = vsyncadd [#allocation4], 0
      %s1662 = sshll.u32 [#allocation7], 4
      %s1663 = int_to_ptr.vmem [resolvable:$true] %s1662
      %s1664 = sshll.u32 %s4, 4
      %s1665 = int_to_ptr.hbm [resolvable:$true] %s1664
      %1670 = dma.vmem_to_hbm [thread:$0]  %s1663, 2048, %s1665, [#allocation4], 256, 256, 16
    $region29: #{tpu_custom_call.1} parent=1 // pred_fallthru
      _
    // Predicated region
    $region30: #{tpu_custom_call.1} parent=1 // pred_check
      _
    $region31: #{tpu_custom_call.1} parent=1 // pred_check_branch
      %1672 = sbr.rel (0) target = $region33
    $region32: #{tpu_custom_call.1} parent=1 // pred_region
      %1674 = dma.done [#allocation4], 2048
    $region33: #{tpu_custom_call.1} parent=1 // pred_fallthru
      _
    %1675 = vsyncpa [#allocation3], 1
    %1676 = vsyncpa [#allocation4], 1
    %1677 = vsyncpa [#allocation5], 1

</llo_original>
